<compile_context>
chip_gen: v7x
topology: tpu7x:2x2x1
jax: 0.10.0
libtpu: 0.0.40
codegen_flags: <defaults>
</compile_context>

<pallas_src>
import functools

import jax
import jax.numpy as jnp
from jax import lax
from jax.experimental import pallas as pl
from jax.experimental.pallas import tpu as pltpu


def _safe_logsumexp(x, axis):
    # matches torch.logsumexp behaviour for all -inf rows/cols (returns -inf)
    m = jnp.max(x, axis=axis, keepdims=True)
    ms = jnp.where(m > -jnp.inf, m, jnp.zeros_like(m))
    return ms + jnp.log(jnp.sum(jnp.exp(x - ms), axis=axis, keepdims=True))


def _dot_nt(a, b):
    # (p, k) @ (n, k)^T -> (p, n)
    return lax.dot_general(a, b, (((1,), (1,)), ((), ())),
                           preferred_element_type=jnp.float32)


def _mix_blocks(w, x3, *, transpose_w):
    """out[m] = sum_j w[m, j] * x3[j]   (uses w[j, m] if transpose_w).

    Soft block mixing against the (M, M) permutation.  Minimal FLOPs
    (M^2 * Nb * C) done as M^2 scalar-broadcast MACs on the VPU; M = blocks-1
    is small so this is negligible next to the attention matmuls, and it keeps
    every op on layouts Mosaic supports (kept in f32 for permutation accuracy).
    """
    M = x3.shape[0]
    rows = []
    for m in range(M):
        acc = None
        for j in range(M):
            wmj = w[j:j + 1, m:m + 1] if transpose_w else w[m:m + 1, j:j + 1]
            term = wmj * x3[j]                       # (1,1) bcast * (Nb, C)
            acc = term if acc is None else acc + term
        rows.append(acc[None])
    return jnp.concatenate(rows, axis=0)             # (M, Nb, C)


def _sparse_attn_kernel(q_ref, k_ref, v_ref, sq_ref, sk_ref, u_ref,
                        out_ref, ks_ref, *, Bt, M, Nb, C,
                        temperature, sinkhorn_iter, mxu_dtype):
    """Processes `Bt` batch elements per grid step.

    q/k/v refs : (Bt, M, Nb, C)  first (blocks-1) length-Nb chunks, channels minor
    sq/sk refs : (Bt, M, Nb)     channel-mean block summaries
    u ref      : (Bt, M, M)      uniform(0,1) noise for the Gumbel samples
    out ref    : (Bt, M, Nb, C)  un-permuted attention output
    ks ref     : (Bt, M, Nb, C)  softly permuted keys (k_sort)
    """
    f32 = jnp.float32
    inv_t = 1.0 / temperature
    cast = lambda x: x.astype(mxu_dtype)
    eps = 1e-6

    for bi in range(Bt):                             # static unroll over batch tile
        q3 = q_ref[bi]                               # (M, Nb, C) f32
        k3 = k_ref[bi]
        v3 = v_ref[bi]
        sq = sq_ref[bi]                              # (M, Nb)
        sk = sk_ref[bi]
        u = u_ref[bi]                                # (M, M)

        # ---- AttentionPermMatrix: block similarity + gumbel-sinkhorn (f32) --
        R = jnp.maximum(_dot_nt(sq, sk) * (C ** -0.5), 0.0)       # (M, M)
        g = -jnp.log(-jnp.log(u + eps) + eps)                     # sample_gumbel
        r = (jnp.log(R) + g) * inv_t
        for _ in range(sinkhorn_iter):                            # sinkhorn_sorting_operator
            r = r - _safe_logsumexp(r, axis=1)                    # torch dim=2
            r = r - _safe_logsumexp(r, axis=0)                    # torch dim=1
        S = jnp.exp(r)                                            # (M, M) soft permutation

        # ---- soft block permutation of k / v (directly against S, f32) ------
        ks3 = _mix_blocks(S, k3, transpose_w=True)    # ks3[m] = sum_j S[j,m] k3[j]
        vs3 = _mix_blocks(S, v3, transpose_w=True)

        # ---- block-local attention: batched over the block axis (MXU, bf16) -
        qs = q3 * inv_t                               # fold 1/T into q (f32)
        logits = jnp.einsum('mqc,mkc->mqk', cast(qs), cast(ks3),
                            preferred_element_type=f32)           # (M, Nb, Nb)
        lmax = jnp.max(logits, axis=-1, keepdims=True)
        p = jnp.exp(logits - lmax)
        denom = jnp.sum(p, axis=-1, keepdims=True)
        attn = p * pl.reciprocal(denom, approx=True)              # EUP reciprocal
        values = jnp.einsum('mqk,mkc->mqc', cast(attn), cast(vs3),
                            preferred_element_type=f32)           # (M, Nb, C)

        # ---- un-permute back to the original block order & store ------------
        out_ref[bi] = _mix_blocks(S, values, transpose_w=False)
        ks_ref[bi] = ks3


def sparse_attention(q, k, v, u, *, blocks, temperature, sinkhorn_iter,
                     mxu_dtype=jnp.bfloat16, batch_tile=1):
    """q, k, v: (B, C, N, 1) float32; u: (B, blocks-1, blocks-1) uniform noise.

    Returns (out, k_sort) with out: (B, 1, N, C), k_sort: (B, C, N//blocks,
    blocks-1), matching PyTorch SparseAttention.forward.  MXU operands are
    bfloat16 by default (f32 accumulation); set mxu_dtype=jnp.float32 for
    bit-tighter numerics.  `batch_tile` batches are processed per grid step.
    """
    B, C, N, _ = q.shape
    assert N % blocks == 0, "sequence length must be divisible by `blocks`"
    assert B % batch_tile == 0, "batch must be divisible by `batch_tile`"
    Nb = N // blocks
    M = blocks - 1
    f32 = jnp.float32

    def to_blocks(x):
        # (B, C, N, 1) -> (B, M, Nb, C): first (blocks-1) chunks, channels minor.
        xt = jnp.transpose(x[:, :, :M * Nb, 0].astype(f32), (0, 2, 1))
        return xt.reshape(B, M, Nb, C)

    q3, k3, v3 = to_blocks(q), to_blocks(k), to_blocks(v)

    # Channel-mean block summaries (see TODO(synk) at the top of the file).
    sq = jnp.mean(q3, axis=-1)                        # (B, M, Nb)
    sk = jnp.mean(k3, axis=-1)

    Bt = batch_tile
    kernel = functools.partial(
        _sparse_attn_kernel, Bt=Bt, M=M, Nb=Nb, C=C,
        temperature=float(temperature), sinkhorn_iter=int(sinkhorn_iter),
        mxu_dtype=mxu_dtype)

    out3, ks3 = pl.pallas_call(
        kernel,
        grid=(B // Bt,),
        in_specs=[
            pl.BlockSpec((Bt, M, Nb, C), lambda b: (b, 0, 0, 0)),   # q3
            pl.BlockSpec((Bt, M, Nb, C), lambda b: (b, 0, 0, 0)),   # k3
            pl.BlockSpec((Bt, M, Nb, C), lambda b: (b, 0, 0, 0)),   # v3
            pl.BlockSpec((Bt, M, Nb), lambda b: (b, 0, 0)),         # sq
            pl.BlockSpec((Bt, M, Nb), lambda b: (b, 0, 0)),         # sk
            pl.BlockSpec((Bt, M, M), lambda b: (b, 0, 0)),          # gumbel noise
        ],
        out_specs=[
            pl.BlockSpec((Bt, M, Nb, C), lambda b: (b, 0, 0, 0)),
            pl.BlockSpec((Bt, M, Nb, C), lambda b: (b, 0, 0, 0)),
        ],
        out_shape=[
            jax.ShapeDtypeStruct((B, M, Nb, C), f32),
            jax.ShapeDtypeStruct((B, M, Nb, C), f32),
        ],
        compiler_params=pltpu.CompilerParams(
            dimension_semantics=("parallel",),
            # Raise further for larger Nb*C tiles; leave headroom on v7x (64 MiB).
            vmem_limit_bytes=32 * 1024 * 1024),
    )(q3, k3, v3, sq, sk, u.astype(f32))

    # torch.cat(org_perm_val.chunk(blocks, dim=1), dim=2) == flat (M*Nb) layout
    main = out3.reshape(B, 1, M * Nb, C)
    # v.chunk(blocks, dim=2)[-1].transpose(1, 3)
    b_v_last = jnp.transpose(v[:, :, M * Nb:, :].astype(f32), (0, 3, 2, 1))
    out = jnp.concatenate([main, b_v_last], axis=2)               # (B, 1, N, C)
    k_sort = jnp.transpose(ks3, (0, 3, 2, 1))                     # (B, C, Nb, M)
    return out, k_sort


def reference(q, k, v, u, blocks, temperature, n_iters):
    """Pure-JAX transliteration of the PyTorch module (for verification)."""
    hi = lax.Precision.HIGHEST
    B, C, N, _ = q.shape
    Nb = N // blocks
    M = blocks - 1
    blockify = lambda x: jnp.concatenate(
        [x[:, :, j * Nb:(j + 1) * Nb, :] for j in range(M)], axis=-1)
    b_q, b_k, b_v = blockify(q), blockify(k), blockify(v)   # (B, C, Nb, M)
    sq = jnp.transpose(jnp.mean(b_q, axis=1), (0, 2, 1))
    sk = jnp.transpose(jnp.mean(b_k, axis=1), (0, 2, 1))
    R = jnp.einsum('bie,bje->bij', sq, sk, precision=hi) * (C ** -0.5)
    R = jnp.maximum(R, 0.0)
    eps = 1e-6
    g = -jnp.log(-jnp.log(u + eps) + eps)
    r = (jnp.log(R) + g) / temperature
    for _ in range(n_iters):
        r = r - _safe_logsumexp(r, axis=2)
        r = r - _safe_logsumexp(r, axis=1)
    S = jnp.exp(r)
    perm = jnp.broadcast_to(S[:, None], (B, C, M, M))
    k_sort = jnp.matmul(b_k, perm, precision=hi)
    v_sort = jnp.matmul(b_v, perm, precision=hi)
    b_q_t = jnp.transpose(b_q, (0, 3, 2, 1))
    b_k_s = jnp.transpose(k_sort, (0, 3, 2, 1))
    b_v_s = jnp.transpose(v_sort, (0, 3, 2, 1))
    logits = jnp.matmul(b_q_t, jnp.transpose(b_k_s, (0, 1, 3, 2)),
                        precision=hi) / temperature
    attn = jax.nn.softmax(logits, axis=-1)
    value = jnp.matmul(attn, b_v_s, precision=hi)
    vv = jnp.transpose(jnp.transpose(value, (0, 3, 2, 1)), (0, 1, 3, 2))
    opv = jnp.transpose(jnp.transpose(jnp.matmul(perm, vv, precision=hi),
                                      (0, 1, 3, 2)), (0, 3, 2, 1))  # (B,M,Nb,C)
    main = jnp.concatenate([opv[:, m:m + 1] for m in range(M)], axis=2)
    b_v_last = jnp.transpose(v[:, :, M * Nb:, :], (0, 3, 2, 1))
    return jnp.concatenate([main, b_v_last], axis=2), k_sort


if __name__ == "__main__":
    B, C, N = 4, 32, 64
    blocks, temperature, sinkhorn_iter = 4, 0.75, 5
    M = blocks - 1

    key = jax.random.PRNGKey(0)
    kq, kk, kv, ku = jax.random.split(key, 4)
    # positive inputs keep relu(R) > 0 so log/sinkhorn stay finite in the demo
    q = jax.random.uniform(kq, (B, C, N, 1), jnp.float32, 0.1, 1.0)
    k = jax.random.uniform(kk, (B, C, N, 1), jnp.float32, 0.1, 1.0)
    v = jax.random.uniform(kv, (B, C, N, 1), jnp.float32, 0.1, 1.0)
    u = jax.random.uniform(ku, (B, M, M), jnp.float32, 0.0, 1.0)  # gumbel noise source

    out, k_sort = sparse_attention(q, k, v, u, blocks=blocks,
                                   temperature=temperature,
                                   sinkhorn_iter=sinkhorn_iter,
                                   batch_tile=2)
    jax.block_until_ready((out, k_sort))

    out_ref, ks_ref = reference(q, k, v, u, blocks, temperature, sinkhorn_iter)
    assert out.shape == (B, 1, N, C), out.shape
    assert k_sort.shape == (B, C, N // blocks, M), k_sort.shape
    assert bool(jnp.all(jnp.isfinite(out)))
    assert bool(jnp.allclose(out, out_ref, rtol=2e-2, atol=2e-2))
    assert bool(jnp.allclose(k_sort, ks_ref, rtol=2e-2, atol=2e-2))
    print("KERNEL_OK")
</pallas_src>

<mosaic_0001>
module attributes {stable_mosaic.version = 11 : i64} {
  func.func @_sparse_attn_kernel(%arg0: i32, %arg1: memref<2x3x16x32xf32, #tpu.memory_space<vmem>>, %arg2: memref<2x3x16x32xf32, #tpu.memory_space<vmem>>, %arg3: memref<2x3x16x32xf32, #tpu.memory_space<vmem>>, %arg4: memref<2x3x16xf32, #tpu.memory_space<vmem>>, %arg5: memref<2x3x16xf32, #tpu.memory_space<vmem>>, %arg6: memref<2x3x3xf32, #tpu.memory_space<vmem>>, %arg7: memref<2x3x16x32xf32, #tpu.memory_space<vmem>>, %arg8: memref<2x3x16x32xf32, #tpu.memory_space<vmem>>) attributes {dimension_semantics = [#tpu.dimension_semantics<parallel>], iteration_bounds = array<i64: 2>, scalar_prefetch = 0 : i64, scratch_operands = 0 : i64, tpu.core_type = #tpu.core_type<tc>, window_params = [{transform_indices = @transform_0, window_bounds = array<i64: 2, 3, 16, 32>}, {transform_indices = @transform_1, window_bounds = array<i64: 2, 3, 16, 32>}, {transform_indices = @transform_2, window_bounds = array<i64: 2, 3, 16, 32>}, {transform_indices = @transform_3, window_bounds = array<i64: 2, 3, 16>}, {transform_indices = @transform_4, window_bounds = array<i64: 2, 3, 16>}, {transform_indices = @transform_5, window_bounds = array<i64: 2, 3, 3>}, {transform_indices = @transform_6, window_bounds = array<i64: 2, 3, 16, 32>}, {transform_indices = @transform_7, window_bounds = array<i64: 2, 3, 16, 32>}]} {
    %c0 = arith.constant 0 : index
    %c0_0 = arith.constant 0 : index
    %c0_1 = arith.constant 0 : index
    %c0_2 = arith.constant 0 : index
    %0 = vector.load %arg1[%c0, %c0_0, %c0_1, %c0_2] : memref<2x3x16x32xf32, #tpu.memory_space<vmem>>, vector<1x3x16x32xf32>
    %1 = vector.shape_cast %0 : vector<1x3x16x32xf32> to vector<3x16x32xf32>
    %c0_3 = arith.constant 0 : index
    %c0_4 = arith.constant 0 : index
    %c0_5 = arith.constant 0 : index
    %c0_6 = arith.constant 0 : index
    %2 = vector.load %arg2[%c0_3, %c0_4, %c0_5, %c0_6] : memref<2x3x16x32xf32, #tpu.memory_space<vmem>>, vector<1x3x16x32xf32>
    %3 = vector.shape_cast %2 : vector<1x3x16x32xf32> to vector<3x16x32xf32>
    %c0_7 = arith.constant 0 : index
    %c0_8 = arith.constant 0 : index
    %c0_9 = arith.constant 0 : index
    %c0_10 = arith.constant 0 : index
    %4 = vector.load %arg3[%c0_7, %c0_8, %c0_9, %c0_10] : memref<2x3x16x32xf32, #tpu.memory_space<vmem>>, vector<1x3x16x32xf32>
    %5 = vector.shape_cast %4 : vector<1x3x16x32xf32> to vector<3x16x32xf32>
    %c0_11 = arith.constant 0 : index
    %c0_12 = arith.constant 0 : index
    %c0_13 = arith.constant 0 : index
    %6 = vector.load %arg4[%c0_11, %c0_12, %c0_13] : memref<2x3x16xf32, #tpu.memory_space<vmem>>, vector<1x3x16xf32>
    %7 = vector.shape_cast %6 : vector<1x3x16xf32> to vector<3x16xf32>
    %c0_14 = arith.constant 0 : index
    %c0_15 = arith.constant 0 : index
    %c0_16 = arith.constant 0 : index
    %8 = vector.load %arg5[%c0_14, %c0_15, %c0_16] : memref<2x3x16xf32, #tpu.memory_space<vmem>>, vector<1x3x16xf32>
    %9 = vector.shape_cast %8 : vector<1x3x16xf32> to vector<3x16xf32>
    %c0_17 = arith.constant 0 : index
    %c0_18 = arith.constant 0 : index
    %c0_19 = arith.constant 0 : index
    %10 = vector.load %arg6[%c0_17, %c0_18, %c0_19] : memref<2x3x3xf32, #tpu.memory_space<vmem>>, vector<1x3x3xf32>
    %11 = vector.shape_cast %10 : vector<1x3x3xf32> to vector<3x3xf32>
    %cst = arith.constant dense<0.000000e+00> : vector<3x3xf32>
    %12 = tpu.matmul %7, %9, %cst {dimension_numbers = #tpu.dot_dimension_numbers<[1], [1], [0], [0], [0, 0, 1, 0], [], []>} : vector<3x16xf32>, vector<3x16xf32>, vector<3x3xf32> -> vector<3x3xf32>
    %cst_20 = arith.constant 0.176776692 : f32
    %13 = vector.broadcast %cst_20 : f32 to vector<3x3xf32>
    %14 = arith.mulf %12, %13 : vector<3x3xf32>
    %cst_21 = arith.constant 0.000000e+00 : f32
    %15 = vector.broadcast %cst_21 : f32 to vector<3x3xf32>
    %16 = arith.maximumf %14, %15 : vector<3x3xf32>
    %cst_22 = arith.constant 9.99999997E-7 : f32
    %17 = vector.broadcast %cst_22 : f32 to vector<3x3xf32>
    %18 = arith.addf %11, %17 : vector<3x3xf32>
    %19 = math.log %18 : vector<3x3xf32>
    %cst_23 = arith.constant 0.000000e+00 : f32
    %20 = vector.broadcast %cst_23 : f32 to vector<3x3xf32>
    %21 = arith.subf %20, %19 : vector<3x3xf32>
    %cst_24 = arith.constant 9.99999997E-7 : f32
    %22 = vector.broadcast %cst_24 : f32 to vector<3x3xf32>
    %23 = arith.addf %21, %22 : vector<3x3xf32>
    %24 = math.log %23 : vector<3x3xf32>
    %cst_25 = arith.constant 0.000000e+00 : f32
    %25 = vector.broadcast %cst_25 : f32 to vector<3x3xf32>
    %26 = arith.subf %25, %24 : vector<3x3xf32>
    %27 = math.log %16 : vector<3x3xf32>
    %28 = arith.addf %27, %26 : vector<3x3xf32>
    %cst_26 = arith.constant 1.33333337 : f32
    %29 = vector.broadcast %cst_26 : f32 to vector<3x3xf32>
    %30 = arith.mulf %28, %29 : vector<3x3xf32>
    %cst_27 = arith.constant dense<0xFF800000> : vector<3xf32>
    %31 = vector.multi_reduction <maximumf>, %30, %cst_27 [1] : vector<3x3xf32> to vector<3xf32>
    %32 = vector.shape_cast %31 : vector<3xf32> to vector<3x1xf32>
    %cst_28 = arith.constant 0xFF800000 : f32
    %33 = vector.broadcast %cst_28 : f32 to vector<3x1xf32>
    %34 = arith.cmpf ogt, %32, %33 : vector<3x1xf32>
    %cst_29 = arith.constant 0.000000e+00 : f32
    %35 = vector.broadcast %cst_29 : f32 to vector<3x1xf32>
    %36 = arith.select %34, %32, %35 : vector<3x1xi1>, vector<3x1xf32>
    %37 = vector.broadcast %36 : vector<3x1xf32> to vector<3x3xf32>
    %38 = arith.subf %30, %37 : vector<3x3xf32>
    %39 = math.exp %38 : vector<3x3xf32>
    %cst_30 = arith.constant dense<0.000000e+00> : vector<3xf32>
    %40 = vector.multi_reduction <add>, %39, %cst_30 [1] : vector<3x3xf32> to vector<3xf32>
    %41 = vector.shape_cast %40 : vector<3xf32> to vector<3x1xf32>
    %42 = math.log %41 : vector<3x1xf32>
    %43 = arith.addf %36, %42 : vector<3x1xf32>
    %44 = vector.broadcast %43 : vector<3x1xf32> to vector<3x3xf32>
    %45 = arith.subf %30, %44 : vector<3x3xf32>
    %cst_31 = arith.constant dense<0xFF800000> : vector<3xf32>
    %46 = vector.multi_reduction <maximumf>, %45, %cst_31 [0] : vector<3x3xf32> to vector<3xf32>
    %47 = vector.shape_cast %46 : vector<3xf32> to vector<1x3xf32>
    %cst_32 = arith.constant 0xFF800000 : f32
    %48 = vector.broadcast %cst_32 : f32 to vector<1x3xf32>
    %49 = arith.cmpf ogt, %47, %48 : vector<1x3xf32>
    %cst_33 = arith.constant 0.000000e+00 : f32
    %50 = vector.broadcast %cst_33 : f32 to vector<1x3xf32>
    %51 = arith.select %49, %47, %50 : vector<1x3xi1>, vector<1x3xf32>
    %52 = vector.broadcast %51 : vector<1x3xf32> to vector<3x3xf32>
    %53 = arith.subf %45, %52 : vector<3x3xf32>
    %54 = math.exp %53 : vector<3x3xf32>
    %cst_34 = arith.constant dense<0.000000e+00> : vector<3xf32>
    %55 = vector.multi_reduction <add>, %54, %cst_34 [0] : vector<3x3xf32> to vector<3xf32>
    %56 = vector.shape_cast %55 : vector<3xf32> to vector<1x3xf32>
    %57 = math.log %56 : vector<1x3xf32>
    %58 = arith.addf %51, %57 : vector<1x3xf32>
    %59 = vector.broadcast %58 : vector<1x3xf32> to vector<3x3xf32>
    %60 = arith.subf %45, %59 : vector<3x3xf32>
    %cst_35 = arith.constant dense<0xFF800000> : vector<3xf32>
    %61 = vector.multi_reduction <maximumf>, %60, %cst_35 [1] : vector<3x3xf32> to vector<3xf32>
    %62 = vector.shape_cast %61 : vector<3xf32> to vector<3x1xf32>
    %cst_36 = arith.constant 0xFF800000 : f32
    %63 = vector.broadcast %cst_36 : f32 to vector<3x1xf32>
    %64 = arith.cmpf ogt, %62, %63 : vector<3x1xf32>
    %cst_37 = arith.constant 0.000000e+00 : f32
    %65 = vector.broadcast %cst_37 : f32 to vector<3x1xf32>
    %66 = arith.select %64, %62, %65 : vector<3x1xi1>, vector<3x1xf32>
    %67 = vector.broadcast %66 : vector<3x1xf32> to vector<3x3xf32>
    %68 = arith.subf %60, %67 : vector<3x3xf32>
    %69 = math.exp %68 : vector<3x3xf32>
    %cst_38 = arith.constant dense<0.000000e+00> : vector<3xf32>
    %70 = vector.multi_reduction <add>, %69, %cst_38 [1] : vector<3x3xf32> to vector<3xf32>
    %71 = vector.shape_cast %70 : vector<3xf32> to vector<3x1xf32>
    %72 = math.log %71 : vector<3x1xf32>
    %73 = arith.addf %66, %72 : vector<3x1xf32>
    %74 = vector.broadcast %73 : vector<3x1xf32> to vector<3x3xf32>
    %75 = arith.subf %60, %74 : vector<3x3xf32>
    %cst_39 = arith.constant dense<0xFF800000> : vector<3xf32>
    %76 = vector.multi_reduction <maximumf>, %75, %cst_39 [0] : vector<3x3xf32> to vector<3xf32>
    %77 = vector.shape_cast %76 : vector<3xf32> to vector<1x3xf32>
    %cst_40 = arith.constant 0xFF800000 : f32
    %78 = vector.broadcast %cst_40 : f32 to vector<1x3xf32>
    %79 = arith.cmpf ogt, %77, %78 : vector<1x3xf32>
    %cst_41 = arith.constant 0.000000e+00 : f32
    %80 = vector.broadcast %cst_41 : f32 to vector<1x3xf32>
    %81 = arith.select %79, %77, %80 : vector<1x3xi1>, vector<1x3xf32>
    %82 = vector.broadcast %81 : vector<1x3xf32> to vector<3x3xf32>
    %83 = arith.subf %75, %82 : vector<3x3xf32>
    %84 = math.exp %83 : vector<3x3xf32>
    %cst_42 = arith.constant dense<0.000000e+00> : vector<3xf32>
    %85 = vector.multi_reduction <add>, %84, %cst_42 [0] : vector<3x3xf32> to vector<3xf32>
    %86 = vector.shape_cast %85 : vector<3xf32> to vector<1x3xf32>
    %87 = math.log %86 : vector<1x3xf32>
    %88 = arith.addf %81, %87 : vector<1x3xf32>
    %89 = vector.broadcast %88 : vector<1x3xf32> to vector<3x3xf32>
    %90 = arith.subf %75, %89 : vector<3x3xf32>
    %cst_43 = arith.constant dense<0xFF800000> : vector<3xf32>
    %91 = vector.multi_reduction <maximumf>, %90, %cst_43 [1] : vector<3x3xf32> to vector<3xf32>
    %92 = vector.shape_cast %91 : vector<3xf32> to vector<3x1xf32>
    %cst_44 = arith.constant 0xFF800000 : f32
    %93 = vector.broadcast %cst_44 : f32 to vector<3x1xf32>
    %94 = arith.cmpf ogt, %92, %93 : vector<3x1xf32>
    %cst_45 = arith.constant 0.000000e+00 : f32
    %95 = vector.broadcast %cst_45 : f32 to vector<3x1xf32>
    %96 = arith.select %94, %92, %95 : vector<3x1xi1>, vector<3x1xf32>
    %97 = vector.broadcast %96 : vector<3x1xf32> to vector<3x3xf32>
    %98 = arith.subf %90, %97 : vector<3x3xf32>
    %99 = math.exp %98 : vector<3x3xf32>
    %cst_46 = arith.constant dense<0.000000e+00> : vector<3xf32>
    %100 = vector.multi_reduction <add>, %99, %cst_46 [1] : vector<3x3xf32> to vector<3xf32>
    %101 = vector.shape_cast %100 : vector<3xf32> to vector<3x1xf32>
    %102 = math.log %101 : vector<3x1xf32>
    %103 = arith.addf %96, %102 : vector<3x1xf32>
    %104 = vector.broadcast %103 : vector<3x1xf32> to vector<3x3xf32>
    %105 = arith.subf %90, %104 : vector<3x3xf32>
    %cst_47 = arith.constant dense<0xFF800000> : vector<3xf32>
    %106 = vector.multi_reduction <maximumf>, %105, %cst_47 [0] : vector<3x3xf32> to vector<3xf32>
    %107 = vector.shape_cast %106 : vector<3xf32> to vector<1x3xf32>
    %cst_48 = arith.constant 0xFF800000 : f32
    %108 = vector.broadcast %cst_48 : f32 to vector<1x3xf32>
    %109 = arith.cmpf ogt, %107, %108 : vector<1x3xf32>
    %cst_49 = arith.constant 0.000000e+00 : f32
    %110 = vector.broadcast %cst_49 : f32 to vector<1x3xf32>
    %111 = arith.select %109, %107, %110 : vector<1x3xi1>, vector<1x3xf32>
    %112 = vector.broadcast %111 : vector<1x3xf32> to vector<3x3xf32>
    %113 = arith.subf %105, %112 : vector<3x3xf32>
    %114 = math.exp %113 : vector<3x3xf32>
    %cst_50 = arith.constant dense<0.000000e+00> : vector<3xf32>
    %115 = vector.multi_reduction <add>, %114, %cst_50 [0] : vector<3x3xf32> to vector<3xf32>
    %116 = vector.shape_cast %115 : vector<3xf32> to vector<1x3xf32>
    %117 = math.log %116 : vector<1x3xf32>
    %118 = arith.addf %111, %117 : vector<1x3xf32>
    %119 = vector.broadcast %118 : vector<1x3xf32> to vector<3x3xf32>
    %120 = arith.subf %105, %119 : vector<3x3xf32>
    %cst_51 = arith.constant dense<0xFF800000> : vector<3xf32>
    %121 = vector.multi_reduction <maximumf>, %120, %cst_51 [1] : vector<3x3xf32> to vector<3xf32>
    %122 = vector.shape_cast %121 : vector<3xf32> to vector<3x1xf32>
    %cst_52 = arith.constant 0xFF800000 : f32
    %123 = vector.broadcast %cst_52 : f32 to vector<3x1xf32>
    %124 = arith.cmpf ogt, %122, %123 : vector<3x1xf32>
    %cst_53 = arith.constant 0.000000e+00 : f32
    %125 = vector.broadcast %cst_53 : f32 to vector<3x1xf32>
    %126 = arith.select %124, %122, %125 : vector<3x1xi1>, vector<3x1xf32>
    %127 = vector.broadcast %126 : vector<3x1xf32> to vector<3x3xf32>
    %128 = arith.subf %120, %127 : vector<3x3xf32>
    %129 = math.exp %128 : vector<3x3xf32>
    %cst_54 = arith.constant dense<0.000000e+00> : vector<3xf32>
    %130 = vector.multi_reduction <add>, %129, %cst_54 [1] : vector<3x3xf32> to vector<3xf32>
    %131 = vector.shape_cast %130 : vector<3xf32> to vector<3x1xf32>
    %132 = math.log %131 : vector<3x1xf32>
    %133 = arith.addf %126, %132 : vector<3x1xf32>
    %134 = vector.broadcast %133 : vector<3x1xf32> to vector<3x3xf32>
    %135 = arith.subf %120, %134 : vector<3x3xf32>
    %cst_55 = arith.constant dense<0xFF800000> : vector<3xf32>
    %136 = vector.multi_reduction <maximumf>, %135, %cst_55 [0] : vector<3x3xf32> to vector<3xf32>
    %137 = vector.shape_cast %136 : vector<3xf32> to vector<1x3xf32>
    %cst_56 = arith.constant 0xFF800000 : f32
    %138 = vector.broadcast %cst_56 : f32 to vector<1x3xf32>
    %139 = arith.cmpf ogt, %137, %138 : vector<1x3xf32>
    %cst_57 = arith.constant 0.000000e+00 : f32
    %140 = vector.broadcast %cst_57 : f32 to vector<1x3xf32>
    %141 = arith.select %139, %137, %140 : vector<1x3xi1>, vector<1x3xf32>
    %142 = vector.broadcast %141 : vector<1x3xf32> to vector<3x3xf32>
    %143 = arith.subf %135, %142 : vector<3x3xf32>
    %144 = math.exp %143 : vector<3x3xf32>
    %cst_58 = arith.constant dense<0.000000e+00> : vector<3xf32>
    %145 = vector.multi_reduction <add>, %144, %cst_58 [0] : vector<3x3xf32> to vector<3xf32>
    %146 = vector.shape_cast %145 : vector<3xf32> to vector<1x3xf32>
    %147 = math.log %146 : vector<1x3xf32>
    %148 = arith.addf %141, %147 : vector<1x3xf32>
    %149 = vector.broadcast %148 : vector<1x3xf32> to vector<3x3xf32>
    %150 = arith.subf %135, %149 : vector<3x3xf32>
    %cst_59 = arith.constant dense<0xFF800000> : vector<3xf32>
    %151 = vector.multi_reduction <maximumf>, %150, %cst_59 [1] : vector<3x3xf32> to vector<3xf32>
    %152 = vector.shape_cast %151 : vector<3xf32> to vector<3x1xf32>
    %cst_60 = arith.constant 0xFF800000 : f32
    %153 = vector.broadcast %cst_60 : f32 to vector<3x1xf32>
    %154 = arith.cmpf ogt, %152, %153 : vector<3x1xf32>
    %cst_61 = arith.constant 0.000000e+00 : f32
    %155 = vector.broadcast %cst_61 : f32 to vector<3x1xf32>
    %156 = arith.select %154, %152, %155 : vector<3x1xi1>, vector<3x1xf32>
    %157 = vector.broadcast %156 : vector<3x1xf32> to vector<3x3xf32>
    %158 = arith.subf %150, %157 : vector<3x3xf32>
    %159 = math.exp %158 : vector<3x3xf32>
    %cst_62 = arith.constant dense<0.000000e+00> : vector<3xf32>
    %160 = vector.multi_reduction <add>, %159, %cst_62 [1] : vector<3x3xf32> to vector<3xf32>
    %161 = vector.shape_cast %160 : vector<3xf32> to vector<3x1xf32>
    %162 = math.log %161 : vector<3x1xf32>
    %163 = arith.addf %156, %162 : vector<3x1xf32>
    %164 = vector.broadcast %163 : vector<3x1xf32> to vector<3x3xf32>
    %165 = arith.subf %150, %164 : vector<3x3xf32>
    %cst_63 = arith.constant dense<0xFF800000> : vector<3xf32>
    %166 = vector.multi_reduction <maximumf>, %165, %cst_63 [0] : vector<3x3xf32> to vector<3xf32>
    %167 = vector.shape_cast %166 : vector<3xf32> to vector<1x3xf32>
    %cst_64 = arith.constant 0xFF800000 : f32
    %168 = vector.broadcast %cst_64 : f32 to vector<1x3xf32>
    %169 = arith.cmpf ogt, %167, %168 : vector<1x3xf32>
    %cst_65 = arith.constant 0.000000e+00 : f32
    %170 = vector.broadcast %cst_65 : f32 to vector<1x3xf32>
    %171 = arith.select %169, %167, %170 : vector<1x3xi1>, vector<1x3xf32>
    %172 = vector.broadcast %171 : vector<1x3xf32> to vector<3x3xf32>
    %173 = arith.subf %165, %172 : vector<3x3xf32>
    %174 = math.exp %173 : vector<3x3xf32>
    %cst_66 = arith.constant dense<0.000000e+00> : vector<3xf32>
    %175 = vector.multi_reduction <add>, %174, %cst_66 [0] : vector<3x3xf32> to vector<3xf32>
    %176 = vector.shape_cast %175 : vector<3xf32> to vector<1x3xf32>
    %177 = math.log %176 : vector<1x3xf32>
    %178 = arith.addf %171, %177 : vector<1x3xf32>
    %179 = vector.broadcast %178 : vector<1x3xf32> to vector<3x3xf32>
    %180 = arith.subf %165, %179 : vector<3x3xf32>
    %181 = math.exp %180 : vector<3x3xf32>
    %182 = vector.extract_strided_slice %181 {offsets = [0, 0], sizes = [1, 1], strides = [1, 1]} : vector<3x3xf32> to vector<1x1xf32>
    %183 = vector.extract_strided_slice %3 {offsets = [0, 0, 0], sizes = [1, 16, 32], strides = [1, 1, 1]} : vector<3x16x32xf32> to vector<1x16x32xf32>
    %184 = vector.shape_cast %183 : vector<1x16x32xf32> to vector<16x32xf32>
    %185 = vector.broadcast %182 : vector<1x1xf32> to vector<16x32xf32>
    %186 = arith.mulf %185, %184 : vector<16x32xf32>
    %187 = vector.extract_strided_slice %181 {offsets = [1, 0], sizes = [1, 1], strides = [1, 1]} : vector<3x3xf32> to vector<1x1xf32>
    %188 = vector.extract_strided_slice %3 {offsets = [1, 0, 0], sizes = [1, 16, 32], strides = [1, 1, 1]} : vector<3x16x32xf32> to vector<1x16x32xf32>
    %189 = vector.shape_cast %188 : vector<1x16x32xf32> to vector<16x32xf32>
    %190 = vector.broadcast %187 : vector<1x1xf32> to vector<16x32xf32>
    %191 = arith.mulf %190, %189 : vector<16x32xf32>
    %192 = arith.addf %186, %191 : vector<16x32xf32>
    %193 = vector.extract_strided_slice %181 {offsets = [2, 0], sizes = [1, 1], strides = [1, 1]} : vector<3x3xf32> to vector<1x1xf32>
    %194 = vector.extract_strided_slice %3 {offsets = [2, 0, 0], sizes = [1, 16, 32], strides = [1, 1, 1]} : vector<3x16x32xf32> to vector<1x16x32xf32>
    %195 = vector.shape_cast %194 : vector<1x16x32xf32> to vector<16x32xf32>
    %196 = vector.broadcast %193 : vector<1x1xf32> to vector<16x32xf32>
    %197 = arith.mulf %196, %195 : vector<16x32xf32>
    %198 = arith.addf %192, %197 : vector<16x32xf32>
    %199 = vector.shape_cast %198 : vector<16x32xf32> to vector<1x16x32xf32>
    %200 = vector.extract_strided_slice %181 {offsets = [0, 1], sizes = [1, 1], strides = [1, 1]} : vector<3x3xf32> to vector<1x1xf32>
    %201 = vector.extract_strided_slice %3 {offsets = [0, 0, 0], sizes = [1, 16, 32], strides = [1, 1, 1]} : vector<3x16x32xf32> to vector<1x16x32xf32>
    %202 = vector.shape_cast %201 : vector<1x16x32xf32> to vector<16x32xf32>
    %203 = vector.broadcast %200 : vector<1x1xf32> to vector<16x32xf32>
    %204 = arith.mulf %203, %202 : vector<16x32xf32>
    %205 = vector.extract_strided_slice %181 {offsets = [1, 1], sizes = [1, 1], strides = [1, 1]} : vector<3x3xf32> to vector<1x1xf32>
    %206 = vector.extract_strided_slice %3 {offsets = [1, 0, 0], sizes = [1, 16, 32], strides = [1, 1, 1]} : vector<3x16x32xf32> to vector<1x16x32xf32>
    %207 = vector.shape_cast %206 : vector<1x16x32xf32> to vector<16x32xf32>
    %208 = vector.broadcast %205 : vector<1x1xf32> to vector<16x32xf32>
    %209 = arith.mulf %208, %207 : vector<16x32xf32>
    %210 = arith.addf %204, %209 : vector<16x32xf32>
    %211 = vector.extract_strided_slice %181 {offsets = [2, 1], sizes = [1, 1], strides = [1, 1]} : vector<3x3xf32> to vector<1x1xf32>
    %212 = vector.extract_strided_slice %3 {offsets = [2, 0, 0], sizes = [1, 16, 32], strides = [1, 1, 1]} : vector<3x16x32xf32> to vector<1x16x32xf32>
    %213 = vector.shape_cast %212 : vector<1x16x32xf32> to vector<16x32xf32>
    %214 = vector.broadcast %211 : vector<1x1xf32> to vector<16x32xf32>
    %215 = arith.mulf %214, %213 : vector<16x32xf32>
    %216 = arith.addf %210, %215 : vector<16x32xf32>
    %217 = vector.shape_cast %216 : vector<16x32xf32> to vector<1x16x32xf32>
    %218 = vector.extract_strided_slice %181 {offsets = [0, 2], sizes = [1, 1], strides = [1, 1]} : vector<3x3xf32> to vector<1x1xf32>
    %219 = vector.extract_strided_slice %3 {offsets = [0, 0, 0], sizes = [1, 16, 32], strides = [1, 1, 1]} : vector<3x16x32xf32> to vector<1x16x32xf32>
    %220 = vector.shape_cast %219 : vector<1x16x32xf32> to vector<16x32xf32>
    %221 = vector.broadcast %218 : vector<1x1xf32> to vector<16x32xf32>
    %222 = arith.mulf %221, %220 : vector<16x32xf32>
    %223 = vector.extract_strided_slice %181 {offsets = [1, 2], sizes = [1, 1], strides = [1, 1]} : vector<3x3xf32> to vector<1x1xf32>
    %224 = vector.extract_strided_slice %3 {offsets = [1, 0, 0], sizes = [1, 16, 32], strides = [1, 1, 1]} : vector<3x16x32xf32> to vector<1x16x32xf32>
    %225 = vector.shape_cast %224 : vector<1x16x32xf32> to vector<16x32xf32>
    %226 = vector.broadcast %223 : vector<1x1xf32> to vector<16x32xf32>
    %227 = arith.mulf %226, %225 : vector<16x32xf32>
    %228 = arith.addf %222, %227 : vector<16x32xf32>
    %229 = vector.extract_strided_slice %181 {offsets = [2, 2], sizes = [1, 1], strides = [1, 1]} : vector<3x3xf32> to vector<1x1xf32>
    %230 = vector.extract_strided_slice %3 {offsets = [2, 0, 0], sizes = [1, 16, 32], strides = [1, 1, 1]} : vector<3x16x32xf32> to vector<1x16x32xf32>
    %231 = vector.shape_cast %230 : vector<1x16x32xf32> to vector<16x32xf32>
    %232 = vector.broadcast %229 : vector<1x1xf32> to vector<16x32xf32>
    %233 = arith.mulf %232, %231 : vector<16x32xf32>
    %234 = arith.addf %228, %233 : vector<16x32xf32>
    %235 = vector.shape_cast %234 : vector<16x32xf32> to vector<1x16x32xf32>
    %236 = tpu.concatenate %199, %217, %235 in 0 : vector<1x16x32xf32>, vector<1x16x32xf32>, vector<1x16x32xf32> -> vector<3x16x32xf32>
    %237 = vector.extract_strided_slice %181 {offsets = [0, 0], sizes = [1, 1], strides = [1, 1]} : vector<3x3xf32> to vector<1x1xf32>
    %238 = vector.extract_strided_slice %5 {offsets = [0, 0, 0], sizes = [1, 16, 32], strides = [1, 1, 1]} : vector<3x16x32xf32> to vector<1x16x32xf32>
    %239 = vector.shape_cast %238 : vector<1x16x32xf32> to vector<16x32xf32>
    %240 = vector.broadcast %237 : vector<1x1xf32> to vector<16x32xf32>
    %241 = arith.mulf %240, %239 : vector<16x32xf32>
    %242 = vector.extract_strided_slice %181 {offsets = [1, 0], sizes = [1, 1], strides = [1, 1]} : vector<3x3xf32> to vector<1x1xf32>
    %243 = vector.extract_strided_slice %5 {offsets = [1, 0, 0], sizes = [1, 16, 32], strides = [1, 1, 1]} : vector<3x16x32xf32> to vector<1x16x32xf32>
    %244 = vector.shape_cast %243 : vector<1x16x32xf32> to vector<16x32xf32>
    %245 = vector.broadcast %242 : vector<1x1xf32> to vector<16x32xf32>
    %246 = arith.mulf %245, %244 : vector<16x32xf32>
    %247 = arith.addf %241, %246 : vector<16x32xf32>
    %248 = vector.extract_strided_slice %181 {offsets = [2, 0], sizes = [1, 1], strides = [1, 1]} : vector<3x3xf32> to vector<1x1xf32>
    %249 = vector.extract_strided_slice %5 {offsets = [2, 0, 0], sizes = [1, 16, 32], strides = [1, 1, 1]} : vector<3x16x32xf32> to vector<1x16x32xf32>
    %250 = vector.shape_cast %249 : vector<1x16x32xf32> to vector<16x32xf32>
    %251 = vector.broadcast %248 : vector<1x1xf32> to vector<16x32xf32>
    %252 = arith.mulf %251, %250 : vector<16x32xf32>
    %253 = arith.addf %247, %252 : vector<16x32xf32>
    %254 = vector.shape_cast %253 : vector<16x32xf32> to vector<1x16x32xf32>
    %255 = vector.extract_strided_slice %181 {offsets = [0, 1], sizes = [1, 1], strides = [1, 1]} : vector<3x3xf32> to vector<1x1xf32>
    %256 = vector.extract_strided_slice %5 {offsets = [0, 0, 0], sizes = [1, 16, 32], strides = [1, 1, 1]} : vector<3x16x32xf32> to vector<1x16x32xf32>
    %257 = vector.shape_cast %256 : vector<1x16x32xf32> to vector<16x32xf32>
    %258 = vector.broadcast %255 : vector<1x1xf32> to vector<16x32xf32>
    %259 = arith.mulf %258, %257 : vector<16x32xf32>
    %260 = vector.extract_strided_slice %181 {offsets = [1, 1], sizes = [1, 1], strides = [1, 1]} : vector<3x3xf32> to vector<1x1xf32>
    %261 = vector.extract_strided_slice %5 {offsets = [1, 0, 0], sizes = [1, 16, 32], strides = [1, 1, 1]} : vector<3x16x32xf32> to vector<1x16x32xf32>
    %262 = vector.shape_cast %261 : vector<1x16x32xf32> to vector<16x32xf32>
    %263 = vector.broadcast %260 : vector<1x1xf32> to vector<16x32xf32>
    %264 = arith.mulf %263, %262 : vector<16x32xf32>
    %265 = arith.addf %259, %264 : vector<16x32xf32>
    %266 = vector.extract_strided_slice %181 {offsets = [2, 1], sizes = [1, 1], strides = [1, 1]} : vector<3x3xf32> to vector<1x1xf32>
    %267 = vector.extract_strided_slice %5 {offsets = [2, 0, 0], sizes = [1, 16, 32], strides = [1, 1, 1]} : vector<3x16x32xf32> to vector<1x16x32xf32>
    %268 = vector.shape_cast %267 : vector<1x16x32xf32> to vector<16x32xf32>
    %269 = vector.broadcast %266 : vector<1x1xf32> to vector<16x32xf32>
    %270 = arith.mulf %269, %268 : vector<16x32xf32>
    %271 = arith.addf %265, %270 : vector<16x32xf32>
    %272 = vector.shape_cast %271 : vector<16x32xf32> to vector<1x16x32xf32>
    %273 = vector.extract_strided_slice %181 {offsets = [0, 2], sizes = [1, 1], strides = [1, 1]} : vector<3x3xf32> to vector<1x1xf32>
    %274 = vector.extract_strided_slice %5 {offsets = [0, 0, 0], sizes = [1, 16, 32], strides = [1, 1, 1]} : vector<3x16x32xf32> to vector<1x16x32xf32>
    %275 = vector.shape_cast %274 : vector<1x16x32xf32> to vector<16x32xf32>
    %276 = vector.broadcast %273 : vector<1x1xf32> to vector<16x32xf32>
    %277 = arith.mulf %276, %275 : vector<16x32xf32>
    %278 = vector.extract_strided_slice %181 {offsets = [1, 2], sizes = [1, 1], strides = [1, 1]} : vector<3x3xf32> to vector<1x1xf32>
    %279 = vector.extract_strided_slice %5 {offsets = [1, 0, 0], sizes = [1, 16, 32], strides = [1, 1, 1]} : vector<3x16x32xf32> to vector<1x16x32xf32>
    %280 = vector.shape_cast %279 : vector<1x16x32xf32> to vector<16x32xf32>
    %281 = vector.broadcast %278 : vector<1x1xf32> to vector<16x32xf32>
    %282 = arith.mulf %281, %280 : vector<16x32xf32>
    %283 = arith.addf %277, %282 : vector<16x32xf32>
    %284 = vector.extract_strided_slice %181 {offsets = [2, 2], sizes = [1, 1], strides = [1, 1]} : vector<3x3xf32> to vector<1x1xf32>
    %285 = vector.extract_strided_slice %5 {offsets = [2, 0, 0], sizes = [1, 16, 32], strides = [1, 1, 1]} : vector<3x16x32xf32> to vector<1x16x32xf32>
    %286 = vector.shape_cast %285 : vector<1x16x32xf32> to vector<16x32xf32>
    %287 = vector.broadcast %284 : vector<1x1xf32> to vector<16x32xf32>
    %288 = arith.mulf %287, %286 : vector<16x32xf32>
    %289 = arith.addf %283, %288 : vector<16x32xf32>
    %290 = vector.shape_cast %289 : vector<16x32xf32> to vector<1x16x32xf32>
    %291 = tpu.concatenate %254, %272, %290 in 0 : vector<1x16x32xf32>, vector<1x16x32xf32>, vector<1x16x32xf32> -> vector<3x16x32xf32>
    %cst_67 = arith.constant 1.33333337 : f32
    %292 = vector.broadcast %cst_67 : f32 to vector<3x16x32xf32>
    %293 = arith.mulf %1, %292 : vector<3x16x32xf32>
    %294 = arith.truncf %293 : vector<3x16x32xf32> to vector<3x16x32xbf16>
    %295 = arith.truncf %236 : vector<3x16x32xf32> to vector<3x16x32xbf16>
    "tpu.trace_start"() <{level = 10 : i32, message = "mqc,mkc->mqk"}> : () -> ()
    %cst_68 = arith.constant dense<0.000000e+00> : vector<3x16x16xf32>
    %296 = tpu.matmul %294, %295, %cst_68 {dimension_numbers = #tpu.dot_dimension_numbers<[2], [2], [1], [1], [0, 0, 0, 1, 1, 1], [0], [0]>} : vector<3x16x32xbf16>, vector<3x16x32xbf16>, vector<3x16x16xf32> -> vector<3x16x16xf32>
    "tpu.trace_stop"() : () -> ()
    %cst_69 = arith.constant dense<0xFF800000> : vector<3x16xf32>
    %297 = vector.multi_reduction <maximumf>, %296, %cst_69 [2] : vector<3x16x16xf32> to vector<3x16xf32>
    %298 = vector.shape_cast %297 : vector<3x16xf32> to vector<3x16x1xf32>
    %299 = vector.broadcast %298 : vector<3x16x1xf32> to vector<3x16x16xf32>
    %300 = arith.subf %296, %299 : vector<3x16x16xf32>
    %301 = math.exp %300 : vector<3x16x16xf32>
    %cst_70 = arith.constant dense<0.000000e+00> : vector<3x16xf32>
    %302 = vector.multi_reduction <add>, %301, %cst_70 [2] : vector<3x16x16xf32> to vector<3x16xf32>
    %303 = vector.shape_cast %302 : vector<3x16xf32> to vector<3x16x1xf32>
    %304 = tpu.reciprocal %303 {approx = true} : vector<3x16x1xf32> -> vector<3x16x1xf32>
    %305 = vector.broadcast %304 : vector<3x16x1xf32> to vector<3x16x16xf32>
    %306 = arith.mulf %301, %305 : vector<3x16x16xf32>
    %307 = arith.truncf %306 : vector<3x16x16xf32> to vector<3x16x16xbf16>
    %308 = arith.truncf %291 : vector<3x16x32xf32> to vector<3x16x32xbf16>
    "tpu.trace_start"() <{level = 10 : i32, message = "mqk,mkc->mqc"}> : () -> ()
    %cst_71 = arith.constant dense<0.000000e+00> : vector<3x16x32xf32>
    %309 = tpu.matmul %307, %308, %cst_71 {dimension_numbers = #tpu.dot_dimension_numbers<[2], [1], [1], [2], [0, 0, 0, 1, 1, 2], [0], [0]>} : vector<3x16x16xbf16>, vector<3x16x32xbf16>, vector<3x16x32xf32> -> vector<3x16x32xf32>
    "tpu.trace_stop"() : () -> ()
    %310 = vector.extract_strided_slice %181 {offsets = [0, 0], sizes = [1, 1], strides = [1, 1]} : vector<3x3xf32> to vector<1x1xf32>
    %311 = vector.extract_strided_slice %309 {offsets = [0, 0, 0], sizes = [1, 16, 32], strides = [1, 1, 1]} : vector<3x16x32xf32> to vector<1x16x32xf32>
    %312 = vector.shape_cast %311 : vector<1x16x32xf32> to vector<16x32xf32>
    %313 = vector.broadcast %310 : vector<1x1xf32> to vector<16x32xf32>
    %314 = arith.mulf %313, %312 : vector<16x32xf32>
    %315 = vector.extract_strided_slice %181 {offsets = [0, 1], sizes = [1, 1], strides = [1, 1]} : vector<3x3xf32> to vector<1x1xf32>
    %316 = vector.extract_strided_slice %309 {offsets = [1, 0, 0], sizes = [1, 16, 32], strides = [1, 1, 1]} : vector<3x16x32xf32> to vector<1x16x32xf32>
    %317 = vector.shape_cast %316 : vector<1x16x32xf32> to vector<16x32xf32>
    %318 = vector.broadcast %315 : vector<1x1xf32> to vector<16x32xf32>
    %319 = arith.mulf %318, %317 : vector<16x32xf32>
    %320 = arith.addf %314, %319 : vector<16x32xf32>
    %321 = vector.extract_strided_slice %181 {offsets = [0, 2], sizes = [1, 1], strides = [1, 1]} : vector<3x3xf32> to vector<1x1xf32>
    %322 = vector.extract_strided_slice %309 {offsets = [2, 0, 0], sizes = [1, 16, 32], strides = [1, 1, 1]} : vector<3x16x32xf32> to vector<1x16x32xf32>
    %323 = vector.shape_cast %322 : vector<1x16x32xf32> to vector<16x32xf32>
    %324 = vector.broadcast %321 : vector<1x1xf32> to vector<16x32xf32>
    %325 = arith.mulf %324, %323 : vector<16x32xf32>
    %326 = arith.addf %320, %325 : vector<16x32xf32>
    %327 = vector.shape_cast %326 : vector<16x32xf32> to vector<1x16x32xf32>
    %328 = vector.extract_strided_slice %181 {offsets = [1, 0], sizes = [1, 1], strides = [1, 1]} : vector<3x3xf32> to vector<1x1xf32>
    %329 = vector.extract_strided_slice %309 {offsets = [0, 0, 0], sizes = [1, 16, 32], strides = [1, 1, 1]} : vector<3x16x32xf32> to vector<1x16x32xf32>
    %330 = vector.shape_cast %329 : vector<1x16x32xf32> to vector<16x32xf32>
    %331 = vector.broadcast %328 : vector<1x1xf32> to vector<16x32xf32>
    %332 = arith.mulf %331, %330 : vector<16x32xf32>
    %333 = vector.extract_strided_slice %181 {offsets = [1, 1], sizes = [1, 1], strides = [1, 1]} : vector<3x3xf32> to vector<1x1xf32>
    %334 = vector.extract_strided_slice %309 {offsets = [1, 0, 0], sizes = [1, 16, 32], strides = [1, 1, 1]} : vector<3x16x32xf32> to vector<1x16x32xf32>
    %335 = vector.shape_cast %334 : vector<1x16x32xf32> to vector<16x32xf32>
    %336 = vector.broadcast %333 : vector<1x1xf32> to vector<16x32xf32>
    %337 = arith.mulf %336, %335 : vector<16x32xf32>
    %338 = arith.addf %332, %337 : vector<16x32xf32>
    %339 = vector.extract_strided_slice %181 {offsets = [1, 2], sizes = [1, 1], strides = [1, 1]} : vector<3x3xf32> to vector<1x1xf32>
    %340 = vector.extract_strided_slice %309 {offsets = [2, 0, 0], sizes = [1, 16, 32], strides = [1, 1, 1]} : vector<3x16x32xf32> to vector<1x16x32xf32>
    %341 = vector.shape_cast %340 : vector<1x16x32xf32> to vector<16x32xf32>
    %342 = vector.broadcast %339 : vector<1x1xf32> to vector<16x32xf32>
    %343 = arith.mulf %342, %341 : vector<16x32xf32>
    %344 = arith.addf %338, %343 : vector<16x32xf32>
    %345 = vector.shape_cast %344 : vector<16x32xf32> to vector<1x16x32xf32>
    %346 = vector.extract_strided_slice %181 {offsets = [2, 0], sizes = [1, 1], strides = [1, 1]} : vector<3x3xf32> to vector<1x1xf32>
    %347 = vector.extract_strided_slice %309 {offsets = [0, 0, 0], sizes = [1, 16, 32], strides = [1, 1, 1]} : vector<3x16x32xf32> to vector<1x16x32xf32>
    %348 = vector.shape_cast %347 : vector<1x16x32xf32> to vector<16x32xf32>
    %349 = vector.broadcast %346 : vector<1x1xf32> to vector<16x32xf32>
    %350 = arith.mulf %349, %348 : vector<16x32xf32>
    %351 = vector.extract_strided_slice %181 {offsets = [2, 1], sizes = [1, 1], strides = [1, 1]} : vector<3x3xf32> to vector<1x1xf32>
    %352 = vector.extract_strided_slice %309 {offsets = [1, 0, 0], sizes = [1, 16, 32], strides = [1, 1, 1]} : vector<3x16x32xf32> to vector<1x16x32xf32>
    %353 = vector.shape_cast %352 : vector<1x16x32xf32> to vector<16x32xf32>
    %354 = vector.broadcast %351 : vector<1x1xf32> to vector<16x32xf32>
    %355 = arith.mulf %354, %353 : vector<16x32xf32>
    %356 = arith.addf %350, %355 : vector<16x32xf32>
    %357 = vector.extract_strided_slice %181 {offsets = [2, 2], sizes = [1, 1], strides = [1, 1]} : vector<3x3xf32> to vector<1x1xf32>
    %358 = vector.extract_strided_slice %309 {offsets = [2, 0, 0], sizes = [1, 16, 32], strides = [1, 1, 1]} : vector<3x16x32xf32> to vector<1x16x32xf32>
    %359 = vector.shape_cast %358 : vector<1x16x32xf32> to vector<16x32xf32>
    %360 = vector.broadcast %357 : vector<1x1xf32> to vector<16x32xf32>
    %361 = arith.mulf %360, %359 : vector<16x32xf32>
    %362 = arith.addf %356, %361 : vector<16x32xf32>
    %363 = vector.shape_cast %362 : vector<16x32xf32> to vector<1x16x32xf32>
    %364 = tpu.concatenate %327, %345, %363 in 0 : vector<1x16x32xf32>, vector<1x16x32xf32>, vector<1x16x32xf32> -> vector<3x16x32xf32>
    %c0_72 = arith.constant 0 : index
    %c0_73 = arith.constant 0 : index
    %c0_74 = arith.constant 0 : index
    %c0_75 = arith.constant 0 : index
    %365 = vector.load %arg7[%c0_72, %c0_73, %c0_74, %c0_75] : memref<2x3x16x32xf32, #tpu.memory_space<vmem>>, vector<1x3x16x32xf32>
    %366 = vector.shape_cast %365 : vector<1x3x16x32xf32> to vector<3x16x32xf32>
    %367 = vector.shape_cast %364 : vector<3x16x32xf32> to vector<1x3x16x32xf32>
    tpu.vector_store %arg7[%c0_72, %c0_73, %c0_74, %c0_75], %367 {strides = array<i32>} : memref<2x3x16x32xf32, #tpu.memory_space<vmem>>, vector<1x3x16x32xf32>,
    %c0_76 = arith.constant 0 : index
    %c0_77 = arith.constant 0 : index
    %c0_78 = arith.constant 0 : index
    %c0_79 = arith.constant 0 : index
    %368 = vector.load %arg8[%c0_76, %c0_77, %c0_78, %c0_79] : memref<2x3x16x32xf32, #tpu.memory_space<vmem>>, vector<1x3x16x32xf32>
    %369 = vector.shape_cast %368 : vector<1x3x16x32xf32> to vector<3x16x32xf32>
    %370 = vector.shape_cast %236 : vector<3x16x32xf32> to vector<1x3x16x32xf32>
    tpu.vector_store %arg8[%c0_76, %c0_77, %c0_78, %c0_79], %370 {strides = array<i32>} : memref<2x3x16x32xf32, #tpu.memory_space<vmem>>, vector<1x3x16x32xf32>,
    %c1 = arith.constant 1 : index
    %c0_80 = arith.constant 0 : index
    %c0_81 = arith.constant 0 : index
    %c0_82 = arith.constant 0 : index
    %371 = vector.load %arg1[%c1, %c0_80, %c0_81, %c0_82] : memref<2x3x16x32xf32, #tpu.memory_space<vmem>>, vector<1x3x16x32xf32>
    %372 = vector.shape_cast %371 : vector<1x3x16x32xf32> to vector<3x16x32xf32>
    %c1_83 = arith.constant 1 : index
    %c0_84 = arith.constant 0 : index
    %c0_85 = arith.constant 0 : index
    %c0_86 = arith.constant 0 : index
    %373 = vector.load %arg2[%c1_83, %c0_84, %c0_85, %c0_86] : memref<2x3x16x32xf32, #tpu.memory_space<vmem>>, vector<1x3x16x32xf32>
    %374 = vector.shape_cast %373 : vector<1x3x16x32xf32> to vector<3x16x32xf32>
    %c1_87 = arith.constant 1 : index
    %c0_88 = arith.constant 0 : index
    %c0_89 = arith.constant 0 : index
    %c0_90 = arith.constant 0 : index
    %375 = vector.load %arg3[%c1_87, %c0_88, %c0_89, %c0_90] : memref<2x3x16x32xf32, #tpu.memory_space<vmem>>, vector<1x3x16x32xf32>
    %376 = vector.shape_cast %375 : vector<1x3x16x32xf32> to vector<3x16x32xf32>
    %c1_91 = arith.constant 1 : index
    %c0_92 = arith.constant 0 : index
    %c0_93 = arith.constant 0 : index
    %377 = vector.load %arg4[%c1_91, %c0_92, %c0_93] : memref<2x3x16xf32, #tpu.memory_space<vmem>>, vector<1x3x16xf32>
    %378 = vector.shape_cast %377 : vector<1x3x16xf32> to vector<3x16xf32>
    %c1_94 = arith.constant 1 : index
    %c0_95 = arith.constant 0 : index
    %c0_96 = arith.constant 0 : index
    %379 = vector.load %arg5[%c1_94, %c0_95, %c0_96] : memref<2x3x16xf32, #tpu.memory_space<vmem>>, vector<1x3x16xf32>
    %380 = vector.shape_cast %379 : vector<1x3x16xf32> to vector<3x16xf32>
    %c1_97 = arith.constant 1 : index
    %c0_98 = arith.constant 0 : index
    %c0_99 = arith.constant 0 : index
    %381 = vector.load %arg6[%c1_97, %c0_98, %c0_99] : memref<2x3x3xf32, #tpu.memory_space<vmem>>, vector<1x3x3xf32>
    %382 = vector.shape_cast %381 : vector<1x3x3xf32> to vector<3x3xf32>
    %cst_100 = arith.constant dense<0.000000e+00> : vector<3x3xf32>
    %383 = tpu.matmul %378, %380, %cst_100 {dimension_numbers = #tpu.dot_dimension_numbers<[1], [1], [0], [0], [0, 0, 1, 0], [], []>} : vector<3x16xf32>, vector<3x16xf32>, vector<3x3xf32> -> vector<3x3xf32>
    %cst_101 = arith.constant 0.176776692 : f32
    %384 = vector.broadcast %cst_101 : f32 to vector<3x3xf32>
    %385 = arith.mulf %383, %384 : vector<3x3xf32>
    %cst_102 = arith.constant 0.000000e+00 : f32
    %386 = vector.broadcast %cst_102 : f32 to vector<3x3xf32>
    %387 = arith.maximumf %385, %386 : vector<3x3xf32>
    %cst_103 = arith.constant 9.99999997E-7 : f32
    %388 = vector.broadcast %cst_103 : f32 to vector<3x3xf32>
    %389 = arith.addf %382, %388 : vector<3x3xf32>
    %390 = math.log %389 : vector<3x3xf32>
    %cst_104 = arith.constant 0.000000e+00 : f32
    %391 = vector.broadcast %cst_104 : f32 to vector<3x3xf32>
    %392 = arith.subf %391, %390 : vector<3x3xf32>
    %cst_105 = arith.constant 9.99999997E-7 : f32
    %393 = vector.broadcast %cst_105 : f32 to vector<3x3xf32>
    %394 = arith.addf %392, %393 : vector<3x3xf32>
    %395 = math.log %394 : vector<3x3xf32>
    %cst_106 = arith.constant 0.000000e+00 : f32
    %396 = vector.broadcast %cst_106 : f32 to vector<3x3xf32>
    %397 = arith.subf %396, %395 : vector<3x3xf32>
    %398 = math.log %387 : vector<3x3xf32>
    %399 = arith.addf %398, %397 : vector<3x3xf32>
    %cst_107 = arith.constant 1.33333337 : f32
    %400 = vector.broadcast %cst_107 : f32 to vector<3x3xf32>
    %401 = arith.mulf %399, %400 : vector<3x3xf32>
    %cst_108 = arith.constant dense<0xFF800000> : vector<3xf32>
    %402 = vector.multi_reduction <maximumf>, %401, %cst_108 [1] : vector<3x3xf32> to vector<3xf32>
    %403 = vector.shape_cast %402 : vector<3xf32> to vector<3x1xf32>
    %cst_109 = arith.constant 0xFF800000 : f32
    %404 = vector.broadcast %cst_109 : f32 to vector<3x1xf32>
    %405 = arith.cmpf ogt, %403, %404 : vector<3x1xf32>
    %cst_110 = arith.constant 0.000000e+00 : f32
    %406 = vector.broadcast %cst_110 : f32 to vector<3x1xf32>
    %407 = arith.select %405, %403, %406 : vector<3x1xi1>, vector<3x1xf32>
    %408 = vector.broadcast %407 : vector<3x1xf32> to vector<3x3xf32>
    %409 = arith.subf %401, %408 : vector<3x3xf32>
    %410 = math.exp %409 : vector<3x3xf32>
    %cst_111 = arith.constant dense<0.000000e+00> : vector<3xf32>
    %411 = vector.multi_reduction <add>, %410, %cst_111 [1] : vector<3x3xf32> to vector<3xf32>
    %412 = vector.shape_cast %411 : vector<3xf32> to vector<3x1xf32>
    %413 = math.log %412 : vector<3x1xf32>
    %414 = arith.addf %407, %413 : vector<3x1xf32>
    %415 = vector.broadcast %414 : vector<3x1xf32> to vector<3x3xf32>
    %416 = arith.subf %401, %415 : vector<3x3xf32>
    %cst_112 = arith.constant dense<0xFF800000> : vector<3xf32>
    %417 = vector.multi_reduction <maximumf>, %416, %cst_112 [0] : vector<3x3xf32> to vector<3xf32>
    %418 = vector.shape_cast %417 : vector<3xf32> to vector<1x3xf32>
    %cst_113 = arith.constant 0xFF800000 : f32
    %419 = vector.broadcast %cst_113 : f32 to vector<1x3xf32>
    %420 = arith.cmpf ogt, %418, %419 : vector<1x3xf32>
    %cst_114 = arith.constant 0.000000e+00 : f32
    %421 = vector.broadcast %cst_114 : f32 to vector<1x3xf32>
    %422 = arith.select %420, %418, %421 : vector<1x3xi1>, vector<1x3xf32>
    %423 = vector.broadcast %422 : vector<1x3xf32> to vector<3x3xf32>
    %424 = arith.subf %416, %423 : vector<3x3xf32>
    %425 = math.exp %424 : vector<3x3xf32>
    %cst_115 = arith.constant dense<0.000000e+00> : vector<3xf32>
    %426 = vector.multi_reduction <add>, %425, %cst_115 [0] : vector<3x3xf32> to vector<3xf32>
    %427 = vector.shape_cast %426 : vector<3xf32> to vector<1x3xf32>
    %428 = math.log %427 : vector<1x3xf32>
    %429 = arith.addf %422, %428 : vector<1x3xf32>
    %430 = vector.broadcast %429 : vector<1x3xf32> to vector<3x3xf32>
    %431 = arith.subf %416, %430 : vector<3x3xf32>
    %cst_116 = arith.constant dense<0xFF800000> : vector<3xf32>
    %432 = vector.multi_reduction <maximumf>, %431, %cst_116 [1] : vector<3x3xf32> to vector<3xf32>
    %433 = vector.shape_cast %432 : vector<3xf32> to vector<3x1xf32>
    %cst_117 = arith.constant 0xFF800000 : f32
    %434 = vector.broadcast %cst_117 : f32 to vector<3x1xf32>
    %435 = arith.cmpf ogt, %433, %434 : vector<3x1xf32>
    %cst_118 = arith.constant 0.000000e+00 : f32
    %436 = vector.broadcast %cst_118 : f32 to vector<3x1xf32>
    %437 = arith.select %435, %433, %436 : vector<3x1xi1>, vector<3x1xf32>
    %438 = vector.broadcast %437 : vector<3x1xf32> to vector<3x3xf32>
    %439 = arith.subf %431, %438 : vector<3x3xf32>
    %440 = math.exp %439 : vector<3x3xf32>
    %cst_119 = arith.constant dense<0.000000e+00> : vector<3xf32>
    %441 = vector.multi_reduction <add>, %440, %cst_119 [1] : vector<3x3xf32> to vector<3xf32>
    %442 = vector.shape_cast %441 : vector<3xf32> to vector<3x1xf32>
    %443 = math.log %442 : vector<3x1xf32>
    %444 = arith.addf %437, %443 : vector<3x1xf32>
    %445 = vector.broadcast %444 : vector<3x1xf32> to vector<3x3xf32>
    %446 = arith.subf %431, %445 : vector<3x3xf32>
    %cst_120 = arith.constant dense<0xFF800000> : vector<3xf32>
    %447 = vector.multi_reduction <maximumf>, %446, %cst_120 [0] : vector<3x3xf32> to vector<3xf32>
    %448 = vector.shape_cast %447 : vector<3xf32> to vector<1x3xf32>
    %cst_121 = arith.constant 0xFF800000 : f32
    %449 = vector.broadcast %cst_121 : f32 to vector<1x3xf32>
    %450 = arith.cmpf ogt, %448, %449 : vector<1x3xf32>
    %cst_122 = arith.constant 0.000000e+00 : f32
    %451 = vector.broadcast %cst_122 : f32 to vector<1x3xf32>
    %452 = arith.select %450, %448, %451 : vector<1x3xi1>, vector<1x3xf32>
    %453 = vector.broadcast %452 : vector<1x3xf32> to vector<3x3xf32>
    %454 = arith.subf %446, %453 : vector<3x3xf32>
    %455 = math.exp %454 : vector<3x3xf32>
    %cst_123 = arith.constant dense<0.000000e+00> : vector<3xf32>
    %456 = vector.multi_reduction <add>, %455, %cst_123 [0] : vector<3x3xf32> to vector<3xf32>
    %457 = vector.shape_cast %456 : vector<3xf32> to vector<1x3xf32>
    %458 = math.log %457 : vector<1x3xf32>
    %459 = arith.addf %452, %458 : vector<1x3xf32>
    %460 = vector.broadcast %459 : vector<1x3xf32> to vector<3x3xf32>
    %461 = arith.subf %446, %460 : vector<3x3xf32>
    %cst_124 = arith.constant dense<0xFF800000> : vector<3xf32>
    %462 = vector.multi_reduction <maximumf>, %461, %cst_124 [1] : vector<3x3xf32> to vector<3xf32>
    %463 = vector.shape_cast %462 : vector<3xf32> to vector<3x1xf32>
    %cst_125 = arith.constant 0xFF800000 : f32
    %464 = vector.broadcast %cst_125 : f32 to vector<3x1xf32>
    %465 = arith.cmpf ogt, %463, %464 : vector<3x1xf32>
    %cst_126 = arith.constant 0.000000e+00 : f32
    %466 = vector.broadcast %cst_126 : f32 to vector<3x1xf32>
    %467 = arith.select %465, %463, %466 : vector<3x1xi1>, vector<3x1xf32>
    %468 = vector.broadcast %467 : vector<3x1xf32> to vector<3x3xf32>
    %469 = arith.subf %461, %468 : vector<3x3xf32>
    %470 = math.exp %469 : vector<3x3xf32>
    %cst_127 = arith.constant dense<0.000000e+00> : vector<3xf32>
    %471 = vector.multi_reduction <add>, %470, %cst_127 [1] : vector<3x3xf32> to vector<3xf32>
    %472 = vector.shape_cast %471 : vector<3xf32> to vector<3x1xf32>
    %473 = math.log %472 : vector<3x1xf32>
    %474 = arith.addf %467, %473 : vector<3x1xf32>
    %475 = vector.broadcast %474 : vector<3x1xf32> to vector<3x3xf32>
    %476 = arith.subf %461, %475 : vector<3x3xf32>
    %cst_128 = arith.constant dense<0xFF800000> : vector<3xf32>
    %477 = vector.multi_reduction <maximumf>, %476, %cst_128 [0] : vector<3x3xf32> to vector<3xf32>
    %478 = vector.shape_cast %477 : vector<3xf32> to vector<1x3xf32>
    %cst_129 = arith.constant 0xFF800000 : f32
    %479 = vector.broadcast %cst_129 : f32 to vector<1x3xf32>
    %480 = arith.cmpf ogt, %478, %479 : vector<1x3xf32>
    %cst_130 = arith.constant 0.000000e+00 : f32
    %481 = vector.broadcast %cst_130 : f32 to vector<1x3xf32>
    %482 = arith.select %480, %478, %481 : vector<1x3xi1>, vector<1x3xf32>
    %483 = vector.broadcast %482 : vector<1x3xf32> to vector<3x3xf32>
    %484 = arith.subf %476, %483 : vector<3x3xf32>
    %485 = math.exp %484 : vector<3x3xf32>
    %cst_131 = arith.constant dense<0.000000e+00> : vector<3xf32>
    %486 = vector.multi_reduction <add>, %485, %cst_131 [0] : vector<3x3xf32> to vector<3xf32>
    %487 = vector.shape_cast %486 : vector<3xf32> to vector<1x3xf32>
    %488 = math.log %487 : vector<1x3xf32>
    %489 = arith.addf %482, %488 : vector<1x3xf32>
    %490 = vector.broadcast %489 : vector<1x3xf32> to vector<3x3xf32>
    %491 = arith.subf %476, %490 : vector<3x3xf32>
    %cst_132 = arith.constant dense<0xFF800000> : vector<3xf32>
    %492 = vector.multi_reduction <maximumf>, %491, %cst_132 [1] : vector<3x3xf32> to vector<3xf32>
    %493 = vector.shape_cast %492 : vector<3xf32> to vector<3x1xf32>
    %cst_133 = arith.constant 0xFF800000 : f32
    %494 = vector.broadcast %cst_133 : f32 to vector<3x1xf32>
    %495 = arith.cmpf ogt, %493, %494 : vector<3x1xf32>
    %cst_134 = arith.constant 0.000000e+00 : f32
    %496 = vector.broadcast %cst_134 : f32 to vector<3x1xf32>
    %497 = arith.select %495, %493, %496 : vector<3x1xi1>, vector<3x1xf32>
    %498 = vector.broadcast %497 : vector<3x1xf32> to vector<3x3xf32>
    %499 = arith.subf %491, %498 : vector<3x3xf32>
    %500 = math.exp %499 : vector<3x3xf32>
    %cst_135 = arith.constant dense<0.000000e+00> : vector<3xf32>
    %501 = vector.multi_reduction <add>, %500, %cst_135 [1] : vector<3x3xf32> to vector<3xf32>
    %502 = vector.shape_cast %501 : vector<3xf32> to vector<3x1xf32>
    %503 = math.log %502 : vector<3x1xf32>
    %504 = arith.addf %497, %503 : vector<3x1xf32>
    %505 = vector.broadcast %504 : vector<3x1xf32> to vector<3x3xf32>
    %506 = arith.subf %491, %505 : vector<3x3xf32>
    %cst_136 = arith.constant dense<0xFF800000> : vector<3xf32>
    %507 = vector.multi_reduction <maximumf>, %506, %cst_136 [0] : vector<3x3xf32> to vector<3xf32>
    %508 = vector.shape_cast %507 : vector<3xf32> to vector<1x3xf32>
    %cst_137 = arith.constant 0xFF800000 : f32
    %509 = vector.broadcast %cst_137 : f32 to vector<1x3xf32>
    %510 = arith.cmpf ogt, %508, %509 : vector<1x3xf32>
    %cst_138 = arith.constant 0.000000e+00 : f32
    %511 = vector.broadcast %cst_138 : f32 to vector<1x3xf32>
    %512 = arith.select %510, %508, %511 : vector<1x3xi1>, vector<1x3xf32>
    %513 = vector.broadcast %512 : vector<1x3xf32> to vector<3x3xf32>
    %514 = arith.subf %506, %513 : vector<3x3xf32>
    %515 = math.exp %514 : vector<3x3xf32>
    %cst_139 = arith.constant dense<0.000000e+00> : vector<3xf32>
    %516 = vector.multi_reduction <add>, %515, %cst_139 [0] : vector<3x3xf32> to vector<3xf32>
    %517 = vector.shape_cast %516 : vector<3xf32> to vector<1x3xf32>
    %518 = math.log %517 : vector<1x3xf32>
    %519 = arith.addf %512, %518 : vector<1x3xf32>
    %520 = vector.broadcast %519 : vector<1x3xf32> to vector<3x3xf32>
    %521 = arith.subf %506, %520 : vector<3x3xf32>
    %cst_140 = arith.constant dense<0xFF800000> : vector<3xf32>
    %522 = vector.multi_reduction <maximumf>, %521, %cst_140 [1] : vector<3x3xf32> to vector<3xf32>
    %523 = vector.shape_cast %522 : vector<3xf32> to vector<3x1xf32>
    %cst_141 = arith.constant 0xFF800000 : f32
    %524 = vector.broadcast %cst_141 : f32 to vector<3x1xf32>
    %525 = arith.cmpf ogt, %523, %524 : vector<3x1xf32>
    %cst_142 = arith.constant 0.000000e+00 : f32
    %526 = vector.broadcast %cst_142 : f32 to vector<3x1xf32>
    %527 = arith.select %525, %523, %526 : vector<3x1xi1>, vector<3x1xf32>
    %528 = vector.broadcast %527 : vector<3x1xf32> to vector<3x3xf32>
    %529 = arith.subf %521, %528 : vector<3x3xf32>
    %530 = math.exp %529 : vector<3x3xf32>
    %cst_143 = arith.constant dense<0.000000e+00> : vector<3xf32>
    %531 = vector.multi_reduction <add>, %530, %cst_143 [1] : vector<3x3xf32> to vector<3xf32>
    %532 = vector.shape_cast %531 : vector<3xf32> to vector<3x1xf32>
    %533 = math.log %532 : vector<3x1xf32>
    %534 = arith.addf %527, %533 : vector<3x1xf32>
    %535 = vector.broadcast %534 : vector<3x1xf32> to vector<3x3xf32>
    %536 = arith.subf %521, %535 : vector<3x3xf32>
    %cst_144 = arith.constant dense<0xFF800000> : vector<3xf32>
    %537 = vector.multi_reduction <maximumf>, %536, %cst_144 [0] : vector<3x3xf32> to vector<3xf32>
    %538 = vector.shape_cast %537 : vector<3xf32> to vector<1x3xf32>
    %cst_145 = arith.constant 0xFF800000 : f32
    %539 = vector.broadcast %cst_145 : f32 to vector<1x3xf32>
    %540 = arith.cmpf ogt, %538, %539 : vector<1x3xf32>
    %cst_146 = arith.constant 0.000000e+00 : f32
    %541 = vector.broadcast %cst_146 : f32 to vector<1x3xf32>
    %542 = arith.select %540, %538, %541 : vector<1x3xi1>, vector<1x3xf32>
    %543 = vector.broadcast %542 : vector<1x3xf32> to vector<3x3xf32>
    %544 = arith.subf %536, %543 : vector<3x3xf32>
    %545 = math.exp %544 : vector<3x3xf32>
    %cst_147 = arith.constant dense<0.000000e+00> : vector<3xf32>
    %546 = vector.multi_reduction <add>, %545, %cst_147 [0] : vector<3x3xf32> to vector<3xf32>
    %547 = vector.shape_cast %546 : vector<3xf32> to vector<1x3xf32>
    %548 = math.log %547 : vector<1x3xf32>
    %549 = arith.addf %542, %548 : vector<1x3xf32>
    %550 = vector.broadcast %549 : vector<1x3xf32> to vector<3x3xf32>
    %551 = arith.subf %536, %550 : vector<3x3xf32>
    %552 = math.exp %551 : vector<3x3xf32>
    %553 = vector.extract_strided_slice %552 {offsets = [0, 0], sizes = [1, 1], strides = [1, 1]} : vector<3x3xf32> to vector<1x1xf32>
    %554 = vector.extract_strided_slice %374 {offsets = [0, 0, 0], sizes = [1, 16, 32], strides = [1, 1, 1]} : vector<3x16x32xf32> to vector<1x16x32xf32>
    %555 = vector.shape_cast %554 : vector<1x16x32xf32> to vector<16x32xf32>
    %556 = vector.broadcast %553 : vector<1x1xf32> to vector<16x32xf32>
    %557 = arith.mulf %556, %555 : vector<16x32xf32>
    %558 = vector.extract_strided_slice %552 {offsets = [1, 0], sizes = [1, 1], strides = [1, 1]} : vector<3x3xf32> to vector<1x1xf32>
    %559 = vector.extract_strided_slice %374 {offsets = [1, 0, 0], sizes = [1, 16, 32], strides = [1, 1, 1]} : vector<3x16x32xf32> to vector<1x16x32xf32>
    %560 = vector.shape_cast %559 : vector<1x16x32xf32> to vector<16x32xf32>
    %561 = vector.broadcast %558 : vector<1x1xf32> to vector<16x32xf32>
    %562 = arith.mulf %561, %560 : vector<16x32xf32>
    %563 = arith.addf %557, %562 : vector<16x32xf32>
    %564 = vector.extract_strided_slice %552 {offsets = [2, 0], sizes = [1, 1], strides = [1, 1]} : vector<3x3xf32> to vector<1x1xf32>
    %565 = vector.extract_strided_slice %374 {offsets = [2, 0, 0], sizes = [1, 16, 32], strides = [1, 1, 1]} : vector<3x16x32xf32> to vector<1x16x32xf32>
    %566 = vector.shape_cast %565 : vector<1x16x32xf32> to vector<16x32xf32>
    %567 = vector.broadcast %564 : vector<1x1xf32> to vector<16x32xf32>
    %568 = arith.mulf %567, %566 : vector<16x32xf32>
    %569 = arith.addf %563, %568 : vector<16x32xf32>
    %570 = vector.shape_cast %569 : vector<16x32xf32> to vector<1x16x32xf32>
    %571 = vector.extract_strided_slice %552 {offsets = [0, 1], sizes = [1, 1], strides = [1, 1]} : vector<3x3xf32> to vector<1x1xf32>
    %572 = vector.extract_strided_slice %374 {offsets = [0, 0, 0], sizes = [1, 16, 32], strides = [1, 1, 1]} : vector<3x16x32xf32> to vector<1x16x32xf32>
    %573 = vector.shape_cast %572 : vector<1x16x32xf32> to vector<16x32xf32>
    %574 = vector.broadcast %571 : vector<1x1xf32> to vector<16x32xf32>
    %575 = arith.mulf %574, %573 : vector<16x32xf32>
    %576 = vector.extract_strided_slice %552 {offsets = [1, 1], sizes = [1, 1], strides = [1, 1]} : vector<3x3xf32> to vector<1x1xf32>
    %577 = vector.extract_strided_slice %374 {offsets = [1, 0, 0], sizes = [1, 16, 32], strides = [1, 1, 1]} : vector<3x16x32xf32> to vector<1x16x32xf32>
    %578 = vector.shape_cast %577 : vector<1x16x32xf32> to vector<16x32xf32>
    %579 = vector.broadcast %576 : vector<1x1xf32> to vector<16x32xf32>
    %580 = arith.mulf %579, %578 : vector<16x32xf32>
    %581 = arith.addf %575, %580 : vector<16x32xf32>
    %582 = vector.extract_strided_slice %552 {offsets = [2, 1], sizes = [1, 1], strides = [1, 1]} : vector<3x3xf32> to vector<1x1xf32>
    %583 = vector.extract_strided_slice %374 {offsets = [2, 0, 0], sizes = [1, 16, 32], strides = [1, 1, 1]} : vector<3x16x32xf32> to vector<1x16x32xf32>
    %584 = vector.shape_cast %583 : vector<1x16x32xf32> to vector<16x32xf32>
    %585 = vector.broadcast %582 : vector<1x1xf32> to vector<16x32xf32>
    %586 = arith.mulf %585, %584 : vector<16x32xf32>
    %587 = arith.addf %581, %586 : vector<16x32xf32>
    %588 = vector.shape_cast %587 : vector<16x32xf32> to vector<1x16x32xf32>
    %589 = vector.extract_strided_slice %552 {offsets = [0, 2], sizes = [1, 1], strides = [1, 1]} : vector<3x3xf32> to vector<1x1xf32>
    %590 = vector.extract_strided_slice %374 {offsets = [0, 0, 0], sizes = [1, 16, 32], strides = [1, 1, 1]} : vector<3x16x32xf32> to vector<1x16x32xf32>
    %591 = vector.shape_cast %590 : vector<1x16x32xf32> to vector<16x32xf32>
    %592 = vector.broadcast %589 : vector<1x1xf32> to vector<16x32xf32>
    %593 = arith.mulf %592, %591 : vector<16x32xf32>
    %594 = vector.extract_strided_slice %552 {offsets = [1, 2], sizes = [1, 1], strides = [1, 1]} : vector<3x3xf32> to vector<1x1xf32>
    %595 = vector.extract_strided_slice %374 {offsets = [1, 0, 0], sizes = [1, 16, 32], strides = [1, 1, 1]} : vector<3x16x32xf32> to vector<1x16x32xf32>
    %596 = vector.shape_cast %595 : vector<1x16x32xf32> to vector<16x32xf32>
    %597 = vector.broadcast %594 : vector<1x1xf32> to vector<16x32xf32>
    %598 = arith.mulf %597, %596 : vector<16x32xf32>
    %599 = arith.addf %593, %598 : vector<16x32xf32>
    %600 = vector.extract_strided_slice %552 {offsets = [2, 2], sizes = [1, 1], strides = [1, 1]} : vector<3x3xf32> to vector<1x1xf32>
    %601 = vector.extract_strided_slice %374 {offsets = [2, 0, 0], sizes = [1, 16, 32], strides = [1, 1, 1]} : vector<3x16x32xf32> to vector<1x16x32xf32>
    %602 = vector.shape_cast %601 : vector<1x16x32xf32> to vector<16x32xf32>
    %603 = vector.broadcast %600 : vector<1x1xf32> to vector<16x32xf32>
    %604 = arith.mulf %603, %602 : vector<16x32xf32>
    %605 = arith.addf %599, %604 : vector<16x32xf32>
    %606 = vector.shape_cast %605 : vector<16x32xf32> to vector<1x16x32xf32>
    %607 = tpu.concatenate %570, %588, %606 in 0 : vector<1x16x32xf32>, vector<1x16x32xf32>, vector<1x16x32xf32> -> vector<3x16x32xf32>
    %608 = vector.extract_strided_slice %552 {offsets = [0, 0], sizes = [1, 1], strides = [1, 1]} : vector<3x3xf32> to vector<1x1xf32>
    %609 = vector.extract_strided_slice %376 {offsets = [0, 0, 0], sizes = [1, 16, 32], strides = [1, 1, 1]} : vector<3x16x32xf32> to vector<1x16x32xf32>
    %610 = vector.shape_cast %609 : vector<1x16x32xf32> to vector<16x32xf32>
    %611 = vector.broadcast %608 : vector<1x1xf32> to vector<16x32xf32>
    %612 = arith.mulf %611, %610 : vector<16x32xf32>
    %613 = vector.extract_strided_slice %552 {offsets = [1, 0], sizes = [1, 1], strides = [1, 1]} : vector<3x3xf32> to vector<1x1xf32>
    %614 = vector.extract_strided_slice %376 {offsets = [1, 0, 0], sizes = [1, 16, 32], strides = [1, 1, 1]} : vector<3x16x32xf32> to vector<1x16x32xf32>
    %615 = vector.shape_cast %614 : vector<1x16x32xf32> to vector<16x32xf32>
    %616 = vector.broadcast %613 : vector<1x1xf32> to vector<16x32xf32>
    %617 = arith.mulf %616, %615 : vector<16x32xf32>
    %618 = arith.addf %612, %617 : vector<16x32xf32>
    %619 = vector.extract_strided_slice %552 {offsets = [2, 0], sizes = [1, 1], strides = [1, 1]} : vector<3x3xf32> to vector<1x1xf32>
    %620 = vector.extract_strided_slice %376 {offsets = [2, 0, 0], sizes = [1, 16, 32], strides = [1, 1, 1]} : vector<3x16x32xf32> to vector<1x16x32xf32>
    %621 = vector.shape_cast %620 : vector<1x16x32xf32> to vector<16x32xf32>
    %622 = vector.broadcast %619 : vector<1x1xf32> to vector<16x32xf32>
    %623 = arith.mulf %622, %621 : vector<16x32xf32>
    %624 = arith.addf %618, %623 : vector<16x32xf32>
    %625 = vector.shape_cast %624 : vector<16x32xf32> to vector<1x16x32xf32>
    %626 = vector.extract_strided_slice %552 {offsets = [0, 1], sizes = [1, 1], strides = [1, 1]} : vector<3x3xf32> to vector<1x1xf32>
    %627 = vector.extract_strided_slice %376 {offsets = [0, 0, 0], sizes = [1, 16, 32], strides = [1, 1, 1]} : vector<3x16x32xf32> to vector<1x16x32xf32>
    %628 = vector.shape_cast %627 : vector<1x16x32xf32> to vector<16x32xf32>
    %629 = vector.broadcast %626 : vector<1x1xf32> to vector<16x32xf32>
    %630 = arith.mulf %629, %628 : vector<16x32xf32>
    %631 = vector.extract_strided_slice %552 {offsets = [1, 1], sizes = [1, 1], strides = [1, 1]} : vector<3x3xf32> to vector<1x1xf32>
    %632 = vector.extract_strided_slice %376 {offsets = [1, 0, 0], sizes = [1, 16, 32], strides = [1, 1, 1]} : vector<3x16x32xf32> to vector<1x16x32xf32>
    %633 = vector.shape_cast %632 : vector<1x16x32xf32> to vector<16x32xf32>
    %634 = vector.broadcast %631 : vector<1x1xf32> to vector<16x32xf32>
    %635 = arith.mulf %634, %633 : vector<16x32xf32>
    %636 = arith.addf %630, %635 : vector<16x32xf32>
    %637 = vector.extract_strided_slice %552 {offsets = [2, 1], sizes = [1, 1], strides = [1, 1]} : vector<3x3xf32> to vector<1x1xf32>
    %638 = vector.extract_strided_slice %376 {offsets = [2, 0, 0], sizes = [1, 16, 32], strides = [1, 1, 1]} : vector<3x16x32xf32> to vector<1x16x32xf32>
    %639 = vector.shape_cast %638 : vector<1x16x32xf32> to vector<16x32xf32>
    %640 = vector.broadcast %637 : vector<1x1xf32> to vector<16x32xf32>
    %641 = arith.mulf %640, %639 : vector<16x32xf32>
    %642 = arith.addf %636, %641 : vector<16x32xf32>
    %643 = vector.shape_cast %642 : vector<16x32xf32> to vector<1x16x32xf32>
    %644 = vector.extract_strided_slice %552 {offsets = [0, 2], sizes = [1, 1], strides = [1, 1]} : vector<3x3xf32> to vector<1x1xf32>
    %645 = vector.extract_strided_slice %376 {offsets = [0, 0, 0], sizes = [1, 16, 32], strides = [1, 1, 1]} : vector<3x16x32xf32> to vector<1x16x32xf32>
    %646 = vector.shape_cast %645 : vector<1x16x32xf32> to vector<16x32xf32>
    %647 = vector.broadcast %644 : vector<1x1xf32> to vector<16x32xf32>
    %648 = arith.mulf %647, %646 : vector<16x32xf32>
    %649 = vector.extract_strided_slice %552 {offsets = [1, 2], sizes = [1, 1], strides = [1, 1]} : vector<3x3xf32> to vector<1x1xf32>
    %650 = vector.extract_strided_slice %376 {offsets = [1, 0, 0], sizes = [1, 16, 32], strides = [1, 1, 1]} : vector<3x16x32xf32> to vector<1x16x32xf32>
    %651 = vector.shape_cast %650 : vector<1x16x32xf32> to vector<16x32xf32>
    %652 = vector.broadcast %649 : vector<1x1xf32> to vector<16x32xf32>
    %653 = arith.mulf %652, %651 : vector<16x32xf32>
    %654 = arith.addf %648, %653 : vector<16x32xf32>
    %655 = vector.extract_strided_slice %552 {offsets = [2, 2], sizes = [1, 1], strides = [1, 1]} : vector<3x3xf32> to vector<1x1xf32>
    %656 = vector.extract_strided_slice %376 {offsets = [2, 0, 0], sizes = [1, 16, 32], strides = [1, 1, 1]} : vector<3x16x32xf32> to vector<1x16x32xf32>
    %657 = vector.shape_cast %656 : vector<1x16x32xf32> to vector<16x32xf32>
    %658 = vector.broadcast %655 : vector<1x1xf32> to vector<16x32xf32>
    %659 = arith.mulf %658, %657 : vector<16x32xf32>
    %660 = arith.addf %654, %659 : vector<16x32xf32>
    %661 = vector.shape_cast %660 : vector<16x32xf32> to vector<1x16x32xf32>
    %662 = tpu.concatenate %625, %643, %661 in 0 : vector<1x16x32xf32>, vector<1x16x32xf32>, vector<1x16x32xf32> -> vector<3x16x32xf32>
    %cst_148 = arith.constant 1.33333337 : f32
    %663 = vector.broadcast %cst_148 : f32 to vector<3x16x32xf32>
    %664 = arith.mulf %372, %663 : vector<3x16x32xf32>
    %665 = arith.truncf %664 : vector<3x16x32xf32> to vector<3x16x32xbf16>
    %666 = arith.truncf %607 : vector<3x16x32xf32> to vector<3x16x32xbf16>
    "tpu.trace_start"() <{level = 10 : i32, message = "mqc,mkc->mqk"}> : () -> ()
    %cst_149 = arith.constant dense<0.000000e+00> : vector<3x16x16xf32>
    %667 = tpu.matmul %665, %666, %cst_149 {dimension_numbers = #tpu.dot_dimension_numbers<[2], [2], [1], [1], [0, 0, 0, 1, 1, 1], [0], [0]>} : vector<3x16x32xbf16>, vector<3x16x32xbf16>, vector<3x16x16xf32> -> vector<3x16x16xf32>
    "tpu.trace_stop"() : () -> ()
    %cst_150 = arith.constant dense<0xFF800000> : vector<3x16xf32>
    %668 = vector.multi_reduction <maximumf>, %667, %cst_150 [2] : vector<3x16x16xf32> to vector<3x16xf32>
    %669 = vector.shape_cast %668 : vector<3x16xf32> to vector<3x16x1xf32>
    %670 = vector.broadcast %669 : vector<3x16x1xf32> to vector<3x16x16xf32>
    %671 = arith.subf %667, %670 : vector<3x16x16xf32>
    %672 = math.exp %671 : vector<3x16x16xf32>
    %cst_151 = arith.constant dense<0.000000e+00> : vector<3x16xf32>
    %673 = vector.multi_reduction <add>, %672, %cst_151 [2] : vector<3x16x16xf32> to vector<3x16xf32>
    %674 = vector.shape_cast %673 : vector<3x16xf32> to vector<3x16x1xf32>
    %675 = tpu.reciprocal %674 {approx = true} : vector<3x16x1xf32> -> vector<3x16x1xf32>
    %676 = vector.broadcast %675 : vector<3x16x1xf32> to vector<3x16x16xf32>
    %677 = arith.mulf %672, %676 : vector<3x16x16xf32>
    %678 = arith.truncf %677 : vector<3x16x16xf32> to vector<3x16x16xbf16>
    %679 = arith.truncf %662 : vector<3x16x32xf32> to vector<3x16x32xbf16>
    "tpu.trace_start"() <{level = 10 : i32, message = "mqk,mkc->mqc"}> : () -> ()
    %cst_152 = arith.constant dense<0.000000e+00> : vector<3x16x32xf32>
    %680 = tpu.matmul %678, %679, %cst_152 {dimension_numbers = #tpu.dot_dimension_numbers<[2], [1], [1], [2], [0, 0, 0, 1, 1, 2], [0], [0]>} : vector<3x16x16xbf16>, vector<3x16x32xbf16>, vector<3x16x32xf32> -> vector<3x16x32xf32>
    "tpu.trace_stop"() : () -> ()
    %681 = vector.extract_strided_slice %552 {offsets = [0, 0], sizes = [1, 1], strides = [1, 1]} : vector<3x3xf32> to vector<1x1xf32>
    %682 = vector.extract_strided_slice %680 {offsets = [0, 0, 0], sizes = [1, 16, 32], strides = [1, 1, 1]} : vector<3x16x32xf32> to vector<1x16x32xf32>
    %683 = vector.shape_cast %682 : vector<1x16x32xf32> to vector<16x32xf32>
    %684 = vector.broadcast %681 : vector<1x1xf32> to vector<16x32xf32>
    %685 = arith.mulf %684, %683 : vector<16x32xf32>
    %686 = vector.extract_strided_slice %552 {offsets = [0, 1], sizes = [1, 1], strides = [1, 1]} : vector<3x3xf32> to vector<1x1xf32>
    %687 = vector.extract_strided_slice %680 {offsets = [1, 0, 0], sizes = [1, 16, 32], strides = [1, 1, 1]} : vector<3x16x32xf32> to vector<1x16x32xf32>
    %688 = vector.shape_cast %687 : vector<1x16x32xf32> to vector<16x32xf32>
    %689 = vector.broadcast %686 : vector<1x1xf32> to vector<16x32xf32>
    %690 = arith.mulf %689, %688 : vector<16x32xf32>
    %691 = arith.addf %685, %690 : vector<16x32xf32>
    %692 = vector.extract_strided_slice %552 {offsets = [0, 2], sizes = [1, 1], strides = [1, 1]} : vector<3x3xf32> to vector<1x1xf32>
    %693 = vector.extract_strided_slice %680 {offsets = [2, 0, 0], sizes = [1, 16, 32], strides = [1, 1, 1]} : vector<3x16x32xf32> to vector<1x16x32xf32>
    %694 = vector.shape_cast %693 : vector<1x16x32xf32> to vector<16x32xf32>
    %695 = vector.broadcast %692 : vector<1x1xf32> to vector<16x32xf32>
    %696 = arith.mulf %695, %694 : vector<16x32xf32>
    %697 = arith.addf %691, %696 : vector<16x32xf32>
    %698 = vector.shape_cast %697 : vector<16x32xf32> to vector<1x16x32xf32>
    %699 = vector.extract_strided_slice %552 {offsets = [1, 0], sizes = [1, 1], strides = [1, 1]} : vector<3x3xf32> to vector<1x1xf32>
    %700 = vector.extract_strided_slice %680 {offsets = [0, 0, 0], sizes = [1, 16, 32], strides = [1, 1, 1]} : vector<3x16x32xf32> to vector<1x16x32xf32>
    %701 = vector.shape_cast %700 : vector<1x16x32xf32> to vector<16x32xf32>
    %702 = vector.broadcast %699 : vector<1x1xf32> to vector<16x32xf32>
    %703 = arith.mulf %702, %701 : vector<16x32xf32>
    %704 = vector.extract_strided_slice %552 {offsets = [1, 1], sizes = [1, 1], strides = [1, 1]} : vector<3x3xf32> to vector<1x1xf32>
    %705 = vector.extract_strided_slice %680 {offsets = [1, 0, 0], sizes = [1, 16, 32], strides = [1, 1, 1]} : vector<3x16x32xf32> to vector<1x16x32xf32>
    %706 = vector.shape_cast %705 : vector<1x16x32xf32> to vector<16x32xf32>
    %707 = vector.broadcast %704 : vector<1x1xf32> to vector<16x32xf32>
    %708 = arith.mulf %707, %706 : vector<16x32xf32>
    %709 = arith.addf %703, %708 : vector<16x32xf32>
    %710 = vector.extract_strided_slice %552 {offsets = [1, 2], sizes = [1, 1], strides = [1, 1]} : vector<3x3xf32> to vector<1x1xf32>
    %711 = vector.extract_strided_slice %680 {offsets = [2, 0, 0], sizes = [1, 16, 32], strides = [1, 1, 1]} : vector<3x16x32xf32> to vector<1x16x32xf32>
    %712 = vector.shape_cast %711 : vector<1x16x32xf32> to vector<16x32xf32>
    %713 = vector.broadcast %710 : vector<1x1xf32> to vector<16x32xf32>
    %714 = arith.mulf %713, %712 : vector<16x32xf32>
    %715 = arith.addf %709, %714 : vector<16x32xf32>
    %716 = vector.shape_cast %715 : vector<16x32xf32> to vector<1x16x32xf32>
    %717 = vector.extract_strided_slice %552 {offsets = [2, 0], sizes = [1, 1], strides = [1, 1]} : vector<3x3xf32> to vector<1x1xf32>
    %718 = vector.extract_strided_slice %680 {offsets = [0, 0, 0], sizes = [1, 16, 32], strides = [1, 1, 1]} : vector<3x16x32xf32> to vector<1x16x32xf32>
    %719 = vector.shape_cast %718 : vector<1x16x32xf32> to vector<16x32xf32>
    %720 = vector.broadcast %717 : vector<1x1xf32> to vector<16x32xf32>
    %721 = arith.mulf %720, %719 : vector<16x32xf32>
    %722 = vector.extract_strided_slice %552 {offsets = [2, 1], sizes = [1, 1], strides = [1, 1]} : vector<3x3xf32> to vector<1x1xf32>
    %723 = vector.extract_strided_slice %680 {offsets = [1, 0, 0], sizes = [1, 16, 32], strides = [1, 1, 1]} : vector<3x16x32xf32> to vector<1x16x32xf32>
    %724 = vector.shape_cast %723 : vector<1x16x32xf32> to vector<16x32xf32>
    %725 = vector.broadcast %722 : vector<1x1xf32> to vector<16x32xf32>
    %726 = arith.mulf %725, %724 : vector<16x32xf32>
    %727 = arith.addf %721, %726 : vector<16x32xf32>
    %728 = vector.extract_strided_slice %552 {offsets = [2, 2], sizes = [1, 1], strides = [1, 1]} : vector<3x3xf32> to vector<1x1xf32>
    %729 = vector.extract_strided_slice %680 {offsets = [2, 0, 0], sizes = [1, 16, 32], strides = [1, 1, 1]} : vector<3x16x32xf32> to vector<1x16x32xf32>
    %730 = vector.shape_cast %729 : vector<1x16x32xf32> to vector<16x32xf32>
    %731 = vector.broadcast %728 : vector<1x1xf32> to vector<16x32xf32>
    %732 = arith.mulf %731, %730 : vector<16x32xf32>
    %733 = arith.addf %727, %732 : vector<16x32xf32>
    %734 = vector.shape_cast %733 : vector<16x32xf32> to vector<1x16x32xf32>
    %735 = tpu.concatenate %698, %716, %734 in 0 : vector<1x16x32xf32>, vector<1x16x32xf32>, vector<1x16x32xf32> -> vector<3x16x32xf32>
    %c1_153 = arith.constant 1 : index
    %c0_154 = arith.constant 0 : index
    %c0_155 = arith.constant 0 : index
    %c0_156 = arith.constant 0 : index
    %736 = vector.load %arg7[%c1_153, %c0_154, %c0_155, %c0_156] : memref<2x3x16x32xf32, #tpu.memory_space<vmem>>, vector<1x3x16x32xf32>
    %737 = vector.shape_cast %736 : vector<1x3x16x32xf32> to vector<3x16x32xf32>
    %738 = vector.shape_cast %735 : vector<3x16x32xf32> to vector<1x3x16x32xf32>
    tpu.vector_store %arg7[%c1_153, %c0_154, %c0_155, %c0_156], %738 {strides = array<i32>} : memref<2x3x16x32xf32, #tpu.memory_space<vmem>>, vector<1x3x16x32xf32>,
    %c1_157 = arith.constant 1 : index
    %c0_158 = arith.constant 0 : index
    %c0_159 = arith.constant 0 : index
    %c0_160 = arith.constant 0 : index
    %739 = vector.load %arg8[%c1_157, %c0_158, %c0_159, %c0_160] : memref<2x3x16x32xf32, #tpu.memory_space<vmem>>, vector<1x3x16x32xf32>
    %740 = vector.shape_cast %739 : vector<1x3x16x32xf32> to vector<3x16x32xf32>
    %741 = vector.shape_cast %607 : vector<3x16x32xf32> to vector<1x3x16x32xf32>
    tpu.vector_store %arg8[%c1_157, %c0_158, %c0_159, %c0_160], %741 {strides = array<i32>} : memref<2x3x16x32xf32, #tpu.memory_space<vmem>>, vector<1x3x16x32xf32>,
    return
  }
  func.func @transform_0(%arg0: i32) -> (i32, i32, i32, i32) {
    %c0_i32 = arith.constant 0 : i32
    %c0_i32_0 = arith.constant 0 : i32
    %c0_i32_1 = arith.constant 0 : i32
    %c0_i32_2 = arith.constant 0 : i32
    return %arg0, %c0_i32, %c0_i32_0, %c0_i32_1 : i32, i32, i32, i32
  }
  func.func @transform_1(%arg0: i32) -> (i32, i32, i32, i32) {
    %c0_i32 = arith.constant 0 : i32
    %c0_i32_0 = arith.constant 0 : i32
    %c0_i32_1 = arith.constant 0 : i32
    %c0_i32_2 = arith.constant 0 : i32
    return %arg0, %c0_i32, %c0_i32_0, %c0_i32_1 : i32, i32, i32, i32
  }
  func.func @transform_2(%arg0: i32) -> (i32, i32, i32, i32) {
    %c0_i32 = arith.constant 0 : i32
    %c0_i32_0 = arith.constant 0 : i32
    %c0_i32_1 = arith.constant 0 : i32
    %c0_i32_2 = arith.constant 0 : i32
    return %arg0, %c0_i32, %c0_i32_0, %c0_i32_1 : i32, i32, i32, i32
  }
  func.func @transform_3(%arg0: i32) -> (i32, i32, i32) {
    %c0_i32 = arith.constant 0 : i32
    %c0_i32_0 = arith.constant 0 : i32
    %c0_i32_1 = arith.constant 0 : i32
    return %arg0, %c0_i32, %c0_i32_0 : i32, i32, i32
  }
  func.func @transform_4(%arg0: i32) -> (i32, i32, i32) {
    %c0_i32 = arith.constant 0 : i32
    %c0_i32_0 = arith.constant 0 : i32
    %c0_i32_1 = arith.constant 0 : i32
    return %arg0, %c0_i32, %c0_i32_0 : i32, i32, i32
  }
  func.func @transform_5(%arg0: i32) -> (i32, i32, i32) {
    %c0_i32 = arith.constant 0 : i32
    %c0_i32_0 = arith.constant 0 : i32
    %c0_i32_1 = arith.constant 0 : i32
    return %arg0, %c0_i32, %c0_i32_0 : i32, i32, i32
  }
  func.func @transform_6(%arg0: i32) -> (i32, i32, i32, i32) {
    %c0_i32 = arith.constant 0 : i32
    %c0_i32_0 = arith.constant 0 : i32
    %c0_i32_1 = arith.constant 0 : i32
    %c0_i32_2 = arith.constant 0 : i32
    return %arg0, %c0_i32, %c0_i32_0, %c0_i32_1 : i32, i32, i32, i32
  }
  func.func @transform_7(%arg0: i32) -> (i32, i32, i32, i32) {
    %c0_i32 = arith.constant 0 : i32
    %c0_i32_0 = arith.constant 0 : i32
    %c0_i32_1 = arith.constant 0 : i32
    %c0_i32_2 = arith.constant 0 : i32
    return %arg0, %c0_i32, %c0_i32_0, %c0_i32_1 : i32, i32, i32, i32
  }
}

</mosaic_0001>

<llo_original>
// kernel: tpu_custom_call.1
$region0: #{tpu_custom_call.1}
  #allocation0 [shape = 'u32[]', space=smem, size = 0x4, offset = 0x4, fixed_abs, tag = 'smem constant byte address 0x4 - core index']
  #allocation1 [shape = 'u32[144,128]{1,0:T(1,128)}', space=vmem, size = 0x12000, scoped, tag = 'internal scratch']
  %s0 = inlined_call_operand.hbm [shape: f32[4,3,16,32], index: 0, kind: input, shape index: {}]
  %s1 = inlined_call_operand.hbm [shape: f32[4,3,16,32], index: 1, kind: input, shape index: {}]
  %s2 = inlined_call_operand.hbm [shape: f32[4,3,16,32], index: 2, kind: input, shape index: {}]
  %s3 = inlined_call_operand.vmem [shape: f32[4,3,16], index: 3, kind: input, shape index: {}]
  %s4 = inlined_call_operand.vmem [shape: f32[4,3,16], index: 4, kind: input, shape index: {}]
  %s5 = inlined_call_operand.vmem [shape: f32[4,3,3], index: 5, kind: input, shape index: {}]
  %s6 = inlined_call_operand.hbm [shape: f32[4,3,16,32], index: 6, kind: output, shape index: {0}]
  %s7 = inlined_call_operand.hbm [shape: f32[4,3,16,32], index: 7, kind: output, shape index: {1}]
  %8 = xla_tuple %s6, %s7
  %s9 = sld [smem:[#allocation0]]
  $region77: #{tpu_custom_call.1} parent=0
    _
  %s11 = ssub.s32 1, %s9
  %s12 = scalar_select 0, %s11, %s9
  $region1: #{tpu_custom_call.1} parent=0
    #allocation2 [shape = 'u8[98304]{0}', space=vmem, size = 0x18000, scoped, tag = 'input window, operand 0']
    #allocation3 [shape = 's32[2]{0}', space=sflag, size = 0x8, scoped, tag = 'scoped memory for tpu_custom_call.1']
    #allocation4 [shape = 's32[2]{0}', space=sflag, size = 0x8, scoped, tag = 'scoped memory for tpu_custom_call.1']
    #allocation5 [shape = 'u8[98304]{0}', space=vmem, size = 0x18000, scoped, tag = 'input window, operand 1']
    #allocation6 [shape = 's32[2]{0}', space=sflag, size = 0x8, scoped, tag = 'scoped memory for tpu_custom_call.1']
    #allocation7 [shape = 'u8[98304]{0}', space=vmem, size = 0x18000, scoped, tag = 'input window, operand 2']
    #allocation8 [shape = 'u8[98304]{0}', space=vmem, size = 0x18000, scoped, tag = 'output window, operand 0']
    #allocation9 [shape = 'u8[98304]{0}', space=vmem, size = 0x18000, scoped, tag = 'output window, operand 1']
    #allocation10 [shape = 's32[2]{0}', space=sflag, size = 0x8, scoped, tag = 'scoped memory for tpu_custom_call.1']
    %13 = vsyncpa [#allocation3], 0
    %s14 = scalar_lea.sflag [#allocation3], 1
    %15 = vsyncpa %s14, 0
    %16 = vsyncpa [#allocation6], 0
    %s17 = scalar_lea.sflag [#allocation6], 1
    %18 = vsyncpa %s17, 0
    %19 = vsyncpa [#allocation4], 0
    %s20 = scalar_lea.sflag [#allocation4], 1
    %21 = vsyncpa %s20, 0
    %22 = vsyncpa [#allocation10], 0
    %s23 = scalar_lea.sflag [#allocation10], 1
    %24 = vsyncpa %s23, 0
    loop: start=0, step=1, limit=4
    $region2: #{tpu_custom_call.1} parent=1 // loop_pre_header
      _
    $region3: #{tpu_custom_call.1} parent=1 // loop_header
      %s26 = sphi 0, %s30
      %p27 = scmp.ge.s32.totalorder %s26, 4
      %s36 = sphi 0, %s38
      %s39 = sphi 0, %s36
      %s40 = sphi 0, %s39
      %s56 = sphi 0, %s40
      %s62 = sphi 0, %s64
      %s65 = sphi 0, %s62
      %s66 = sphi 0, %s65
      %s82 = sphi 0, %s66
      %s88 = sphi 0, %s90
      %s91 = sphi 0, %s88
      %s92 = sphi 0, %s91
      %s108 = sphi 0, %s92
      %s114 = sphi 0, %s116
      %s117 = sphi 0, %s114
      %s118 = sphi 0, %s117
      %s134 = sphi 0, %s118
      %s140 = sphi 0, %s142
      %s143 = sphi 0, %s140
      %s144 = sphi 0, %s143
      %s160 = sphi 0, %s144
      %s166 = sphi 0, %s168
      %s169 = sphi 0, %s166
      %s170 = sphi 0, %s169
      %s186 = sphi 0, %s170
      %s192 = sphi 0, %s194
      %s195 = sphi 0, %s192
      %s196 = sphi 0, %s195
      %s212 = sphi 0, %s196
      %s218 = sphi 0, %s220
      %s221 = sphi 0, %s218
      %s222 = sphi 0, %s221
      %s238 = sphi 0, %s222
    $region4: #{tpu_custom_call.1} parent=1 // loop_header_branch
      %29 = sbr.rel (%p27) target = $region8
    $region5: #{tpu_custom_call.1} parent=1 // loop_body
      %s31 = ssub.s32 %s26, 1
      %s32 = ssub.s32 %s26, 2
      %s33 = sadd.s32 %s26, 1
      %s34 = ssub.s32 %s26, %s33
      %p35 = scmp.eq.s32.totalorder %s34, 0
      %s37 = sadd.s32 %s36, 1
      %s38 = scalar_select %p35, %s36, %s37
      %p41 = pneg %p35
      %p42 = scmp.eq.s32.totalorder %s26, 1
      %p43 = por %p41, %p42
      %p44 = scmp.ne.s32.totalorder %s36, %s39
      %p45 = scmp.eq.s32.totalorder %s26, 0
      %p46 = por %p44, %p45
      %p47 = scmp.ne.s32.totalorder %s36, %s39
      %p48 = scmp.eq.s32.totalorder %s31, 1
      %p49 = por %p47, %p48
      %p50 = scmp.ne.s32.totalorder %s39, %s40
      %p51 = scmp.eq.s32.totalorder %s31, 0
      %p52 = por %p50, %p51
      %p53 = scmp.ne.s32.totalorder %s39, %s40
      %p54 = scmp.eq.s32.totalorder %s32, 1
      %p55 = por %p53, %p54
      %p57 = scmp.ne.s32.totalorder %s40, %s56
      %p58 = scmp.eq.s32.totalorder %s32, 0
      %p59 = por %p57, %p58
      %s60 = ssub.s32 %s26, %s33
      %p61 = scmp.eq.s32.totalorder %s60, 0
      %s63 = sadd.s32 %s62, 1
      %s64 = scalar_select %p61, %s62, %s63
      %p67 = pneg %p61
      %p68 = scmp.eq.s32.totalorder %s26, 1
      %p69 = por %p67, %p68
      %p70 = scmp.ne.s32.totalorder %s62, %s65
      %p71 = scmp.eq.s32.totalorder %s26, 0
      %p72 = por %p70, %p71
      %p73 = scmp.ne.s32.totalorder %s62, %s65
      %p74 = scmp.eq.s32.totalorder %s31, 1
      %p75 = por %p73, %p74
      %p76 = scmp.ne.s32.totalorder %s65, %s66
      %p77 = scmp.eq.s32.totalorder %s31, 0
      %p78 = por %p76, %p77
      %p79 = scmp.ne.s32.totalorder %s65, %s66
      %p80 = scmp.eq.s32.totalorder %s32, 1
      %p81 = por %p79, %p80
      %p83 = scmp.ne.s32.totalorder %s66, %s82
      %p84 = scmp.eq.s32.totalorder %s32, 0
      %p85 = por %p83, %p84
      %s86 = ssub.s32 %s26, %s33
      %p87 = scmp.eq.s32.totalorder %s86, 0
      %s89 = sadd.s32 %s88, 1
      %s90 = scalar_select %p87, %s88, %s89
      %p93 = pneg %p87
      %p94 = scmp.eq.s32.totalorder %s26, 1
      %p95 = por %p93, %p94
      %p96 = scmp.ne.s32.totalorder %s88, %s91
      %p97 = scmp.eq.s32.totalorder %s26, 0
      %p98 = por %p96, %p97
      %p99 = scmp.ne.s32.totalorder %s88, %s91
      %p100 = scmp.eq.s32.totalorder %s31, 1
      %p101 = por %p99, %p100
      %p102 = scmp.ne.s32.totalorder %s91, %s92
      %p103 = scmp.eq.s32.totalorder %s31, 0
      %p104 = por %p102, %p103
      %p105 = scmp.ne.s32.totalorder %s91, %s92
      %p106 = scmp.eq.s32.totalorder %s32, 1
      %p107 = por %p105, %p106
      %p109 = scmp.ne.s32.totalorder %s92, %s108
      %p110 = scmp.eq.s32.totalorder %s32, 0
      %p111 = por %p109, %p110
      %s112 = ssub.s32 %s26, %s33
      %p113 = scmp.eq.s32.totalorder %s112, 0
      %s115 = sadd.s32 %s114, 1
      %s116 = scalar_select %p113, %s114, %s115
      %p119 = pneg %p113
      %p120 = scmp.eq.s32.totalorder %s26, 1
      %p121 = por %p119, %p120
      %p122 = scmp.ne.s32.totalorder %s114, %s117
      %p123 = scmp.eq.s32.totalorder %s26, 0
      %p124 = por %p122, %p123
      %p125 = scmp.ne.s32.totalorder %s114, %s117
      %p126 = scmp.eq.s32.totalorder %s31, 1
      %p127 = por %p125, %p126
      %p128 = scmp.ne.s32.totalorder %s117, %s118
      %p129 = scmp.eq.s32.totalorder %s31, 0
      %p130 = por %p128, %p129
      %p131 = scmp.ne.s32.totalorder %s117, %s118
      %p132 = scmp.eq.s32.totalorder %s32, 1
      %p133 = por %p131, %p132
      %p135 = scmp.ne.s32.totalorder %s118, %s134
      %p136 = scmp.eq.s32.totalorder %s32, 0
      %p137 = por %p135, %p136
      %s138 = ssub.s32 %s26, %s33
      %p139 = scmp.eq.s32.totalorder %s138, 0
      %s141 = sadd.s32 %s140, 1
      %s142 = scalar_select %p139, %s140, %s141
      %p145 = pneg %p139
      %p146 = scmp.eq.s32.totalorder %s26, 1
      %p147 = por %p145, %p146
      %p148 = scmp.ne.s32.totalorder %s140, %s143
      %p149 = scmp.eq.s32.totalorder %s26, 0
      %p150 = por %p148, %p149
      %p151 = scmp.ne.s32.totalorder %s140, %s143
      %p152 = scmp.eq.s32.totalorder %s31, 1
      %p153 = por %p151, %p152
      %p154 = scmp.ne.s32.totalorder %s143, %s144
      %p155 = scmp.eq.s32.totalorder %s31, 0
      %p156 = por %p154, %p155
      %p157 = scmp.ne.s32.totalorder %s143, %s144
      %p158 = scmp.eq.s32.totalorder %s32, 1
      %p159 = por %p157, %p158
      %p161 = scmp.ne.s32.totalorder %s144, %s160
      %p162 = scmp.eq.s32.totalorder %s32, 0
      %p163 = por %p161, %p162
      %s164 = ssub.s32 %s26, %s33
      %p165 = scmp.eq.s32.totalorder %s164, 0
      %s167 = sadd.s32 %s166, 1
      %s168 = scalar_select %p165, %s166, %s167
      %p171 = pneg %p165
      %p172 = scmp.eq.s32.totalorder %s26, 1
      %p173 = por %p171, %p172
      %p174 = scmp.ne.s32.totalorder %s166, %s169
      %p175 = scmp.eq.s32.totalorder %s26, 0
      %p176 = por %p174, %p175
      %p177 = scmp.ne.s32.totalorder %s166, %s169
      %p178 = scmp.eq.s32.totalorder %s31, 1
      %p179 = por %p177, %p178
      %p180 = scmp.ne.s32.totalorder %s169, %s170
      %p181 = scmp.eq.s32.totalorder %s31, 0
      %p182 = por %p180, %p181
      %p183 = scmp.ne.s32.totalorder %s169, %s170
      %p184 = scmp.eq.s32.totalorder %s32, 1
      %p185 = por %p183, %p184
      %p187 = scmp.ne.s32.totalorder %s170, %s186
      %p188 = scmp.eq.s32.totalorder %s32, 0
      %p189 = por %p187, %p188
      %s190 = ssub.s32 %s26, %s33
      %p191 = scmp.eq.s32.totalorder %s190, 0
      %s193 = sadd.s32 %s192, 1
      %s194 = scalar_select %p191, %s192, %s193
      %p197 = pneg %p191
      %p198 = scmp.eq.s32.totalorder %s26, 1
      %p199 = por %p197, %p198
      %p200 = scmp.ne.s32.totalorder %s192, %s195
      %p201 = scmp.eq.s32.totalorder %s26, 0
      %p202 = por %p200, %p201
      %p203 = scmp.ne.s32.totalorder %s192, %s195
      %p204 = scmp.eq.s32.totalorder %s31, 1
      %p205 = por %p203, %p204
      %p206 = scmp.ne.s32.totalorder %s195, %s196
      %p207 = scmp.eq.s32.totalorder %s31, 0
      %p208 = por %p206, %p207
      %p209 = scmp.ne.s32.totalorder %s195, %s196
      %p210 = scmp.eq.s32.totalorder %s32, 1
      %p211 = por %p209, %p210
      %p213 = scmp.ne.s32.totalorder %s196, %s212
      %p214 = scmp.eq.s32.totalorder %s32, 0
      %p215 = por %p213, %p214
      %s216 = ssub.s32 %s26, %s33
      %p217 = scmp.eq.s32.totalorder %s216, 0
      %s219 = sadd.s32 %s218, 1
      %s220 = scalar_select %p217, %s218, %s219
      %p223 = pneg %p217
      %p224 = scmp.eq.s32.totalorder %s26, 1
      %p225 = por %p223, %p224
      %p226 = scmp.ne.s32.totalorder %s218, %s221
      %p227 = scmp.eq.s32.totalorder %s26, 0
      %p228 = por %p226, %p227
      %p229 = scmp.ne.s32.totalorder %s218, %s221
      %p230 = scmp.eq.s32.totalorder %s31, 1
      %p231 = por %p229, %p230
      %p232 = scmp.ne.s32.totalorder %s221, %s222
      %p233 = scmp.eq.s32.totalorder %s31, 0
      %p234 = por %p232, %p233
      %p235 = scmp.ne.s32.totalorder %s221, %s222
      %p236 = scmp.eq.s32.totalorder %s32, 1
      %p237 = por %p235, %p236
      %p239 = scmp.ne.s32.totalorder %s222, %s238
      %p240 = scmp.eq.s32.totalorder %s32, 0
      %p241 = por %p239, %p240
      %p242 = scmp.le.s32.totalorder 1, %s26
      %p243 = scmp.lt.s32.totalorder %s26, 3
      %p244 = pnand %p242, %p243
      %p245 = pneg %p244
      // Predicated region
      $region9: #{tpu_custom_call.1} parent=5 // pred_check
        _
      $region10: #{tpu_custom_call.1} parent=5 // pred_check_branch
        %247 = sbr.rel (%p244) target = $region12
      $region11: #{tpu_custom_call.1} parent=5 // pred_region
        %s248 = ssub.s32 %s26, 1
      $region12: #{tpu_custom_call.1} parent=5 // pred_fallthru
        _
      %p249 = scmp.lt.s32.totalorder %s26, 2
      // Predicated region
      $region13: #{tpu_custom_call.1} parent=5 // pred_check
        %p250 = pneg %p249
      $region14: #{tpu_custom_call.1} parent=5 // pred_check_branch
        %252 = sbr.rel (%p250) target = $region16
      $region15: #{tpu_custom_call.1} parent=5 // pred_region
        // Predicated region
        $region17: #{tpu_custom_call.1} parent=15 // pred_check
          %p253 = pneg %p46
        $region18: #{tpu_custom_call.1} parent=15 // pred_check_branch
          %255 = sbr.rel (%p253) target = $region20
        $region19: #{tpu_custom_call.1} parent=15 // pred_region
          %s256 = sand.u32 %s36, 1
          %s257 = scalar_lea.sflag [#allocation3], %s256
          %s258 = sand.u32 %s36, 1
          %s259 = smul.addr %s258, 96
          %s260 = scalar_lea.vmem [#allocation2], %s259
          %s261 = smul.u32 2, %s26
          %s263 = ssub.s32 1536, 1536
          %264 = vsyncadd %s257, %s263
          %s265 = smul.addr %s261, 6
          %s266 = smul.addr %s265, 128
          %s267 = scalar_lea.hbm %s0, %s266
          %s268 = sshll.u32 %s260, 4
          %s269 = int_to_ptr.vmem [resolvable:$true] %s268
          %274 = dma.hbm_to_vmem [thread:$0]  %s267, 1536, %s269, %s257, 128, 128, 8
        $region20: #{tpu_custom_call.1} parent=15 // pred_fallthru
          _
        // Predicated region
        $region21: #{tpu_custom_call.1} parent=15 // pred_check
          %p275 = pneg %p72
        $region22: #{tpu_custom_call.1} parent=15 // pred_check_branch
          %277 = sbr.rel (%p275) target = $region24
        $region23: #{tpu_custom_call.1} parent=15 // pred_region
          %s278 = sand.u32 %s26, 1
          %s279 = scalar_lea.sflag [#allocation6], %s278
          %s280 = sand.u32 %s62, 1
          %s281 = smul.addr %s280, 96
          %s282 = scalar_lea.vmem [#allocation5], %s281
          %s283 = smul.u32 2, %s26
          %s285 = ssub.s32 1536, 1536
          %286 = vsyncadd %s279, %s285
          %s287 = smul.addr %s283, 6
          %s288 = smul.addr %s287, 128
          %s289 = scalar_lea.hbm %s1, %s288
          %s290 = sshll.u32 %s282, 4
          %s291 = int_to_ptr.vmem [resolvable:$true] %s290
          %296 = dma.hbm_to_vmem [thread:$0]  %s289, 1536, %s291, %s279, 128, 128, 8
        $region24: #{tpu_custom_call.1} parent=15 // pred_fallthru
          _
        // Predicated region
        $region25: #{tpu_custom_call.1} parent=15 // pred_check
          %p297 = pneg %p98
        $region26: #{tpu_custom_call.1} parent=15 // pred_check_branch
          %299 = sbr.rel (%p297) target = $region28
        $region27: #{tpu_custom_call.1} parent=15 // pred_region
          %s300 = sand.u32 %s26, 1
          %s301 = scalar_lea.sflag [#allocation6], %s300
          %s302 = sand.u32 %s88, 1
          %s303 = smul.addr %s302, 96
          %s304 = scalar_lea.vmem [#allocation7], %s303
          %s305 = smul.u32 2, %s26
          %s307 = ssub.s32 1536, 1536
          %308 = vsyncadd %s301, %s307
          %s309 = smul.addr %s305, 6
          %s310 = smul.addr %s309, 128
          %s311 = scalar_lea.hbm %s2, %s310
          %s312 = sshll.u32 %s304, 4
          %s313 = int_to_ptr.vmem [resolvable:$true] %s312
          %318 = dma.hbm_to_vmem [thread:$0]  %s311, 1536, %s313, %s301, 128, 128, 8
        $region28: #{tpu_custom_call.1} parent=15 // pred_fallthru
          _
        // Predicated region
        $region29: #{tpu_custom_call.1} parent=15 // pred_check
          %p319 = pneg %p124
        $region30: #{tpu_custom_call.1} parent=15 // pred_check_branch
          %321 = sbr.rel (%p319) target = $region32
        $region31: #{tpu_custom_call.1} parent=15 // pred_region
          %s322 = smul.u32 2, %s26
          %p323 = scmp.lt.s32.totalorder %s322, 3
          %s324 = scalar_select %p323, %s322, 3
          %s325 = smul.addr %s324, 4
          %s326 = scalar_lea.vmem %s3, %s325
          %s327 = smul.u32 2, %s26
        $region32: #{tpu_custom_call.1} parent=15 // pred_fallthru
          _
        // Predicated region
        $region33: #{tpu_custom_call.1} parent=15 // pred_check
          %p328 = pneg %p150
        $region34: #{tpu_custom_call.1} parent=15 // pred_check_branch
          %330 = sbr.rel (%p328) target = $region36
        $region35: #{tpu_custom_call.1} parent=15 // pred_region
          %s331 = smul.u32 2, %s26
          %p332 = scmp.lt.s32.totalorder %s331, 3
          %s333 = scalar_select %p332, %s331, 3
          %s334 = smul.addr %s333, 4
          %s335 = scalar_lea.vmem %s4, %s334
          %s336 = smul.u32 2, %s26
        $region36: #{tpu_custom_call.1} parent=15 // pred_fallthru
          _
        // Predicated region
        $region37: #{tpu_custom_call.1} parent=15 // pred_check
          %p337 = pneg %p176
        $region38: #{tpu_custom_call.1} parent=15 // pred_check_branch
          %339 = sbr.rel (%p337) target = $region40
        $region39: #{tpu_custom_call.1} parent=15 // pred_region
          %s340 = smul.u32 2, %s26
          %p341 = scmp.lt.s32.totalorder %s340, 3
          %s342 = scalar_select %p341, %s340, 3
          %s343 = smul.addr %s342, 4
          %s344 = scalar_lea.vmem %s5, %s343
          %s345 = smul.u32 2, %s26
        $region40: #{tpu_custom_call.1} parent=15 // pred_fallthru
          _
      $region16: #{tpu_custom_call.1} parent=5 // pred_fallthru
        _
      %p346 = scmp.le.s32.totalorder 1, %s26
      %p347 = scmp.lt.s32.totalorder %s26, 3
      %p348 = pnand %p346, %p347
      %p349 = pneg %p348
      // Predicated region
      $region41: #{tpu_custom_call.1} parent=5 // pred_check
        _
      $region42: #{tpu_custom_call.1} parent=5 // pred_check_branch
        %351 = sbr.rel (%p348) target = $region44
      $region43: #{tpu_custom_call.1} parent=5 // pred_region
        %s352 = ssub.s32 %s26, 1
        %s353 = sand.u32 %s39, 1
        %s354 = scalar_lea.sflag [#allocation3], %s353
        %s355 = sand.u32 %s39, 1
        %s356 = smul.addr %s355, 96
        %s357 = scalar_lea.vmem [#allocation2], %s356
        // Predicated region
        $region45: #{tpu_custom_call.1} parent=43 // pred_check
          %p358 = pneg %p52
        $region46: #{tpu_custom_call.1} parent=43 // pred_check_branch
          %360 = sbr.rel (%p358) target = $region48
        $region47: #{tpu_custom_call.1} parent=43 // pred_region
          %361 = dma.done %s354, 1536
        $region48: #{tpu_custom_call.1} parent=43 // pred_fallthru
          _
        %s362 = sand.u32 %s31, 1
        %s363 = scalar_lea.sflag [#allocation6], %s362
        %s364 = sand.u32 %s65, 1
        %s365 = smul.addr %s364, 96
        %s366 = scalar_lea.vmem [#allocation5], %s365
        // Predicated region
        $region49: #{tpu_custom_call.1} parent=43 // pred_check
          %p367 = pneg %p78
        $region50: #{tpu_custom_call.1} parent=43 // pred_check_branch
          %369 = sbr.rel (%p367) target = $region52
        $region51: #{tpu_custom_call.1} parent=43 // pred_region
          %370 = dma.done %s363, 1536
        $region52: #{tpu_custom_call.1} parent=43 // pred_fallthru
          _
        %s371 = sand.u32 %s31, 1
        %s372 = scalar_lea.sflag [#allocation6], %s371
        %s373 = sand.u32 %s91, 1
        %s374 = smul.addr %s373, 96
        %s375 = scalar_lea.vmem [#allocation7], %s374
        // Predicated region
        $region53: #{tpu_custom_call.1} parent=43 // pred_check
          %p376 = pneg %p104
        $region54: #{tpu_custom_call.1} parent=43 // pred_check_branch
          %378 = sbr.rel (%p376) target = $region56
        $region55: #{tpu_custom_call.1} parent=43 // pred_region
          %379 = dma.done %s372, 1536
        $region56: #{tpu_custom_call.1} parent=43 // pred_fallthru
          _
        %s380 = sand.u32 %s39, 1
        %s381 = scalar_lea.sflag [#allocation3], %s380
        %s382 = sand.u32 %s39, 1
        %s383 = smul.addr %s382, 96
        %s384 = scalar_lea.vmem [#allocation2], %s383
        %p385 = pneg %p52
        %p386 = pneg %p49
        %s387 = sand.u32 %s31, 1
        %s388 = scalar_lea.sflag [#allocation6], %s387
        %s389 = sand.u32 %s65, 1
        %s390 = smul.addr %s389, 96
        %s391 = scalar_lea.vmem [#allocation5], %s390
        %p392 = pneg %p78
        %p393 = pneg %p75
        %s394 = sand.u32 %s31, 1
        %s395 = scalar_lea.sflag [#allocation6], %s394
        %s396 = sand.u32 %s91, 1
        %s397 = smul.addr %s396, 96
        %s398 = scalar_lea.vmem [#allocation7], %s397
        %p399 = pneg %p104
        %p400 = pneg %p101
        %s401 = smul.u32 2, %s31
        %p402 = scmp.lt.s32.totalorder %s401, 3
        %s403 = scalar_select %p402, %s401, 3
        %s404 = smul.addr %s403, 4
        %s405 = scalar_lea.vmem %s3, %s404
        %p406 = pneg %p130
        %p407 = pneg %p127
        %s408 = smul.u32 2, %s31
        %p409 = scmp.lt.s32.totalorder %s408, 3
        %s410 = scalar_select %p409, %s408, 3
        %s411 = smul.addr %s410, 4
        %s412 = scalar_lea.vmem %s4, %s411
        %p413 = pneg %p156
        %p414 = pneg %p153
        %s415 = smul.u32 2, %s31
        %p416 = scmp.lt.s32.totalorder %s415, 3
        %s417 = scalar_select %p416, %s415, 3
        %s418 = smul.addr %s417, 4
        %s419 = scalar_lea.vmem %s5, %s418
        %p420 = pneg %p182
        %p421 = pneg %p179
        %p422 = pneg %p208
        %p423 = pneg %p205
        %s424 = sand.u32 %s195, 1
        %s425 = scalar_lea.sflag [#allocation4], %s424
        %s426 = sand.u32 %s195, 1
        %s427 = smul.addr %s426, 96
        %s428 = scalar_lea.vmem [#allocation8], %s427
        %p429 = pneg %p234
        %p430 = pneg %p231
        %s431 = sand.u32 %s221, 1
        %s432 = scalar_lea.sflag [#allocation10], %s431
        %s433 = sand.u32 %s221, 1
        %s434 = smul.addr %s433, 96
        %s435 = scalar_lea.vmem [#allocation9], %s434
        %s436 = smul.u32 2, %s31
        %s437 = smul.u32 2, %s31
        %s438 = smul.u32 2, %s31
        %s439 = smul.u32 2, %s31
        %p440 = scmp.lt.s32.totalorder %s439, 3
        %s441 = scalar_select %p440, %s439, 3
        %s442 = smul.addr %s441, 4
        %s443 = scalar_lea.vmem %s3, %s442
        %s444 = smul.u32 2, %s31
        %s445 = smul.u32 2, %s31
        %p446 = scmp.lt.s32.totalorder %s445, 3
        %s447 = scalar_select %p446, %s445, 3
        %s448 = smul.addr %s447, 4
        %s449 = scalar_lea.vmem %s4, %s448
        %s450 = smul.u32 2, %s31
        %s451 = smul.u32 2, %s31
        %p452 = scmp.lt.s32.totalorder %s451, 3
        %s453 = scalar_select %p452, %s451, 3
        %s454 = smul.addr %s453, 4
        %s455 = scalar_lea.vmem %s5, %s454
        %s456 = smul.u32 2, %s31
        %s457 = smul.u32 2, %s31
        %s458 = smul.u32 2, %s31
        %v460 = vld [vmem:[%s357] sm:$0xff]
        %v461 = vld [vmem:[%s357 + $0x8] sm:$0xff]
        %v462 = vld [vmem:[%s357 + $0x10] sm:$0xff]
        %v463 = vld [vmem:[%s357 + $0x18] sm:$0xff]
        %v464 = vld [vmem:[%s357 + $0x20] sm:$0xff]
        %v465 = vld [vmem:[%s357 + $0x28] sm:$0xff]
        %v466 = vld [vmem:[%s366] sm:$0xff]
        %v467 = vld [vmem:[%s366 + $0x8] sm:$0xff]
        %v468 = vld [vmem:[%s366 + $0x10] sm:$0xff]
        %v469 = vld [vmem:[%s366 + $0x18] sm:$0xff]
        %v470 = vld [vmem:[%s366 + $0x20] sm:$0xff]
        %v471 = vld [vmem:[%s366 + $0x28] sm:$0xff]
        %v472 = vld [vmem:[%s375] sm:$0xff]
        %v473 = vld [vmem:[%s375 + $0x8] sm:$0xff]
        %v474 = vld [vmem:[%s375 + $0x10] sm:$0xff]
        %v475 = vld [vmem:[%s375 + $0x18] sm:$0xff]
        %v476 = vld [vmem:[%s375 + $0x20] sm:$0xff]
        %v477 = vld [vmem:[%s375 + $0x28] sm:$0xff]
        %v478 = vld [vmem:[%s443] sm:$0x7]
        %v479 = vld [vmem:[%s449] sm:$0x7]
        %v480 = vld [vmem:[%s455] sm:$0x7]
        %vm481 = vcmask 130048
        %v483 = vsel %vm481, %v478, 0
        %v486 = vsel %vm481, %v479, 0
        %488 = vmatprep.subr.mxu0 0.0
        %489 = vmatpush1.xpose.msra.mxu0 %v486
        %490 = vmatprep.subr.mxu0 0.0
        %491 = vmatpush1.xpose.msra.mxu0 0.0
        %492 = vmatprep.subr.mxu0 0.0
        %493 = vmatpush1.xpose.msra.mxu0 0.0
        %494 = vmatprep.subr.mxu0 0.0
        %495 = vmatpush1.xpose.msra.mxu0 0.0
        %496 = vmatprep.subr.mxu0 0.0
        %497 = vmatpush1.xpose.msra.mxu0 0.0
        %498 = vmatprep.subr.mxu0 0.0
        %499 = vmatpush1.xpose.msra.mxu0 0.0
        %500 = vmatprep.subr.mxu0 0.0
        %501 = vmatpush1.xpose.msra.mxu0 0.0
        %502 = vmatprep.subr.mxu0 0.0
        %503 = vmatpush1.xpose.msra.mxu0 0.0
        %504 = vmatprep.subr.mxu0 0.0
        %505 = vmatpush1.xpose.msra.mxu0 0.0
        %506 = vmatprep.subr.mxu0 0.0
        %507 = vmatpush1.xpose.msra.mxu0 0.0
        %508 = vmatprep.subr.mxu0 0.0
        %509 = vmatpush1.xpose.msra.mxu0 0.0
        %510 = vmatprep.subr.mxu0 0.0
        %511 = vmatpush1.xpose.msra.mxu0 0.0
        %512 = vmatprep.subr.mxu0 0.0
        %513 = vmatpush1.xpose.msra.mxu0 0.0
        %514 = vmatprep.subr.mxu0 0.0
        %515 = vmatpush1.xpose.msra.mxu0 0.0
        %516 = vmatprep.subr.mxu0 0.0
        %517 = vmatpush1.xpose.msra.mxu0 0.0
        %518 = vmatprep.subr.mxu0 0.0
        %519 = vmatpush1.xpose.msra.mxu0 0.0
        %520 = vmatprep.subr.mxu0 0.0
        %521 = vmatpush1.xpose.msra.mxu0 0.0
        %522 = vmatprep.subr.mxu0 0.0
        %523 = vmatpush1.xpose.msra.mxu0 0.0
        %524 = vmatprep.subr.mxu0 0.0
        %525 = vmatpush1.xpose.msra.mxu0 0.0
        %526 = vmatprep.subr.mxu0 0.0
        %527 = vmatpush1.xpose.msra.mxu0 0.0
        %528 = vmatprep.subr.mxu0 0.0
        %529 = vmatpush1.xpose.msra.mxu0 0.0
        %530 = vmatprep.subr.mxu0 0.0
        %531 = vmatpush1.xpose.msra.mxu0 0.0
        %532 = vmatprep.subr.mxu0 0.0
        %533 = vmatpush1.xpose.msra.mxu0 0.0
        %534 = vmatprep.subr.mxu0 0.0
        %535 = vmatpush1.xpose.msra.mxu0 0.0
        %536 = vmatprep.subr.mxu0 0.0
        %537 = vmatpush1.xpose.msra.mxu0 0.0
        %538 = vmatprep.subr.mxu0 0.0
        %539 = vmatpush1.xpose.msra.mxu0 0.0
        %540 = vmatprep.subr.mxu0 0.0
        %541 = vmatpush1.xpose.msra.mxu0 0.0
        %542 = vmatprep.subr.mxu0 0.0
        %543 = vmatpush1.xpose.msra.mxu0 0.0
        %544 = vmatprep.subr.mxu0 0.0
        %545 = vmatpush1.xpose.msra.mxu0 0.0
        %546 = vmatprep.subr.mxu0 0.0
        %547 = vmatpush1.xpose.msra.mxu0 0.0
        %548 = vmatprep.subr.mxu0 0.0
        %549 = vmatpush1.xpose.msra.mxu0 0.0
        %550 = vmatprep.subr.mxu0 0.0
        %551 = vmatpush1.xpose.msra.mxu0 0.0
        %552 = vmatprep.mubr.f32.mxu0 0.0
        %553 = vmatmul.mubr.f32.gmra.mrb[0].mxu0 %v483
        %v554 = vpop.f32.mrb[0].mxu0
        %v555 = vadd.f32 0.0, %v554
        %v556 = vpop.f32.mrb[0].mxu0
        %557 = vdwg.mxu0
        %v558 = vmul.f32 %v555, 0.17677669
        %v559 = vmax.f32 %v558, 0.0
        %v560 = vadd.f32 %v480, 1e-06
        %v561 = vlog2.pop %v560
        %v562 = vmul.f32 %v561, 0.6931472
        %v563 = vsub.f32 0.0, %v562
        %v564 = vadd.f32 %v563, 1e-06
        %v565 = vlog2.pop %v564
        %v566 = vmul.f32 %v565, 0.6931472
        %v567 = vsub.f32 0.0, %v566
        %v568 = vlog2.pop %v559
        %v569 = vmul.f32 %v568, 0.6931472
        %v570 = vadd.f32 %v569, %v567
        %v571 = vmul.f32 %v570, 1.3333334
        %vm572 = vcmask 18432
        %v573 = vsel %vm572, %v571, -inf
        %574 = vmax.xlane.f32.xlu0 %v573
        %v575 = vpop.xlane.xlu0 %574
        %vm576 = vcmp.gt.f32.partialorder %v575, -inf
        %v577 = vsel %vm576, %v575, 0.0
        %v578 = vsub.f32 %v571, %v577
        %v579 = vmul.f32 %v578, 1.442695
        %v580 = vpow.pop %v579
        %v581 = vsel %vm572, %v580, 0.0
        %582 = vadd.xlane.f32.xlu0 %v581
        %v583 = vpop.xlane.xlu0 %582
        %v584 = vlog2.pop %v583
        %v585 = vmul.f32 %v584, 0.6931472
        %v586 = vadd.f32 %v577, %v585
        %v587 = vsub.f32 %v571, %v586
        %v588 = vsel %vm572, %v587, -inf
        %v589 = vrot.slane %v588, 4
        %v590 = vmax.f32 %v588, %v589
        %v591 = vrot.slane %v590, 2
        %v592 = vmax.f32 %v590, %v591
        %v593 = vrot.slane %v592, 1
        %v594 = vmax.f32 %v592, %v593
        %vm595 = vcmp.gt.f32.partialorder %v594, -inf
        %v596 = vsel %vm595, %v594, 0.0
        %v597 = vsub.f32 %v587, %v596
        %v598 = vmul.f32 %v597, 1.442695
        %v599 = vpow.pop %v598
        %v600 = vsel %vm572, %v599, 0.0
        %v601 = vrot.slane %v600, 4
        %v602 = vadd.f32 %v600, %v601
        %v603 = vrot.slane %v602, 2
        %v604 = vadd.f32 %v602, %v603
        %v605 = vrot.slane %v604, 1
        %v606 = vadd.f32 %v604, %v605
        %v607 = vlog2.pop %v606
        %v608 = vmul.f32 %v607, 0.6931472
        %v609 = vadd.f32 %v596, %v608
        %v610 = vsub.f32 %v587, %v609
        %v611 = vsel %vm572, %v610, -inf
        %612 = vmax.xlane.f32.xlu0 %v611
        %v613 = vpop.xlane.xlu0 %612
        %vm614 = vcmp.gt.f32.partialorder %v613, -inf
        %v615 = vsel %vm614, %v613, 0.0
        %v616 = vsub.f32 %v610, %v615
        %v617 = vmul.f32 %v616, 1.442695
        %v618 = vpow.pop %v617
        %v619 = vsel %vm572, %v618, 0.0
        %620 = vadd.xlane.f32.xlu0 %v619
        %v621 = vpop.xlane.xlu0 %620
        %v622 = vlog2.pop %v621
        %v623 = vmul.f32 %v622, 0.6931472
        %v624 = vadd.f32 %v615, %v623
        %v625 = vsub.f32 %v610, %v624
        %v626 = vsel %vm572, %v625, -inf
        %v627 = vrot.slane %v626, 4
        %v628 = vmax.f32 %v626, %v627
        %v629 = vrot.slane %v628, 2
        %v630 = vmax.f32 %v628, %v629
        %v631 = vrot.slane %v630, 1
        %v632 = vmax.f32 %v630, %v631
        %vm633 = vcmp.gt.f32.partialorder %v632, -inf
        %v634 = vsel %vm633, %v632, 0.0
        %v635 = vsub.f32 %v625, %v634
        %v636 = vmul.f32 %v635, 1.442695
        %v637 = vpow.pop %v636
        %v638 = vsel %vm572, %v637, 0.0
        %v639 = vrot.slane %v638, 4
        %v640 = vadd.f32 %v638, %v639
        %v641 = vrot.slane %v640, 2
        %v642 = vadd.f32 %v640, %v641
        %v643 = vrot.slane %v642, 1
        %v644 = vadd.f32 %v642, %v643
        %v645 = vlog2.pop %v644
        %v646 = vmul.f32 %v645, 0.6931472
        %v647 = vadd.f32 %v634, %v646
        %v648 = vsub.f32 %v625, %v647
        %v649 = vsel %vm572, %v648, -inf
        %650 = vmax.xlane.f32.xlu0 %v649
        %v651 = vpop.xlane.xlu0 %650
        %vm652 = vcmp.gt.f32.partialorder %v651, -inf
        %v653 = vsel %vm652, %v651, 0.0
        %v654 = vsub.f32 %v648, %v653
        %v655 = vmul.f32 %v654, 1.442695
        %v656 = vpow.pop %v655
        %v657 = vsel %vm572, %v656, 0.0
        %658 = vadd.xlane.f32.xlu0 %v657
        %v659 = vpop.xlane.xlu0 %658
        %v660 = vlog2.pop %v659
        %v661 = vmul.f32 %v660, 0.6931472
        %v662 = vadd.f32 %v653, %v661
        %v663 = vsub.f32 %v648, %v662
        %v664 = vsel %vm572, %v663, -inf
        %v665 = vrot.slane %v664, 4
        %v666 = vmax.f32 %v664, %v665
        %v667 = vrot.slane %v666, 2
        %v668 = vmax.f32 %v666, %v667
        %v669 = vrot.slane %v668, 1
        %v670 = vmax.f32 %v668, %v669
        %vm671 = vcmp.gt.f32.partialorder %v670, -inf
        %v672 = vsel %vm671, %v670, 0.0
        %v673 = vsub.f32 %v663, %v672
        %v674 = vmul.f32 %v673, 1.442695
        %v675 = vpow.pop %v674
        %v676 = vsel %vm572, %v675, 0.0
        %v677 = vrot.slane %v676, 4
        %v678 = vadd.f32 %v676, %v677
        %v679 = vrot.slane %v678, 2
        %v680 = vadd.f32 %v678, %v679
        %v681 = vrot.slane %v680, 1
        %v682 = vadd.f32 %v680, %v681
        %v683 = vlog2.pop %v682
        %v684 = vmul.f32 %v683, 0.6931472
        %v685 = vadd.f32 %v672, %v684
        %v686 = vsub.f32 %v663, %v685
        %v687 = vsel %vm572, %v686, -inf
        %688 = vmax.xlane.f32.xlu0 %v687
        %v689 = vpop.xlane.xlu0 %688
        %vm690 = vcmp.gt.f32.partialorder %v689, -inf
        %v691 = vsel %vm690, %v689, 0.0
        %v692 = vsub.f32 %v686, %v691
        %v693 = vmul.f32 %v692, 1.442695
        %v694 = vpow.pop %v693
        %v695 = vsel %vm572, %v694, 0.0
        %696 = vadd.xlane.f32.xlu0 %v695
        %v697 = vpop.xlane.xlu0 %696
        %v698 = vlog2.pop %v697
        %v699 = vmul.f32 %v698, 0.6931472
        %v700 = vadd.f32 %v691, %v699
        %v701 = vsub.f32 %v686, %v700
        %v702 = vsel %vm572, %v701, -inf
        %v703 = vrot.slane %v702, 4
        %v704 = vmax.f32 %v702, %v703
        %v705 = vrot.slane %v704, 2
        %v706 = vmax.f32 %v704, %v705
        %v707 = vrot.slane %v706, 1
        %v708 = vmax.f32 %v706, %v707
        %vm709 = vcmp.gt.f32.partialorder %v708, -inf
        %v710 = vsel %vm709, %v708, 0.0
        %v711 = vsub.f32 %v701, %v710
        %v712 = vmul.f32 %v711, 1.442695
        %v713 = vpow.pop %v712
        %v714 = vsel %vm572, %v713, 0.0
        %v715 = vrot.slane %v714, 4
        %v716 = vadd.f32 %v714, %v715
        %v717 = vrot.slane %v716, 2
        %v718 = vadd.f32 %v716, %v717
        %v719 = vrot.slane %v718, 1
        %v720 = vadd.f32 %v718, %v719
        %v721 = vlog2.pop %v720
        %v722 = vmul.f32 %v721, 0.6931472
        %v723 = vadd.f32 %v710, %v722
        %v724 = vsub.f32 %v701, %v723
        %v725 = vsel %vm572, %v724, -inf
        %726 = vmax.xlane.f32.xlu0 %v725
        %v727 = vpop.xlane.xlu0 %726
        %vm728 = vcmp.gt.f32.partialorder %v727, -inf
        %v729 = vsel %vm728, %v727, 0.0
        %v730 = vsub.f32 %v724, %v729
        %v731 = vmul.f32 %v730, 1.442695
        %v732 = vpow.pop %v731
        %v733 = vsel %vm572, %v732, 0.0
        %734 = vadd.xlane.f32.xlu0 %v733
        %v735 = vpop.xlane.xlu0 %734
        %v736 = vlog2.pop %v735
        %v737 = vmul.f32 %v736, 0.6931472
        %v738 = vadd.f32 %v729, %v737
        %v739 = vsub.f32 %v724, %v738
        %v740 = vsel %vm572, %v739, -inf
        %v741 = vrot.slane %v740, 4
        %v742 = vmax.f32 %v740, %v741
        %v743 = vrot.slane %v742, 2
        %v744 = vmax.f32 %v742, %v743
        %v745 = vrot.slane %v744, 1
        %v746 = vmax.f32 %v744, %v745
        %vm747 = vcmp.gt.f32.partialorder %v746, -inf
        %v748 = vsel %vm747, %v746, 0.0
        %v749 = vsub.f32 %v739, %v748
        %v750 = vmul.f32 %v749, 1.442695
        %v751 = vpow.pop %v750
        %v752 = vsel %vm572, %v751, 0.0
        %v753 = vrot.slane %v752, 4
        %v754 = vadd.f32 %v752, %v753
        %v755 = vrot.slane %v754, 2
        %v756 = vadd.f32 %v754, %v755
        %v757 = vrot.slane %v756, 1
        %v758 = vadd.f32 %v756, %v757
        %v759 = vlog2.pop %v758
        %v760 = vmul.f32 %v759, 0.6931472
        %v761 = vadd.f32 %v748, %v760
        %v762 = vsub.f32 %v739, %v761
        %v763 = vmul.f32 %v762, 1.442695
        %v764 = vpow.pop %v763
        %s766 = vtos %v764
        %v767 = vstv %s766
        %v769 = vmul.f32 %v767, %v466
        %v770 = vmul.f32 %v767, %v467
        %v771 = vrot.slane %v764, 1
        %s772 = vtos %v771
        %v773 = vstv %s772
        %v775 = vmul.f32 %v773, %v468
        %v776 = vmul.f32 %v773, %v469
        %v777 = vadd.f32 %v769, %v775
        %v778 = vadd.f32 %v770, %v776
        %v779 = vrot.slane %v764, 2
        %s780 = vtos %v779
        %v781 = vstv %s780
        %v783 = vmul.f32 %v781, %v470
        %v784 = vmul.f32 %v781, %v471
        %v785 = vadd.f32 %v777, %v783
        %v786 = vadd.f32 %v778, %v784
        %787 = vrot.lane.b32.xlu0 %v764, 127
        %v788 = vpop.permute.xlu0 %787
        %s789 = vtos %v788
        %v790 = vstv %s789
        %v792 = vmul.f32 %v790, %v466
        %v793 = vmul.f32 %v790, %v467
        %794 = vrot.lane.b32.xlu0 %v771, 127
        %v795 = vpop.permute.xlu0 %794
        %s796 = vtos %v795
        %v797 = vstv %s796
        %v799 = vmul.f32 %v797, %v468
        %v800 = vmul.f32 %v797, %v469
        %v801 = vadd.f32 %v792, %v799
        %v802 = vadd.f32 %v793, %v800
        %803 = vrot.lane.b32.xlu0 %v779, 127
        %v804 = vpop.permute.xlu0 %803
        %s805 = vtos %v804
        %v806 = vstv %s805
        %v808 = vmul.f32 %v806, %v470
        %v809 = vmul.f32 %v806, %v471
        %v810 = vadd.f32 %v801, %v808
        %v811 = vadd.f32 %v802, %v809
        %812 = vrot.lane.b32.xlu0 %v764, 126
        %v813 = vpop.permute.xlu0 %812
        %s814 = vtos %v813
        %v815 = vstv %s814
        %v817 = vmul.f32 %v815, %v466
        %v818 = vmul.f32 %v815, %v467
        %819 = vrot.lane.b32.xlu0 %v771, 126
        %v820 = vpop.permute.xlu0 %819
        %s821 = vtos %v820
        %v822 = vstv %s821
        %v824 = vmul.f32 %v822, %v468
        %v825 = vmul.f32 %v822, %v469
        %v826 = vadd.f32 %v817, %v824
        %v827 = vadd.f32 %v818, %v825
        %828 = vrot.lane.b32.xlu0 %v779, 126
        %v829 = vpop.permute.xlu0 %828
        %s830 = vtos %v829
        %v831 = vstv %s830
        %v833 = vmul.f32 %v831, %v470
        %v834 = vmul.f32 %v831, %v471
        %v835 = vadd.f32 %v826, %v833
        %v836 = vadd.f32 %v827, %v834
        %v837 = vmul.f32 %v767, %v472
        %v838 = vmul.f32 %v767, %v473
        %v839 = vmul.f32 %v773, %v474
        %v840 = vmul.f32 %v773, %v475
        %v841 = vadd.f32 %v837, %v839
        %v842 = vadd.f32 %v838, %v840
        %v843 = vmul.f32 %v781, %v476
        %v844 = vmul.f32 %v781, %v477
        %v845 = vadd.f32 %v841, %v843
        %v846 = vadd.f32 %v842, %v844
        %v847 = vmul.f32 %v790, %v472
        %v848 = vmul.f32 %v790, %v473
        %v849 = vmul.f32 %v797, %v474
        %v850 = vmul.f32 %v797, %v475
        %v851 = vadd.f32 %v847, %v849
        %v852 = vadd.f32 %v848, %v850
        %v853 = vmul.f32 %v806, %v476
        %v854 = vmul.f32 %v806, %v477
        %v855 = vadd.f32 %v851, %v853
        %v856 = vadd.f32 %v852, %v854
        %v857 = vmul.f32 %v815, %v472
        %v858 = vmul.f32 %v815, %v473
        %v859 = vmul.f32 %v822, %v474
        %v860 = vmul.f32 %v822, %v475
        %v861 = vadd.f32 %v857, %v859
        %v862 = vadd.f32 %v858, %v860
        %v863 = vmul.f32 %v831, %v476
        %v864 = vmul.f32 %v831, %v477
        %v865 = vadd.f32 %v861, %v863
        %v866 = vadd.f32 %v862, %v864
        %v867 = vmul.f32 %v460, 1.3333334
        %v868 = vmul.f32 %v461, 1.3333334
        %v869 = vmul.f32 %v462, 1.3333334
        %v870 = vmul.f32 %v463, 1.3333334
        %v871 = vmul.f32 %v464, 1.3333334
        %v872 = vmul.f32 %v465, 1.3333334
        %v873 = vpack.c.bf16 %v868, %v867
        %v874 = vpack.c.bf16 %v870, %v869
        %v875 = vpack.c.bf16 %v872, %v871
        %v876 = vpack.c.bf16 %v786, %v785
        %v877 = vpack.c.bf16 %v811, %v810
        %v878 = vpack.c.bf16 %v836, %v835
        %vm879 = vcmask 261120
        %v881 = vsel %vm879, %v873, 0
        %v884 = vsel %vm879, %v876, 0
        %886 = vmatprep.subr.bf16.mxu0 0
        %887 = vmatpush1.bf16.xpose.msra.mxu0 %v884
        %888 = vmatprep.subr.bf16.mxu0 0
        %889 = vmatpush1.bf16.xpose.msra.mxu0 0
        %890 = vmatprep.subr.bf16.mxu0 0
        %891 = vmatpush1.bf16.xpose.msra.mxu0 0
        %892 = vmatprep.subr.bf16.mxu0 0
        %893 = vmatpush1.bf16.xpose.msra.mxu0 0
        %894 = vmatprep.subr.bf16.mxu0 0
        %895 = vmatpush1.bf16.xpose.msra.mxu0 0
        %896 = vmatprep.subr.bf16.mxu0 0
        %897 = vmatpush1.bf16.xpose.msra.mxu0 0
        %898 = vmatprep.subr.bf16.mxu0 0
        %899 = vmatpush1.bf16.xpose.msra.mxu0 0
        %900 = vmatprep.subr.bf16.mxu0 0
        %901 = vmatpush1.bf16.xpose.msra.mxu0 0
        %902 = vmatprep.subr.bf16.mxu0 0
        %903 = vmatpush1.bf16.xpose.msra.mxu0 0
        %904 = vmatprep.subr.bf16.mxu0 0
        %905 = vmatpush1.bf16.xpose.msra.mxu0 0
        %906 = vmatprep.subr.bf16.mxu0 0
        %907 = vmatpush1.bf16.xpose.msra.mxu0 0
        %908 = vmatprep.subr.bf16.mxu0 0
        %909 = vmatpush1.bf16.xpose.msra.mxu0 0
        %910 = vmatprep.subr.bf16.mxu0 0
        %911 = vmatpush1.bf16.xpose.msra.mxu0 0
        %912 = vmatprep.subr.bf16.mxu0 0
        %913 = vmatpush1.bf16.xpose.msra.mxu0 0
        %914 = vmatprep.subr.bf16.mxu0 0
        %915 = vmatpush1.bf16.xpose.msra.mxu0 0
        %916 = vmatprep.subr.bf16.mxu0 0
        %917 = vmatpush1.bf16.xpose.msra.mxu0 0
        %918 = vmatprep.mubr.bf16.mxu0 0
        %919 = vmatmul.mubr.bf16.gmra.mrb[0].mxu0 %v881
        %v920 = vpop.f32.mrb[0].mxu0
        %v921 = vadd.f32 0.0, %v920
        %v922 = vpop.f32.mrb[0].mxu0
        %v923 = vpop.f32.mrb[0].mxu0
        %v924 = vadd.f32 0.0, %v923
        %v925 = vpop.f32.mrb[0].mxu0
        %926 = vdwg.mxu0
        %v928 = vsel %vm879, %v874, 0
        %v931 = vsel %vm879, %v877, 0
        %933 = vmatprep.subr.bf16.mxu0 0
        %934 = vmatpush1.bf16.xpose.msra.mxu0 %v931
        %935 = vmatprep.subr.bf16.mxu0 0
        %936 = vmatpush1.bf16.xpose.msra.mxu0 0
        %937 = vmatprep.subr.bf16.mxu0 0
        %938 = vmatpush1.bf16.xpose.msra.mxu0 0
        %939 = vmatprep.subr.bf16.mxu0 0
        %940 = vmatpush1.bf16.xpose.msra.mxu0 0
        %941 = vmatprep.subr.bf16.mxu0 0
        %942 = vmatpush1.bf16.xpose.msra.mxu0 0
        %943 = vmatprep.subr.bf16.mxu0 0
        %944 = vmatpush1.bf16.xpose.msra.mxu0 0
        %945 = vmatprep.subr.bf16.mxu0 0
        %946 = vmatpush1.bf16.xpose.msra.mxu0 0
        %947 = vmatprep.subr.bf16.mxu0 0
        %948 = vmatpush1.bf16.xpose.msra.mxu0 0
        %949 = vmatprep.subr.bf16.mxu0 0
        %950 = vmatpush1.bf16.xpose.msra.mxu0 0
        %951 = vmatprep.subr.bf16.mxu0 0
        %952 = vmatpush1.bf16.xpose.msra.mxu0 0
        %953 = vmatprep.subr.bf16.mxu0 0
        %954 = vmatpush1.bf16.xpose.msra.mxu0 0
        %955 = vmatprep.subr.bf16.mxu0 0
        %956 = vmatpush1.bf16.xpose.msra.mxu0 0
        %957 = vmatprep.subr.bf16.mxu0 0
        %958 = vmatpush1.bf16.xpose.msra.mxu0 0
        %959 = vmatprep.subr.bf16.mxu0 0
        %960 = vmatpush1.bf16.xpose.msra.mxu0 0
        %961 = vmatprep.subr.bf16.mxu0 0
        %962 = vmatpush1.bf16.xpose.msra.mxu0 0
        %963 = vmatprep.subr.bf16.mxu0 0
        %964 = vmatpush1.bf16.xpose.msra.mxu0 0
        %965 = vmatprep.mubr.bf16.mxu0 0
        %966 = vmatmul.mubr.bf16.gmra.mrb[0].mxu0 %v928
        %v967 = vpop.f32.mrb[0].mxu0
        %v968 = vadd.f32 0.0, %v967
        %v969 = vpop.f32.mrb[0].mxu0
        %v970 = vpop.f32.mrb[0].mxu0
        %v971 = vadd.f32 0.0, %v970
        %v972 = vpop.f32.mrb[0].mxu0
        %973 = vdwg.mxu0
        %v975 = vsel %vm879, %v875, 0
        %v978 = vsel %vm879, %v878, 0
        %980 = vmatprep.subr.bf16.mxu0 0
        %981 = vmatpush1.bf16.xpose.msra.mxu0 %v978
        %982 = vmatprep.subr.bf16.mxu0 0
        %983 = vmatpush1.bf16.xpose.msra.mxu0 0
        %984 = vmatprep.subr.bf16.mxu0 0
        %985 = vmatpush1.bf16.xpose.msra.mxu0 0
        %986 = vmatprep.subr.bf16.mxu0 0
        %987 = vmatpush1.bf16.xpose.msra.mxu0 0
        %988 = vmatprep.subr.bf16.mxu0 0
        %989 = vmatpush1.bf16.xpose.msra.mxu0 0
        %990 = vmatprep.subr.bf16.mxu0 0
        %991 = vmatpush1.bf16.xpose.msra.mxu0 0
        %992 = vmatprep.subr.bf16.mxu0 0
        %993 = vmatpush1.bf16.xpose.msra.mxu0 0
        %994 = vmatprep.subr.bf16.mxu0 0
        %995 = vmatpush1.bf16.xpose.msra.mxu0 0
        %996 = vmatprep.subr.bf16.mxu0 0
        %997 = vmatpush1.bf16.xpose.msra.mxu0 0
        %998 = vmatprep.subr.bf16.mxu0 0
        %999 = vmatpush1.bf16.xpose.msra.mxu0 0
        %1000 = vmatprep.subr.bf16.mxu0 0
        %1001 = vmatpush1.bf16.xpose.msra.mxu0 0
        %1002 = vmatprep.subr.bf16.mxu0 0
        %1003 = vmatpush1.bf16.xpose.msra.mxu0 0
        %1004 = vmatprep.subr.bf16.mxu0 0
        %1005 = vmatpush1.bf16.xpose.msra.mxu0 0
        %1006 = vmatprep.subr.bf16.mxu0 0
        %1007 = vmatpush1.bf16.xpose.msra.mxu0 0
        %1008 = vmatprep.subr.bf16.mxu0 0
        %1009 = vmatpush1.bf16.xpose.msra.mxu0 0
        %1010 = vmatprep.subr.bf16.mxu0 0
        %1011 = vmatpush1.bf16.xpose.msra.mxu0 0
        %1012 = vmatprep.mubr.bf16.mxu0 0
        %1013 = vmatmul.mubr.bf16.gmra.mrb[0].mxu0 %v975
        %v1014 = vpop.f32.mrb[0].mxu0
        %v1015 = vadd.f32 0.0, %v1014
        %v1016 = vpop.f32.mrb[0].mxu0
        %v1017 = vpop.f32.mrb[0].mxu0
        %v1018 = vadd.f32 0.0, %v1017
        %v1019 = vpop.f32.mrb[0].mxu0
        %1020 = vdwg.mxu0
        %v1021 = vsel %vm481, %v921, -inf
        %1022 = vmax.xlane.f32.xlu0 %v1021
        %v1023 = vpop.xlane.xlu0 %1022
        %v1024 = vsel %vm481, %v924, -inf
        %1025 = vmax.xlane.f32.xlu0 %v1024
        %v1026 = vpop.xlane.xlu0 %1025
        %v1027 = vsel %vm481, %v968, -inf
        %1028 = vmax.xlane.f32.xlu0 %v1027
        %v1029 = vpop.xlane.xlu0 %1028
        %v1030 = vsel %vm481, %v971, -inf
        %1031 = vmax.xlane.f32.xlu0 %v1030
        %v1032 = vpop.xlane.xlu0 %1031
        %v1033 = vsel %vm481, %v1015, -inf
        %1034 = vmax.xlane.f32.xlu0 %v1033
        %v1035 = vpop.xlane.xlu0 %1034
        %v1036 = vsel %vm481, %v1018, -inf
        %1037 = vmax.xlane.f32.xlu0 %v1036
        %v1038 = vpop.xlane.xlu0 %1037
        %v1039 = vsub.f32 %v921, %v1023
        %v1040 = vsub.f32 %v924, %v1026
        %v1041 = vsub.f32 %v968, %v1029
        %v1042 = vsub.f32 %v971, %v1032
        %v1043 = vsub.f32 %v1015, %v1035
        %v1044 = vsub.f32 %v1018, %v1038
        %v1045 = vmul.f32 %v1039, 1.442695
        %v1046 = vpow.pop %v1045
        %v1047 = vmul.f32 %v1040, 1.442695
        %v1048 = vpow.pop %v1047
        %v1049 = vmul.f32 %v1041, 1.442695
        %v1050 = vpow.pop %v1049
        %v1051 = vmul.f32 %v1042, 1.442695
        %v1052 = vpow.pop %v1051
        %v1053 = vmul.f32 %v1043, 1.442695
        %v1054 = vpow.pop %v1053
        %v1055 = vmul.f32 %v1044, 1.442695
        %v1056 = vpow.pop %v1055
        %v1057 = vsel %vm481, %v1046, 0.0
        %1058 = vadd.xlane.f32.xlu0 %v1057
        %v1059 = vpop.xlane.xlu0 %1058
        %v1060 = vsel %vm481, %v1048, 0.0
        %1061 = vadd.xlane.f32.xlu0 %v1060
        %v1062 = vpop.xlane.xlu0 %1061
        %v1063 = vsel %vm481, %v1050, 0.0
        %1064 = vadd.xlane.f32.xlu0 %v1063
        %v1065 = vpop.xlane.xlu0 %1064
        %v1066 = vsel %vm481, %v1052, 0.0
        %1067 = vadd.xlane.f32.xlu0 %v1066
        %v1068 = vpop.xlane.xlu0 %1067
        %v1069 = vsel %vm481, %v1054, 0.0
        %1070 = vadd.xlane.f32.xlu0 %v1069
        %v1071 = vpop.xlane.xlu0 %1070
        %v1072 = vsel %vm481, %v1056, 0.0
        %1073 = vadd.xlane.f32.xlu0 %v1072
        %v1074 = vpop.xlane.xlu0 %1073
        %v1075 = vrcp.pop %v1059
        %v1076 = vrcp.pop %v1062
        %v1077 = vrcp.pop %v1065
        %v1078 = vrcp.pop %v1068
        %v1079 = vrcp.pop %v1071
        %v1080 = vrcp.pop %v1074
        %v1081 = vmul.f32 %v1046, %v1075
        %v1082 = vmul.f32 %v1048, %v1076
        %v1083 = vmul.f32 %v1050, %v1077
        %v1084 = vmul.f32 %v1052, %v1078
        %v1085 = vmul.f32 %v1054, %v1079
        %v1086 = vmul.f32 %v1056, %v1080
        %v1087 = vpack.c.bf16 %v1082, %v1081
        %v1088 = vpack.c.bf16 %v1084, %v1083
        %v1089 = vpack.c.bf16 %v1086, %v1085
        %v1090 = vpack.c.bf16 %v846, %v845
        %v1091 = vpack.c.bf16 %v856, %v855
        %v1092 = vpack.c.bf16 %v866, %v865
        %v1094 = vsel %vm481, %v1087, 0
        %1096 = vmatprep.subr.bf16.mxu0 0
        %1097 = vmatpush1.bf16.msra.mxu0 %v1090
        %1098 = vmatprep.subr.bf16.mxu0 0
        %1099 = vmatpush1.bf16.msra.mxu0 0
        %1100 = vmatprep.subr.bf16.mxu0 0
        %1101 = vmatpush1.bf16.msra.mxu0 0
        %1102 = vmatprep.subr.bf16.mxu0 0
        %1103 = vmatpush1.bf16.msra.mxu0 0
        %1104 = vmatprep.subr.bf16.mxu0 0
        %1105 = vmatpush1.bf16.msra.mxu0 0
        %1106 = vmatprep.subr.bf16.mxu0 0
        %1107 = vmatpush1.bf16.msra.mxu0 0
        %1108 = vmatprep.subr.bf16.mxu0 0
        %1109 = vmatpush1.bf16.msra.mxu0 0
        %1110 = vmatprep.subr.bf16.mxu0 0
        %1111 = vmatpush1.bf16.msra.mxu0 0
        %1112 = vmatprep.subr.bf16.mxu0 0
        %1113 = vmatpush1.bf16.msra.mxu0 0
        %1114 = vmatprep.subr.bf16.mxu0 0
        %1115 = vmatpush1.bf16.msra.mxu0 0
        %1116 = vmatprep.subr.bf16.mxu0 0
        %1117 = vmatpush1.bf16.msra.mxu0 0
        %1118 = vmatprep.subr.bf16.mxu0 0
        %1119 = vmatpush1.bf16.msra.mxu0 0
        %1120 = vmatprep.subr.bf16.mxu0 0
        %1121 = vmatpush1.bf16.msra.mxu0 0
        %1122 = vmatprep.subr.bf16.mxu0 0
        %1123 = vmatpush1.bf16.msra.mxu0 0
        %1124 = vmatprep.subr.bf16.mxu0 0
        %1125 = vmatpush1.bf16.msra.mxu0 0
        %1126 = vmatprep.subr.bf16.mxu0 0
        %1127 = vmatpush1.bf16.msra.mxu0 0
        %1128 = vmatprep.mubr.bf16.mxu0 0
        %1129 = vmatmul.mubr.bf16.gmra.mrb[0].mxu0 %v1094
        %v1130 = vpop.f32.mrb[0].mxu0
        %v1131 = vadd.f32 0.0, %v1130
        %v1132 = vpop.f32.mrb[0].mxu0
        %v1133 = vpop.f32.mrb[0].mxu0
        %v1134 = vadd.f32 0.0, %v1133
        %v1135 = vpop.f32.mrb[0].mxu0
        %1136 = vdwg.mxu0
        %v1138 = vsel %vm481, %v1088, 0
        %1140 = vmatprep.subr.bf16.mxu0 0
        %1141 = vmatpush1.bf16.msra.mxu0 %v1091
        %1142 = vmatprep.subr.bf16.mxu0 0
        %1143 = vmatpush1.bf16.msra.mxu0 0
        %1144 = vmatprep.subr.bf16.mxu0 0
        %1145 = vmatpush1.bf16.msra.mxu0 0
        %1146 = vmatprep.subr.bf16.mxu0 0
        %1147 = vmatpush1.bf16.msra.mxu0 0
        %1148 = vmatprep.subr.bf16.mxu0 0
        %1149 = vmatpush1.bf16.msra.mxu0 0
        %1150 = vmatprep.subr.bf16.mxu0 0
        %1151 = vmatpush1.bf16.msra.mxu0 0
        %1152 = vmatprep.subr.bf16.mxu0 0
        %1153 = vmatpush1.bf16.msra.mxu0 0
        %1154 = vmatprep.subr.bf16.mxu0 0
        %1155 = vmatpush1.bf16.msra.mxu0 0
        %1156 = vmatprep.subr.bf16.mxu0 0
        %1157 = vmatpush1.bf16.msra.mxu0 0
        %1158 = vmatprep.subr.bf16.mxu0 0
        %1159 = vmatpush1.bf16.msra.mxu0 0
        %1160 = vmatprep.subr.bf16.mxu0 0
        %1161 = vmatpush1.bf16.msra.mxu0 0
        %1162 = vmatprep.subr.bf16.mxu0 0
        %1163 = vmatpush1.bf16.msra.mxu0 0
        %1164 = vmatprep.subr.bf16.mxu0 0
        %1165 = vmatpush1.bf16.msra.mxu0 0
        %1166 = vmatprep.subr.bf16.mxu0 0
        %1167 = vmatpush1.bf16.msra.mxu0 0
        %1168 = vmatprep.subr.bf16.mxu0 0
        %1169 = vmatpush1.bf16.msra.mxu0 0
        %1170 = vmatprep.subr.bf16.mxu0 0
        %1171 = vmatpush1.bf16.msra.mxu0 0
        %1172 = vmatprep.mubr.bf16.mxu0 0
        %1173 = vmatmul.mubr.bf16.gmra.mrb[0].mxu0 %v1138
        %v1174 = vpop.f32.mrb[0].mxu0
        %v1175 = vadd.f32 0.0, %v1174
        %v1176 = vpop.f32.mrb[0].mxu0
        %v1177 = vpop.f32.mrb[0].mxu0
        %v1178 = vadd.f32 0.0, %v1177
        %v1179 = vpop.f32.mrb[0].mxu0
        %1180 = vdwg.mxu0
        %v1182 = vsel %vm481, %v1089, 0
        %1184 = vmatprep.subr.bf16.mxu0 0
        %1185 = vmatpush1.bf16.msra.mxu0 %v1092
        %1186 = vmatprep.subr.bf16.mxu0 0
        %1187 = vmatpush1.bf16.msra.mxu0 0
        %1188 = vmatprep.subr.bf16.mxu0 0
        %1189 = vmatpush1.bf16.msra.mxu0 0
        %1190 = vmatprep.subr.bf16.mxu0 0
        %1191 = vmatpush1.bf16.msra.mxu0 0
        %1192 = vmatprep.subr.bf16.mxu0 0
        %1193 = vmatpush1.bf16.msra.mxu0 0
        %1194 = vmatprep.subr.bf16.mxu0 0
        %1195 = vmatpush1.bf16.msra.mxu0 0
        %1196 = vmatprep.subr.bf16.mxu0 0
        %1197 = vmatpush1.bf16.msra.mxu0 0
        %1198 = vmatprep.subr.bf16.mxu0 0
        %1199 = vmatpush1.bf16.msra.mxu0 0
        %1200 = vmatprep.subr.bf16.mxu0 0
        %1201 = vmatpush1.bf16.msra.mxu0 0
        %1202 = vmatprep.subr.bf16.mxu0 0
        %1203 = vmatpush1.bf16.msra.mxu0 0
        %1204 = vmatprep.subr.bf16.mxu0 0
        %1205 = vmatpush1.bf16.msra.mxu0 0
        %1206 = vmatprep.subr.bf16.mxu0 0
        %1207 = vmatpush1.bf16.msra.mxu0 0
        %1208 = vmatprep.subr.bf16.mxu0 0
        %1209 = vmatpush1.bf16.msra.mxu0 0
        %1210 = vmatprep.subr.bf16.mxu0 0
        %1211 = vmatpush1.bf16.msra.mxu0 0
        %1212 = vmatprep.subr.bf16.mxu0 0
        %1213 = vmatpush1.bf16.msra.mxu0 0
        %1214 = vmatprep.subr.bf16.mxu0 0
        %1215 = vmatpush1.bf16.msra.mxu0 0
        %1216 = vmatprep.mubr.bf16.mxu0 0
        %1217 = vmatmul.mubr.bf16.gmra.mrb[0].mxu0 %v1182
        %v1218 = vpop.f32.mrb[0].mxu0
        %v1219 = vadd.f32 0.0, %v1218
        %v1220 = vpop.f32.mrb[0].mxu0
        %v1221 = vpop.f32.mrb[0].mxu0
        %v1222 = vadd.f32 0.0, %v1221
        %v1223 = vpop.f32.mrb[0].mxu0
        %1224 = vdwg.mxu0
        %v1225 = vmul.f32 %v767, %v1131
        %v1226 = vmul.f32 %v767, %v1134
        %v1227 = vmul.f32 %v790, %v1175
        %v1228 = vmul.f32 %v790, %v1178
        %v1229 = vadd.f32 %v1225, %v1227
        %v1230 = vadd.f32 %v1226, %v1228
        %v1231 = vmul.f32 %v815, %v1219
        %v1232 = vmul.f32 %v815, %v1222
        %v1233 = vadd.f32 %v1229, %v1231
        %v1234 = vadd.f32 %v1230, %v1232
        %v1235 = vmul.f32 %v773, %v1131
        %v1236 = vmul.f32 %v773, %v1134
        %v1237 = vmul.f32 %v797, %v1175
        %v1238 = vmul.f32 %v797, %v1178
        %v1239 = vadd.f32 %v1235, %v1237
        %v1240 = vadd.f32 %v1236, %v1238
        %v1241 = vmul.f32 %v822, %v1219
        %v1242 = vmul.f32 %v822, %v1222
        %v1243 = vadd.f32 %v1239, %v1241
        %v1244 = vadd.f32 %v1240, %v1242
        %v1245 = vmul.f32 %v781, %v1131
        %v1246 = vmul.f32 %v781, %v1134
        %v1247 = vmul.f32 %v806, %v1175
        %v1248 = vmul.f32 %v806, %v1178
        %v1249 = vadd.f32 %v1245, %v1247
        %v1250 = vadd.f32 %v1246, %v1248
        %v1251 = vmul.f32 %v831, %v1219
        %v1252 = vmul.f32 %v831, %v1222
        %v1253 = vadd.f32 %v1249, %v1251
        %v1254 = vadd.f32 %v1250, %v1252
        %1255 = vst.msk [vmem:[%s428] sm:$0xff] %vm879, %v1233
        %1256 = vst.msk [vmem:[%s428 + $0x8] sm:$0xff] %vm879, %v1234
        %1257 = vst.msk [vmem:[%s428 + $0x10] sm:$0xff] %vm879, %v1243
        %1258 = vst.msk [vmem:[%s428 + $0x18] sm:$0xff] %vm879, %v1244
        %1259 = vst.msk [vmem:[%s428 + $0x20] sm:$0xff] %vm879, %v1253
        %1260 = vst.msk [vmem:[%s428 + $0x28] sm:$0xff] %vm879, %v1254
        %1261 = vst.msk [vmem:[%s435] sm:$0xff] %vm879, %v785
        %1262 = vst.msk [vmem:[%s435 + $0x8] sm:$0xff] %vm879, %v786
        %1263 = vst.msk [vmem:[%s435 + $0x10] sm:$0xff] %vm879, %v810
        %1264 = vst.msk [vmem:[%s435 + $0x18] sm:$0xff] %vm879, %v811
        %1265 = vst.msk [vmem:[%s435 + $0x20] sm:$0xff] %vm879, %v835
        %1266 = vst.msk [vmem:[%s435 + $0x28] sm:$0xff] %vm879, %v836
        %s1267 = scalar_lea.vmem %s357, 48 [#allocation2]
        %v1268 = vld [vmem:[%s1267] sm:$0xff]
        %v1269 = vld [vmem:[%s1267 + $0x8] sm:$0xff]
        %v1270 = vld [vmem:[%s1267 + $0x10] sm:$0xff]
        %v1271 = vld [vmem:[%s1267 + $0x18] sm:$0xff]
        %v1272 = vld [vmem:[%s1267 + $0x20] sm:$0xff]
        %v1273 = vld [vmem:[%s1267 + $0x28] sm:$0xff]
        %s1274 = scalar_lea.vmem %s366, 48 [#allocation5]
        %v1275 = vld [vmem:[%s1274] sm:$0xff]
        %v1276 = vld [vmem:[%s1274 + $0x8] sm:$0xff]
        %v1277 = vld [vmem:[%s1274 + $0x10] sm:$0xff]
        %v1278 = vld [vmem:[%s1274 + $0x18] sm:$0xff]
        %v1279 = vld [vmem:[%s1274 + $0x20] sm:$0xff]
        %v1280 = vld [vmem:[%s1274 + $0x28] sm:$0xff]
        %s1281 = scalar_lea.vmem %s375, 48 [#allocation7]
        %v1282 = vld [vmem:[%s1281] sm:$0xff]
        %v1283 = vld [vmem:[%s1281 + $0x8] sm:$0xff]
        %v1284 = vld [vmem:[%s1281 + $0x10] sm:$0xff]
        %v1285 = vld [vmem:[%s1281 + $0x18] sm:$0xff]
        %v1286 = vld [vmem:[%s1281 + $0x20] sm:$0xff]
        %v1287 = vld [vmem:[%s1281 + $0x28] sm:$0xff]
        %s1288 = scalar_lea.vmem %s443, 4
        %v1289 = vld [vmem:[%s1288] sm:$0x7]
        %s1290 = scalar_lea.vmem %s449, 4
        %v1291 = vld [vmem:[%s1290] sm:$0x7]
        %s1292 = scalar_lea.vmem %s455, 4
        %v1293 = vld [vmem:[%s1292] sm:$0x7]
        %v1295 = vsel %vm481, %v1289, 0
        %v1298 = vsel %vm481, %v1291, 0
        %1300 = vmatprep.subr.mxu0 0.0
        %1301 = vmatpush1.xpose.msra.mxu0 %v1298
        %1302 = vmatprep.subr.mxu0 0.0
        %1303 = vmatpush1.xpose.msra.mxu0 0.0
        %1304 = vmatprep.subr.mxu0 0.0
        %1305 = vmatpush1.xpose.msra.mxu0 0.0
        %1306 = vmatprep.subr.mxu0 0.0
        %1307 = vmatpush1.xpose.msra.mxu0 0.0
        %1308 = vmatprep.subr.mxu0 0.0
        %1309 = vmatpush1.xpose.msra.mxu0 0.0
        %1310 = vmatprep.subr.mxu0 0.0
        %1311 = vmatpush1.xpose.msra.mxu0 0.0
        %1312 = vmatprep.subr.mxu0 0.0
        %1313 = vmatpush1.xpose.msra.mxu0 0.0
        %1314 = vmatprep.subr.mxu0 0.0
        %1315 = vmatpush1.xpose.msra.mxu0 0.0
        %1316 = vmatprep.subr.mxu0 0.0
        %1317 = vmatpush1.xpose.msra.mxu0 0.0
        %1318 = vmatprep.subr.mxu0 0.0
        %1319 = vmatpush1.xpose.msra.mxu0 0.0
        %1320 = vmatprep.subr.mxu0 0.0
        %1321 = vmatpush1.xpose.msra.mxu0 0.0
        %1322 = vmatprep.subr.mxu0 0.0
        %1323 = vmatpush1.xpose.msra.mxu0 0.0
        %1324 = vmatprep.subr.mxu0 0.0
        %1325 = vmatpush1.xpose.msra.mxu0 0.0
        %1326 = vmatprep.subr.mxu0 0.0
        %1327 = vmatpush1.xpose.msra.mxu0 0.0
        %1328 = vmatprep.subr.mxu0 0.0
        %1329 = vmatpush1.xpose.msra.mxu0 0.0
        %1330 = vmatprep.subr.mxu0 0.0
        %1331 = vmatpush1.xpose.msra.mxu0 0.0
        %1332 = vmatprep.subr.mxu0 0.0
        %1333 = vmatpush1.xpose.msra.mxu0 0.0
        %1334 = vmatprep.subr.mxu0 0.0
        %1335 = vmatpush1.xpose.msra.mxu0 0.0
        %1336 = vmatprep.subr.mxu0 0.0
        %1337 = vmatpush1.xpose.msra.mxu0 0.0
        %1338 = vmatprep.subr.mxu0 0.0
        %1339 = vmatpush1.xpose.msra.mxu0 0.0
        %1340 = vmatprep.subr.mxu0 0.0
        %1341 = vmatpush1.xpose.msra.mxu0 0.0
        %1342 = vmatprep.subr.mxu0 0.0
        %1343 = vmatpush1.xpose.msra.mxu0 0.0
        %1344 = vmatprep.subr.mxu0 0.0
        %1345 = vmatpush1.xpose.msra.mxu0 0.0
        %1346 = vmatprep.subr.mxu0 0.0
        %1347 = vmatpush1.xpose.msra.mxu0 0.0
        %1348 = vmatprep.subr.mxu0 0.0
        %1349 = vmatpush1.xpose.msra.mxu0 0.0
        %1350 = vmatprep.subr.mxu0 0.0
        %1351 = vmatpush1.xpose.msra.mxu0 0.0
        %1352 = vmatprep.subr.mxu0 0.0
        %1353 = vmatpush1.xpose.msra.mxu0 0.0
        %1354 = vmatprep.subr.mxu0 0.0
        %1355 = vmatpush1.xpose.msra.mxu0 0.0
        %1356 = vmatprep.subr.mxu0 0.0
        %1357 = vmatpush1.xpose.msra.mxu0 0.0
        %1358 = vmatprep.subr.mxu0 0.0
        %1359 = vmatpush1.xpose.msra.mxu0 0.0
        %1360 = vmatprep.subr.mxu0 0.0
        %1361 = vmatpush1.xpose.msra.mxu0 0.0
        %1362 = vmatprep.subr.mxu0 0.0
        %1363 = vmatpush1.xpose.msra.mxu0 0.0
        %1364 = vmatprep.mubr.f32.mxu0 0.0
        %1365 = vmatmul.mubr.f32.gmra.mrb[0].mxu0 %v1295
        %v1366 = vpop.f32.mrb[0].mxu0
        %v1367 = vadd.f32 0.0, %v1366
        %v1368 = vpop.f32.mrb[0].mxu0
        %1369 = vdwg.mxu0
        %v1370 = vmul.f32 %v1367, 0.17677669
        %v1371 = vmax.f32 %v1370, 0.0
        %v1372 = vadd.f32 %v1293, 1e-06
        %v1373 = vlog2.pop %v1372
        %v1374 = vmul.f32 %v1373, 0.6931472
        %v1375 = vsub.f32 0.0, %v1374
        %v1376 = vadd.f32 %v1375, 1e-06
        %v1377 = vlog2.pop %v1376
        %v1378 = vmul.f32 %v1377, 0.6931472
        %v1379 = vsub.f32 0.0, %v1378
        %v1380 = vlog2.pop %v1371
        %v1381 = vmul.f32 %v1380, 0.6931472
        %v1382 = vadd.f32 %v1381, %v1379
        %v1383 = vmul.f32 %v1382, 1.3333334
        %v1384 = vsel %vm572, %v1383, -inf
        %1385 = vmax.xlane.f32.xlu0 %v1384
        %v1386 = vpop.xlane.xlu0 %1385
        %vm1387 = vcmp.gt.f32.partialorder %v1386, -inf
        %v1388 = vsel %vm1387, %v1386, 0.0
        %v1389 = vsub.f32 %v1383, %v1388
        %v1390 = vmul.f32 %v1389, 1.442695
        %v1391 = vpow.pop %v1390
        %v1392 = vsel %vm572, %v1391, 0.0
        %1393 = vadd.xlane.f32.xlu0 %v1392
        %v1394 = vpop.xlane.xlu0 %1393
        %v1395 = vlog2.pop %v1394
        %v1396 = vmul.f32 %v1395, 0.6931472
        %v1397 = vadd.f32 %v1388, %v1396
        %v1398 = vsub.f32 %v1383, %v1397
        %v1399 = vsel %vm572, %v1398, -inf
        %v1400 = vrot.slane %v1399, 4
        %v1401 = vmax.f32 %v1399, %v1400
        %v1402 = vrot.slane %v1401, 2
        %v1403 = vmax.f32 %v1401, %v1402
        %v1404 = vrot.slane %v1403, 1
        %v1405 = vmax.f32 %v1403, %v1404
        %vm1406 = vcmp.gt.f32.partialorder %v1405, -inf
        %v1407 = vsel %vm1406, %v1405, 0.0
        %v1408 = vsub.f32 %v1398, %v1407
        %v1409 = vmul.f32 %v1408, 1.442695
        %v1410 = vpow.pop %v1409
        %v1411 = vsel %vm572, %v1410, 0.0
        %v1412 = vrot.slane %v1411, 4
        %v1413 = vadd.f32 %v1411, %v1412
        %v1414 = vrot.slane %v1413, 2
        %v1415 = vadd.f32 %v1413, %v1414
        %v1416 = vrot.slane %v1415, 1
        %v1417 = vadd.f32 %v1415, %v1416
        %v1418 = vlog2.pop %v1417
        %v1419 = vmul.f32 %v1418, 0.6931472
        %v1420 = vadd.f32 %v1407, %v1419
        %v1421 = vsub.f32 %v1398, %v1420
        %v1422 = vsel %vm572, %v1421, -inf
        %1423 = vmax.xlane.f32.xlu0 %v1422
        %v1424 = vpop.xlane.xlu0 %1423
        %vm1425 = vcmp.gt.f32.partialorder %v1424, -inf
        %v1426 = vsel %vm1425, %v1424, 0.0
        %v1427 = vsub.f32 %v1421, %v1426
        %v1428 = vmul.f32 %v1427, 1.442695
        %v1429 = vpow.pop %v1428
        %v1430 = vsel %vm572, %v1429, 0.0
        %1431 = vadd.xlane.f32.xlu0 %v1430
        %v1432 = vpop.xlane.xlu0 %1431
        %v1433 = vlog2.pop %v1432
        %v1434 = vmul.f32 %v1433, 0.6931472
        %v1435 = vadd.f32 %v1426, %v1434
        %v1436 = vsub.f32 %v1421, %v1435
        %v1437 = vsel %vm572, %v1436, -inf
        %v1438 = vrot.slane %v1437, 4
        %v1439 = vmax.f32 %v1437, %v1438
        %v1440 = vrot.slane %v1439, 2
        %v1441 = vmax.f32 %v1439, %v1440
        %v1442 = vrot.slane %v1441, 1
        %v1443 = vmax.f32 %v1441, %v1442
        %vm1444 = vcmp.gt.f32.partialorder %v1443, -inf
        %v1445 = vsel %vm1444, %v1443, 0.0
        %v1446 = vsub.f32 %v1436, %v1445
        %v1447 = vmul.f32 %v1446, 1.442695
        %v1448 = vpow.pop %v1447
        %v1449 = vsel %vm572, %v1448, 0.0
        %v1450 = vrot.slane %v1449, 4
        %v1451 = vadd.f32 %v1449, %v1450
        %v1452 = vrot.slane %v1451, 2
        %v1453 = vadd.f32 %v1451, %v1452
        %v1454 = vrot.slane %v1453, 1
        %v1455 = vadd.f32 %v1453, %v1454
        %v1456 = vlog2.pop %v1455
        %v1457 = vmul.f32 %v1456, 0.6931472
        %v1458 = vadd.f32 %v1445, %v1457
        %v1459 = vsub.f32 %v1436, %v1458
        %v1460 = vsel %vm572, %v1459, -inf
        %1461 = vmax.xlane.f32.xlu0 %v1460
        %v1462 = vpop.xlane.xlu0 %1461
        %vm1463 = vcmp.gt.f32.partialorder %v1462, -inf
        %v1464 = vsel %vm1463, %v1462, 0.0
        %v1465 = vsub.f32 %v1459, %v1464
        %v1466 = vmul.f32 %v1465, 1.442695
        %v1467 = vpow.pop %v1466
        %v1468 = vsel %vm572, %v1467, 0.0
        %1469 = vadd.xlane.f32.xlu0 %v1468
        %v1470 = vpop.xlane.xlu0 %1469
        %v1471 = vlog2.pop %v1470
        %v1472 = vmul.f32 %v1471, 0.6931472
        %v1473 = vadd.f32 %v1464, %v1472
        %v1474 = vsub.f32 %v1459, %v1473
        %v1475 = vsel %vm572, %v1474, -inf
        %v1476 = vrot.slane %v1475, 4
        %v1477 = vmax.f32 %v1475, %v1476
        %v1478 = vrot.slane %v1477, 2
        %v1479 = vmax.f32 %v1477, %v1478
        %v1480 = vrot.slane %v1479, 1
        %v1481 = vmax.f32 %v1479, %v1480
        %vm1482 = vcmp.gt.f32.partialorder %v1481, -inf
        %v1483 = vsel %vm1482, %v1481, 0.0
        %v1484 = vsub.f32 %v1474, %v1483
        %v1485 = vmul.f32 %v1484, 1.442695
        %v1486 = vpow.pop %v1485
        %v1487 = vsel %vm572, %v1486, 0.0
        %v1488 = vrot.slane %v1487, 4
        %v1489 = vadd.f32 %v1487, %v1488
        %v1490 = vrot.slane %v1489, 2
        %v1491 = vadd.f32 %v1489, %v1490
        %v1492 = vrot.slane %v1491, 1
        %v1493 = vadd.f32 %v1491, %v1492
        %v1494 = vlog2.pop %v1493
        %v1495 = vmul.f32 %v1494, 0.6931472
        %v1496 = vadd.f32 %v1483, %v1495
        %v1497 = vsub.f32 %v1474, %v1496
        %v1498 = vsel %vm572, %v1497, -inf
        %1499 = vmax.xlane.f32.xlu0 %v1498
        %v1500 = vpop.xlane.xlu0 %1499
        %vm1501 = vcmp.gt.f32.partialorder %v1500, -inf
        %v1502 = vsel %vm1501, %v1500, 0.0
        %v1503 = vsub.f32 %v1497, %v1502
        %v1504 = vmul.f32 %v1503, 1.442695
        %v1505 = vpow.pop %v1504
        %v1506 = vsel %vm572, %v1505, 0.0
        %1507 = vadd.xlane.f32.xlu0 %v1506
        %v1508 = vpop.xlane.xlu0 %1507
        %v1509 = vlog2.pop %v1508
        %v1510 = vmul.f32 %v1509, 0.6931472
        %v1511 = vadd.f32 %v1502, %v1510
        %v1512 = vsub.f32 %v1497, %v1511
        %v1513 = vsel %vm572, %v1512, -inf
        %v1514 = vrot.slane %v1513, 4
        %v1515 = vmax.f32 %v1513, %v1514
        %v1516 = vrot.slane %v1515, 2
        %v1517 = vmax.f32 %v1515, %v1516
        %v1518 = vrot.slane %v1517, 1
        %v1519 = vmax.f32 %v1517, %v1518
        %vm1520 = vcmp.gt.f32.partialorder %v1519, -inf
        %v1521 = vsel %vm1520, %v1519, 0.0
        %v1522 = vsub.f32 %v1512, %v1521
        %v1523 = vmul.f32 %v1522, 1.442695
        %v1524 = vpow.pop %v1523
        %v1525 = vsel %vm572, %v1524, 0.0
        %v1526 = vrot.slane %v1525, 4
        %v1527 = vadd.f32 %v1525, %v1526
        %v1528 = vrot.slane %v1527, 2
        %v1529 = vadd.f32 %v1527, %v1528
        %v1530 = vrot.slane %v1529, 1
        %v1531 = vadd.f32 %v1529, %v1530
        %v1532 = vlog2.pop %v1531
        %v1533 = vmul.f32 %v1532, 0.6931472
        %v1534 = vadd.f32 %v1521, %v1533
        %v1535 = vsub.f32 %v1512, %v1534
        %v1536 = vsel %vm572, %v1535, -inf
        %1537 = vmax.xlane.f32.xlu0 %v1536
        %v1538 = vpop.xlane.xlu0 %1537
        %vm1539 = vcmp.gt.f32.partialorder %v1538, -inf
        %v1540 = vsel %vm1539, %v1538, 0.0
        %v1541 = vsub.f32 %v1535, %v1540
        %v1542 = vmul.f32 %v1541, 1.442695
        %v1543 = vpow.pop %v1542
        %v1544 = vsel %vm572, %v1543, 0.0
        %1545 = vadd.xlane.f32.xlu0 %v1544
        %v1546 = vpop.xlane.xlu0 %1545
        %v1547 = vlog2.pop %v1546
        %v1548 = vmul.f32 %v1547, 0.6931472
        %v1549 = vadd.f32 %v1540, %v1548
        %v1550 = vsub.f32 %v1535, %v1549
        %v1551 = vsel %vm572, %v1550, -inf
        %v1552 = vrot.slane %v1551, 4
        %v1553 = vmax.f32 %v1551, %v1552
        %v1554 = vrot.slane %v1553, 2
        %v1555 = vmax.f32 %v1553, %v1554
        %v1556 = vrot.slane %v1555, 1
        %v1557 = vmax.f32 %v1555, %v1556
        %vm1558 = vcmp.gt.f32.partialorder %v1557, -inf
        %v1559 = vsel %vm1558, %v1557, 0.0
        %v1560 = vsub.f32 %v1550, %v1559
        %v1561 = vmul.f32 %v1560, 1.442695
        %v1562 = vpow.pop %v1561
        %v1563 = vsel %vm572, %v1562, 0.0
        %v1564 = vrot.slane %v1563, 4
        %v1565 = vadd.f32 %v1563, %v1564
        %v1566 = vrot.slane %v1565, 2
        %v1567 = vadd.f32 %v1565, %v1566
        %v1568 = vrot.slane %v1567, 1
        %v1569 = vadd.f32 %v1567, %v1568
        %v1570 = vlog2.pop %v1569
        %v1571 = vmul.f32 %v1570, 0.6931472
        %v1572 = vadd.f32 %v1559, %v1571
        %v1573 = vsub.f32 %v1550, %v1572
        %v1574 = vmul.f32 %v1573, 1.442695
        %v1575 = vpow.pop %v1574
        %s1577 = vtos %v1575
        %v1578 = vstv %s1577
        %v1580 = vmul.f32 %v1578, %v1275
        %v1581 = vmul.f32 %v1578, %v1276
        %v1582 = vrot.slane %v1575, 1
        %s1583 = vtos %v1582
        %v1584 = vstv %s1583
        %v1586 = vmul.f32 %v1584, %v1277
        %v1587 = vmul.f32 %v1584, %v1278
        %v1588 = vadd.f32 %v1580, %v1586
        %v1589 = vadd.f32 %v1581, %v1587
        %v1590 = vrot.slane %v1575, 2
        %s1591 = vtos %v1590
        %v1592 = vstv %s1591
        %v1594 = vmul.f32 %v1592, %v1279
        %v1595 = vmul.f32 %v1592, %v1280
        %v1596 = vadd.f32 %v1588, %v1594
        %v1597 = vadd.f32 %v1589, %v1595
        %1598 = vrot.lane.b32.xlu0 %v1575, 127
        %v1599 = vpop.permute.xlu0 %1598
        %s1600 = vtos %v1599
        %v1601 = vstv %s1600
        %v1603 = vmul.f32 %v1601, %v1275
        %v1604 = vmul.f32 %v1601, %v1276
        %1605 = vrot.lane.b32.xlu0 %v1582, 127
        %v1606 = vpop.permute.xlu0 %1605
        %s1607 = vtos %v1606
        %v1608 = vstv %s1607
        %v1610 = vmul.f32 %v1608, %v1277
        %v1611 = vmul.f32 %v1608, %v1278
        %v1612 = vadd.f32 %v1603, %v1610
        %v1613 = vadd.f32 %v1604, %v1611
        %1614 = vrot.lane.b32.xlu0 %v1590, 127
        %v1615 = vpop.permute.xlu0 %1614
        %s1616 = vtos %v1615
        %v1617 = vstv %s1616
        %v1619 = vmul.f32 %v1617, %v1279
        %v1620 = vmul.f32 %v1617, %v1280
        %v1621 = vadd.f32 %v1612, %v1619
        %v1622 = vadd.f32 %v1613, %v1620
        %1623 = vrot.lane.b32.xlu0 %v1575, 126
        %v1624 = vpop.permute.xlu0 %1623
        %s1625 = vtos %v1624
        %v1626 = vstv %s1625
        %v1628 = vmul.f32 %v1626, %v1275
        %v1629 = vmul.f32 %v1626, %v1276
        %1630 = vrot.lane.b32.xlu0 %v1582, 126
        %v1631 = vpop.permute.xlu0 %1630
        %s1632 = vtos %v1631
        %v1633 = vstv %s1632
        %v1635 = vmul.f32 %v1633, %v1277
        %v1636 = vmul.f32 %v1633, %v1278
        %v1637 = vadd.f32 %v1628, %v1635
        %v1638 = vadd.f32 %v1629, %v1636
        %1639 = vrot.lane.b32.xlu0 %v1590, 126
        %v1640 = vpop.permute.xlu0 %1639
        %s1641 = vtos %v1640
        %v1642 = vstv %s1641
        %v1644 = vmul.f32 %v1642, %v1279
        %v1645 = vmul.f32 %v1642, %v1280
        %v1646 = vadd.f32 %v1637, %v1644
        %v1647 = vadd.f32 %v1638, %v1645
        %v1648 = vmul.f32 %v1578, %v1282
        %v1649 = vmul.f32 %v1578, %v1283
        %v1650 = vmul.f32 %v1584, %v1284
        %v1651 = vmul.f32 %v1584, %v1285
        %v1652 = vadd.f32 %v1648, %v1650
        %v1653 = vadd.f32 %v1649, %v1651
        %v1654 = vmul.f32 %v1592, %v1286
        %v1655 = vmul.f32 %v1592, %v1287
        %v1656 = vadd.f32 %v1652, %v1654
        %v1657 = vadd.f32 %v1653, %v1655
        %v1658 = vmul.f32 %v1601, %v1282
        %v1659 = vmul.f32 %v1601, %v1283
        %v1660 = vmul.f32 %v1608, %v1284
        %v1661 = vmul.f32 %v1608, %v1285
        %v1662 = vadd.f32 %v1658, %v1660
        %v1663 = vadd.f32 %v1659, %v1661
        %v1664 = vmul.f32 %v1617, %v1286
        %v1665 = vmul.f32 %v1617, %v1287
        %v1666 = vadd.f32 %v1662, %v1664
        %v1667 = vadd.f32 %v1663, %v1665
        %v1668 = vmul.f32 %v1626, %v1282
        %v1669 = vmul.f32 %v1626, %v1283
        %v1670 = vmul.f32 %v1633, %v1284
        %v1671 = vmul.f32 %v1633, %v1285
        %v1672 = vadd.f32 %v1668, %v1670
        %v1673 = vadd.f32 %v1669, %v1671
        %v1674 = vmul.f32 %v1642, %v1286
        %v1675 = vmul.f32 %v1642, %v1287
        %v1676 = vadd.f32 %v1672, %v1674
        %v1677 = vadd.f32 %v1673, %v1675
        %v1678 = vmul.f32 %v1268, 1.3333334
        %v1679 = vmul.f32 %v1269, 1.3333334
        %v1680 = vmul.f32 %v1270, 1.3333334
        %v1681 = vmul.f32 %v1271, 1.3333334
        %v1682 = vmul.f32 %v1272, 1.3333334
        %v1683 = vmul.f32 %v1273, 1.3333334
        %v1684 = vpack.c.bf16 %v1679, %v1678
        %v1685 = vpack.c.bf16 %v1681, %v1680
        %v1686 = vpack.c.bf16 %v1683, %v1682
        %v1687 = vpack.c.bf16 %v1597, %v1596
        %v1688 = vpack.c.bf16 %v1622, %v1621
        %v1689 = vpack.c.bf16 %v1647, %v1646
        %v1691 = vsel %vm879, %v1684, 0
        %v1694 = vsel %vm879, %v1687, 0
        %1696 = vmatprep.subr.bf16.mxu0 0
        %1697 = vmatpush1.bf16.xpose.msra.mxu0 %v1694
        %1698 = vmatprep.subr.bf16.mxu0 0
        %1699 = vmatpush1.bf16.xpose.msra.mxu0 0
        %1700 = vmatprep.subr.bf16.mxu0 0
        %1701 = vmatpush1.bf16.xpose.msra.mxu0 0
        %1702 = vmatprep.subr.bf16.mxu0 0
        %1703 = vmatpush1.bf16.xpose.msra.mxu0 0
        %1704 = vmatprep.subr.bf16.mxu0 0
        %1705 = vmatpush1.bf16.xpose.msra.mxu0 0
        %1706 = vmatprep.subr.bf16.mxu0 0
        %1707 = vmatpush1.bf16.xpose.msra.mxu0 0
        %1708 = vmatprep.subr.bf16.mxu0 0
        %1709 = vmatpush1.bf16.xpose.msra.mxu0 0
        %1710 = vmatprep.subr.bf16.mxu0 0
        %1711 = vmatpush1.bf16.xpose.msra.mxu0 0
        %1712 = vmatprep.subr.bf16.mxu0 0
        %1713 = vmatpush1.bf16.xpose.msra.mxu0 0
        %1714 = vmatprep.subr.bf16.mxu0 0
        %1715 = vmatpush1.bf16.xpose.msra.mxu0 0
        %1716 = vmatprep.subr.bf16.mxu0 0
        %1717 = vmatpush1.bf16.xpose.msra.mxu0 0
        %1718 = vmatprep.subr.bf16.mxu0 0
        %1719 = vmatpush1.bf16.xpose.msra.mxu0 0
        %1720 = vmatprep.subr.bf16.mxu0 0
        %1721 = vmatpush1.bf16.xpose.msra.mxu0 0
        %1722 = vmatprep.subr.bf16.mxu0 0
        %1723 = vmatpush1.bf16.xpose.msra.mxu0 0
        %1724 = vmatprep.subr.bf16.mxu0 0
        %1725 = vmatpush1.bf16.xpose.msra.mxu0 0
        %1726 = vmatprep.subr.bf16.mxu0 0
        %1727 = vmatpush1.bf16.xpose.msra.mxu0 0
        %1728 = vmatprep.mubr.bf16.mxu0 0
        %1729 = vmatmul.mubr.bf16.gmra.mrb[0].mxu0 %v1691
        %v1730 = vpop.f32.mrb[0].mxu0
        %v1731 = vadd.f32 0.0, %v1730
        %v1732 = vpop.f32.mrb[0].mxu0
        %v1733 = vpop.f32.mrb[0].mxu0
        %v1734 = vadd.f32 0.0, %v1733
        %v1735 = vpop.f32.mrb[0].mxu0
        %1736 = vdwg.mxu0
        %v1738 = vsel %vm879, %v1685, 0
        %v1741 = vsel %vm879, %v1688, 0
        %1743 = vmatprep.subr.bf16.mxu0 0
        %1744 = vmatpush1.bf16.xpose.msra.mxu0 %v1741
        %1745 = vmatprep.subr.bf16.mxu0 0
        %1746 = vmatpush1.bf16.xpose.msra.mxu0 0
        %1747 = vmatprep.subr.bf16.mxu0 0
        %1748 = vmatpush1.bf16.xpose.msra.mxu0 0
        %1749 = vmatprep.subr.bf16.mxu0 0
        %1750 = vmatpush1.bf16.xpose.msra.mxu0 0
        %1751 = vmatprep.subr.bf16.mxu0 0
        %1752 = vmatpush1.bf16.xpose.msra.mxu0 0
        %1753 = vmatprep.subr.bf16.mxu0 0
        %1754 = vmatpush1.bf16.xpose.msra.mxu0 0
        %1755 = vmatprep.subr.bf16.mxu0 0
        %1756 = vmatpush1.bf16.xpose.msra.mxu0 0
        %1757 = vmatprep.subr.bf16.mxu0 0
        %1758 = vmatpush1.bf16.xpose.msra.mxu0 0
        %1759 = vmatprep.subr.bf16.mxu0 0
        %1760 = vmatpush1.bf16.xpose.msra.mxu0 0
        %1761 = vmatprep.subr.bf16.mxu0 0
        %1762 = vmatpush1.bf16.xpose.msra.mxu0 0
        %1763 = vmatprep.subr.bf16.mxu0 0
        %1764 = vmatpush1.bf16.xpose.msra.mxu0 0
        %1765 = vmatprep.subr.bf16.mxu0 0
        %1766 = vmatpush1.bf16.xpose.msra.mxu0 0
        %1767 = vmatprep.subr.bf16.mxu0 0
        %1768 = vmatpush1.bf16.xpose.msra.mxu0 0
        %1769 = vmatprep.subr.bf16.mxu0 0
        %1770 = vmatpush1.bf16.xpose.msra.mxu0 0
        %1771 = vmatprep.subr.bf16.mxu0 0
        %1772 = vmatpush1.bf16.xpose.msra.mxu0 0
        %1773 = vmatprep.subr.bf16.mxu0 0
        %1774 = vmatpush1.bf16.xpose.msra.mxu0 0
        %1775 = vmatprep.mubr.bf16.mxu0 0
        %1776 = vmatmul.mubr.bf16.gmra.mrb[0].mxu0 %v1738
        %v1777 = vpop.f32.mrb[0].mxu0
        %v1778 = vadd.f32 0.0, %v1777
        %v1779 = vpop.f32.mrb[0].mxu0
        %v1780 = vpop.f32.mrb[0].mxu0
        %v1781 = vadd.f32 0.0, %v1780
        %v1782 = vpop.f32.mrb[0].mxu0
        %1783 = vdwg.mxu0
        %v1785 = vsel %vm879, %v1686, 0
        %v1788 = vsel %vm879, %v1689, 0
        %1790 = vmatprep.subr.bf16.mxu0 0
        %1791 = vmatpush1.bf16.xpose.msra.mxu0 %v1788
        %1792 = vmatprep.subr.bf16.mxu0 0
        %1793 = vmatpush1.bf16.xpose.msra.mxu0 0
        %1794 = vmatprep.subr.bf16.mxu0 0
        %1795 = vmatpush1.bf16.xpose.msra.mxu0 0
        %1796 = vmatprep.subr.bf16.mxu0 0
        %1797 = vmatpush1.bf16.xpose.msra.mxu0 0
        %1798 = vmatprep.subr.bf16.mxu0 0
        %1799 = vmatpush1.bf16.xpose.msra.mxu0 0
        %1800 = vmatprep.subr.bf16.mxu0 0
        %1801 = vmatpush1.bf16.xpose.msra.mxu0 0
        %1802 = vmatprep.subr.bf16.mxu0 0
        %1803 = vmatpush1.bf16.xpose.msra.mxu0 0
        %1804 = vmatprep.subr.bf16.mxu0 0
        %1805 = vmatpush1.bf16.xpose.msra.mxu0 0
        %1806 = vmatprep.subr.bf16.mxu0 0
        %1807 = vmatpush1.bf16.xpose.msra.mxu0 0
        %1808 = vmatprep.subr.bf16.mxu0 0
        %1809 = vmatpush1.bf16.xpose.msra.mxu0 0
        %1810 = vmatprep.subr.bf16.mxu0 0
        %1811 = vmatpush1.bf16.xpose.msra.mxu0 0
        %1812 = vmatprep.subr.bf16.mxu0 0
        %1813 = vmatpush1.bf16.xpose.msra.mxu0 0
        %1814 = vmatprep.subr.bf16.mxu0 0
        %1815 = vmatpush1.bf16.xpose.msra.mxu0 0
        %1816 = vmatprep.subr.bf16.mxu0 0
        %1817 = vmatpush1.bf16.xpose.msra.mxu0 0
        %1818 = vmatprep.subr.bf16.mxu0 0
        %1819 = vmatpush1.bf16.xpose.msra.mxu0 0
        %1820 = vmatprep.subr.bf16.mxu0 0
        %1821 = vmatpush1.bf16.xpose.msra.mxu0 0
        %1822 = vmatprep.mubr.bf16.mxu0 0
        %1823 = vmatmul.mubr.bf16.gmra.mrb[0].mxu0 %v1785
        %v1824 = vpop.f32.mrb[0].mxu0
        %v1825 = vadd.f32 0.0, %v1824
        %v1826 = vpop.f32.mrb[0].mxu0
        %v1827 = vpop.f32.mrb[0].mxu0
        %v1828 = vadd.f32 0.0, %v1827
        %v1829 = vpop.f32.mrb[0].mxu0
        %1830 = vdwg.mxu0
        %v1831 = vsel %vm481, %v1731, -inf
        %1832 = vmax.xlane.f32.xlu0 %v1831
        %v1833 = vpop.xlane.xlu0 %1832
        %v1834 = vsel %vm481, %v1734, -inf
        %1835 = vmax.xlane.f32.xlu0 %v1834
        %v1836 = vpop.xlane.xlu0 %1835
        %v1837 = vsel %vm481, %v1778, -inf
        %1838 = vmax.xlane.f32.xlu0 %v1837
        %v1839 = vpop.xlane.xlu0 %1838
        %v1840 = vsel %vm481, %v1781, -inf
        %1841 = vmax.xlane.f32.xlu0 %v1840
        %v1842 = vpop.xlane.xlu0 %1841
        %v1843 = vsel %vm481, %v1825, -inf
        %1844 = vmax.xlane.f32.xlu0 %v1843
        %v1845 = vpop.xlane.xlu0 %1844
        %v1846 = vsel %vm481, %v1828, -inf
        %1847 = vmax.xlane.f32.xlu0 %v1846
        %v1848 = vpop.xlane.xlu0 %1847
        %v1849 = vsub.f32 %v1731, %v1833
        %v1850 = vsub.f32 %v1734, %v1836
        %v1851 = vsub.f32 %v1778, %v1839
        %v1852 = vsub.f32 %v1781, %v1842
        %v1853 = vsub.f32 %v1825, %v1845
        %v1854 = vsub.f32 %v1828, %v1848
        %v1855 = vmul.f32 %v1849, 1.442695
        %v1856 = vpow.pop %v1855
        %v1857 = vmul.f32 %v1850, 1.442695
        %v1858 = vpow.pop %v1857
        %v1859 = vmul.f32 %v1851, 1.442695
        %v1860 = vpow.pop %v1859
        %v1861 = vmul.f32 %v1852, 1.442695
        %v1862 = vpow.pop %v1861
        %v1863 = vmul.f32 %v1853, 1.442695
        %v1864 = vpow.pop %v1863
        %v1865 = vmul.f32 %v1854, 1.442695
        %v1866 = vpow.pop %v1865
        %v1867 = vsel %vm481, %v1856, 0.0
        %1868 = vadd.xlane.f32.xlu0 %v1867
        %v1869 = vpop.xlane.xlu0 %1868
        %v1870 = vsel %vm481, %v1858, 0.0
        %1871 = vadd.xlane.f32.xlu0 %v1870
        %v1872 = vpop.xlane.xlu0 %1871
        %v1873 = vsel %vm481, %v1860, 0.0
        %1874 = vadd.xlane.f32.xlu0 %v1873
        %v1875 = vpop.xlane.xlu0 %1874
        %v1876 = vsel %vm481, %v1862, 0.0
        %1877 = vadd.xlane.f32.xlu0 %v1876
        %v1878 = vpop.xlane.xlu0 %1877
        %v1879 = vsel %vm481, %v1864, 0.0
        %1880 = vadd.xlane.f32.xlu0 %v1879
        %v1881 = vpop.xlane.xlu0 %1880
        %v1882 = vsel %vm481, %v1866, 0.0
        %1883 = vadd.xlane.f32.xlu0 %v1882
        %v1884 = vpop.xlane.xlu0 %1883
        %v1885 = vrcp.pop %v1869
        %v1886 = vrcp.pop %v1872
        %v1887 = vrcp.pop %v1875
        %v1888 = vrcp.pop %v1878
        %v1889 = vrcp.pop %v1881
        %v1890 = vrcp.pop %v1884
        %v1891 = vmul.f32 %v1856, %v1885
        %v1892 = vmul.f32 %v1858, %v1886
        %v1893 = vmul.f32 %v1860, %v1887
        %v1894 = vmul.f32 %v1862, %v1888
        %v1895 = vmul.f32 %v1864, %v1889
        %v1896 = vmul.f32 %v1866, %v1890
        %v1897 = vpack.c.bf16 %v1892, %v1891
        %v1898 = vpack.c.bf16 %v1894, %v1893
        %v1899 = vpack.c.bf16 %v1896, %v1895
        %v1900 = vpack.c.bf16 %v1657, %v1656
        %v1901 = vpack.c.bf16 %v1667, %v1666
        %v1902 = vpack.c.bf16 %v1677, %v1676
        %v1904 = vsel %vm481, %v1897, 0
        %1906 = vmatprep.subr.bf16.mxu0 0
        %1907 = vmatpush1.bf16.msra.mxu0 %v1900
        %1908 = vmatprep.subr.bf16.mxu0 0
        %1909 = vmatpush1.bf16.msra.mxu0 0
        %1910 = vmatprep.subr.bf16.mxu0 0
        %1911 = vmatpush1.bf16.msra.mxu0 0
        %1912 = vmatprep.subr.bf16.mxu0 0
        %1913 = vmatpush1.bf16.msra.mxu0 0
        %1914 = vmatprep.subr.bf16.mxu0 0
        %1915 = vmatpush1.bf16.msra.mxu0 0
        %1916 = vmatprep.subr.bf16.mxu0 0
        %1917 = vmatpush1.bf16.msra.mxu0 0
        %1918 = vmatprep.subr.bf16.mxu0 0
        %1919 = vmatpush1.bf16.msra.mxu0 0
        %1920 = vmatprep.subr.bf16.mxu0 0
        %1921 = vmatpush1.bf16.msra.mxu0 0
        %1922 = vmatprep.subr.bf16.mxu0 0
        %1923 = vmatpush1.bf16.msra.mxu0 0
        %1924 = vmatprep.subr.bf16.mxu0 0
        %1925 = vmatpush1.bf16.msra.mxu0 0
        %1926 = vmatprep.subr.bf16.mxu0 0
        %1927 = vmatpush1.bf16.msra.mxu0 0
        %1928 = vmatprep.subr.bf16.mxu0 0
        %1929 = vmatpush1.bf16.msra.mxu0 0
        %1930 = vmatprep.subr.bf16.mxu0 0
        %1931 = vmatpush1.bf16.msra.mxu0 0
        %1932 = vmatprep.subr.bf16.mxu0 0
        %1933 = vmatpush1.bf16.msra.mxu0 0
        %1934 = vmatprep.subr.bf16.mxu0 0
        %1935 = vmatpush1.bf16.msra.mxu0 0
        %1936 = vmatprep.subr.bf16.mxu0 0
        %1937 = vmatpush1.bf16.msra.mxu0 0
        %1938 = vmatprep.mubr.bf16.mxu0 0
        %1939 = vmatmul.mubr.bf16.gmra.mrb[0].mxu0 %v1904
        %v1940 = vpop.f32.mrb[0].mxu0
        %v1941 = vadd.f32 0.0, %v1940
        %v1942 = vpop.f32.mrb[0].mxu0
        %v1943 = vpop.f32.mrb[0].mxu0
        %v1944 = vadd.f32 0.0, %v1943
        %v1945 = vpop.f32.mrb[0].mxu0
        %1946 = vdwg.mxu0
        %v1948 = vsel %vm481, %v1898, 0
        %1950 = vmatprep.subr.bf16.mxu0 0
        %1951 = vmatpush1.bf16.msra.mxu0 %v1901
        %1952 = vmatprep.subr.bf16.mxu0 0
        %1953 = vmatpush1.bf16.msra.mxu0 0
        %1954 = vmatprep.subr.bf16.mxu0 0
        %1955 = vmatpush1.bf16.msra.mxu0 0
        %1956 = vmatprep.subr.bf16.mxu0 0
        %1957 = vmatpush1.bf16.msra.mxu0 0
        %1958 = vmatprep.subr.bf16.mxu0 0
        %1959 = vmatpush1.bf16.msra.mxu0 0
        %1960 = vmatprep.subr.bf16.mxu0 0
        %1961 = vmatpush1.bf16.msra.mxu0 0
        %1962 = vmatprep.subr.bf16.mxu0 0
        %1963 = vmatpush1.bf16.msra.mxu0 0
        %1964 = vmatprep.subr.bf16.mxu0 0
        %1965 = vmatpush1.bf16.msra.mxu0 0
        %1966 = vmatprep.subr.bf16.mxu0 0
        %1967 = vmatpush1.bf16.msra.mxu0 0
        %1968 = vmatprep.subr.bf16.mxu0 0
        %1969 = vmatpush1.bf16.msra.mxu0 0
        %1970 = vmatprep.subr.bf16.mxu0 0
        %1971 = vmatpush1.bf16.msra.mxu0 0
        %1972 = vmatprep.subr.bf16.mxu0 0
        %1973 = vmatpush1.bf16.msra.mxu0 0
        %1974 = vmatprep.subr.bf16.mxu0 0
        %1975 = vmatpush1.bf16.msra.mxu0 0
        %1976 = vmatprep.subr.bf16.mxu0 0
        %1977 = vmatpush1.bf16.msra.mxu0 0
        %1978 = vmatprep.subr.bf16.mxu0 0
        %1979 = vmatpush1.bf16.msra.mxu0 0
        %1980 = vmatprep.subr.bf16.mxu0 0
        %1981 = vmatpush1.bf16.msra.mxu0 0
        %1982 = vmatprep.mubr.bf16.mxu0 0
        %1983 = vmatmul.mubr.bf16.gmra.mrb[0].mxu0 %v1948
        %v1984 = vpop.f32.mrb[0].mxu0
        %v1985 = vadd.f32 0.0, %v1984
        %v1986 = vpop.f32.mrb[0].mxu0
        %v1987 = vpop.f32.mrb[0].mxu0
        %v1988 = vadd.f32 0.0, %v1987
        %v1989 = vpop.f32.mrb[0].mxu0
        %1990 = vdwg.mxu0
        %v1992 = vsel %vm481, %v1899, 0
        %1994 = vmatprep.subr.bf16.mxu0 0
        %1995 = vmatpush1.bf16.msra.mxu0 %v1902
        %1996 = vmatprep.subr.bf16.mxu0 0
        %1997 = vmatpush1.bf16.msra.mxu0 0
        %1998 = vmatprep.subr.bf16.mxu0 0
        %1999 = vmatpush1.bf16.msra.mxu0 0
        %2000 = vmatprep.subr.bf16.mxu0 0
        %2001 = vmatpush1.bf16.msra.mxu0 0
        %2002 = vmatprep.subr.bf16.mxu0 0
        %2003 = vmatpush1.bf16.msra.mxu0 0
        %2004 = vmatprep.subr.bf16.mxu0 0
        %2005 = vmatpush1.bf16.msra.mxu0 0
        %2006 = vmatprep.subr.bf16.mxu0 0
        %2007 = vmatpush1.bf16.msra.mxu0 0
        %2008 = vmatprep.subr.bf16.mxu0 0
        %2009 = vmatpush1.bf16.msra.mxu0 0
        %2010 = vmatprep.subr.bf16.mxu0 0
        %2011 = vmatpush1.bf16.msra.mxu0 0
        %2012 = vmatprep.subr.bf16.mxu0 0
        %2013 = vmatpush1.bf16.msra.mxu0 0
        %2014 = vmatprep.subr.bf16.mxu0 0
        %2015 = vmatpush1.bf16.msra.mxu0 0
        %2016 = vmatprep.subr.bf16.mxu0 0
        %2017 = vmatpush1.bf16.msra.mxu0 0
        %2018 = vmatprep.subr.bf16.mxu0 0
        %2019 = vmatpush1.bf16.msra.mxu0 0
        %2020 = vmatprep.subr.bf16.mxu0 0
        %2021 = vmatpush1.bf16.msra.mxu0 0
        %2022 = vmatprep.subr.bf16.mxu0 0
        %2023 = vmatpush1.bf16.msra.mxu0 0
        %2024 = vmatprep.subr.bf16.mxu0 0
        %2025 = vmatpush1.bf16.msra.mxu0 0
        %2026 = vmatprep.mubr.bf16.mxu0 0
        %2027 = vmatmul.mubr.bf16.gmra.mrb[0].mxu0 %v1992
        %v2028 = vpop.f32.mrb[0].mxu0
        %v2029 = vadd.f32 0.0, %v2028
        %v2030 = vpop.f32.mrb[0].mxu0
        %v2031 = vpop.f32.mrb[0].mxu0
        %v2032 = vadd.f32 0.0, %v2031
        %v2033 = vpop.f32.mrb[0].mxu0
        %2034 = vdwg.mxu0
        %v2035 = vmul.f32 %v1578, %v1941
        %v2036 = vmul.f32 %v1578, %v1944
        %v2037 = vmul.f32 %v1601, %v1985
        %v2038 = vmul.f32 %v1601, %v1988
        %v2039 = vadd.f32 %v2035, %v2037
        %v2040 = vadd.f32 %v2036, %v2038
        %v2041 = vmul.f32 %v1626, %v2029
        %v2042 = vmul.f32 %v1626, %v2032
        %v2043 = vadd.f32 %v2039, %v2041
        %v2044 = vadd.f32 %v2040, %v2042
        %v2045 = vmul.f32 %v1584, %v1941
        %v2046 = vmul.f32 %v1584, %v1944
        %v2047 = vmul.f32 %v1608, %v1985
        %v2048 = vmul.f32 %v1608, %v1988
        %v2049 = vadd.f32 %v2045, %v2047
        %v2050 = vadd.f32 %v2046, %v2048
        %v2051 = vmul.f32 %v1633, %v2029
        %v2052 = vmul.f32 %v1633, %v2032
        %v2053 = vadd.f32 %v2049, %v2051
        %v2054 = vadd.f32 %v2050, %v2052
        %v2055 = vmul.f32 %v1592, %v1941
        %v2056 = vmul.f32 %v1592, %v1944
        %v2057 = vmul.f32 %v1617, %v1985
        %v2058 = vmul.f32 %v1617, %v1988
        %v2059 = vadd.f32 %v2055, %v2057
        %v2060 = vadd.f32 %v2056, %v2058
        %v2061 = vmul.f32 %v1642, %v2029
        %v2062 = vmul.f32 %v1642, %v2032
        %v2063 = vadd.f32 %v2059, %v2061
        %v2064 = vadd.f32 %v2060, %v2062
        %s2065 = scalar_lea.vmem %s428, 48 [#allocation8]
        %2066 = vst.msk [vmem:[%s2065] sm:$0xff] %vm879, %v2043
        %2067 = vst.msk [vmem:[%s2065 + $0x8] sm:$0xff] %vm879, %v2044
        %2068 = vst.msk [vmem:[%s2065 + $0x10] sm:$0xff] %vm879, %v2053
        %2069 = vst.msk [vmem:[%s2065 + $0x18] sm:$0xff] %vm879, %v2054
        %2070 = vst.msk [vmem:[%s2065 + $0x20] sm:$0xff] %vm879, %v2063
        %2071 = vst.msk [vmem:[%s2065 + $0x28] sm:$0xff] %vm879, %v2064
        %s2072 = scalar_lea.vmem %s435, 48 [#allocation9]
        %2073 = vst.msk [vmem:[%s2072] sm:$0xff] %vm879, %v1596
        %2074 = vst.msk [vmem:[%s2072 + $0x8] sm:$0xff] %vm879, %v1597
        %2075 = vst.msk [vmem:[%s2072 + $0x10] sm:$0xff] %vm879, %v1621
        %2076 = vst.msk [vmem:[%s2072 + $0x18] sm:$0xff] %vm879, %v1622
        %2077 = vst.msk [vmem:[%s2072 + $0x20] sm:$0xff] %vm879, %v1646
        %2078 = vst.msk [vmem:[%s2072 + $0x28] sm:$0xff] %vm879, %v1647
        %s2079 = sand.u32 %s195, 1
        %s2080 = scalar_lea.sflag [#allocation4], %s2079
        %s2081 = sand.u32 %s195, 1
        %s2082 = smul.addr %s2081, 96
        %s2083 = scalar_lea.vmem [#allocation8], %s2082
        %s2084 = sand.u32 %s221, 1
        %s2085 = scalar_lea.sflag [#allocation10], %s2084
        %s2086 = sand.u32 %s221, 1
        %s2087 = smul.addr %s2086, 96
        %s2088 = scalar_lea.vmem [#allocation9], %s2087
        // Predicated region
        $region57: #{tpu_custom_call.1} parent=43 // pred_check
          %p2089 = pneg %p205
        $region58: #{tpu_custom_call.1} parent=43 // pred_check_branch
          %2091 = sbr.rel (%p2089) target = $region60
        $region59: #{tpu_custom_call.1} parent=43 // pred_region
          %s2092 = smul.u32 2, %s31
          %s2094 = ssub.s32 1536, 1536
          %2095 = vsyncadd %s2080, %s2094
          %s2096 = smul.addr %s2092, 6
          %s2097 = smul.addr %s2096, 128
          %s2098 = scalar_lea.hbm %s6, %s2097
          %s2099 = sshll.u32 %s2083, 4
          %s2100 = int_to_ptr.vmem [resolvable:$true] %s2099
          %2105 = dma.vmem_to_hbm [thread:$0]  %s2100, 1536, %s2098, %s2080, 128, 128, 8
        $region60: #{tpu_custom_call.1} parent=43 // pred_fallthru
          _
        // Predicated region
        $region61: #{tpu_custom_call.1} parent=43 // pred_check
          %p2106 = pneg %p231
        $region62: #{tpu_custom_call.1} parent=43 // pred_check_branch
          %2108 = sbr.rel (%p2106) target = $region64
        $region63: #{tpu_custom_call.1} parent=43 // pred_region
          %s2109 = smul.u32 2, %s31
          %s2111 = ssub.s32 1536, 1536
          %2112 = vsyncadd %s2085, %s2111
          %s2113 = smul.addr %s2109, 6
          %s2114 = smul.addr %s2113, 128
          %s2115 = scalar_lea.hbm %s7, %s2114
          %s2116 = sshll.u32 %s2088, 4
          %s2117 = int_to_ptr.vmem [resolvable:$true] %s2116
          %2122 = dma.vmem_to_hbm [thread:$0]  %s2117, 1536, %s2115, %s2085, 128, 128, 8
        $region64: #{tpu_custom_call.1} parent=43 // pred_fallthru
          _
      $region44: #{tpu_custom_call.1} parent=5 // pred_fallthru
        _
      %p2123 = scmp.le.s32.totalorder 2, %s26
      // Predicated region
      $region65: #{tpu_custom_call.1} parent=5 // pred_check
        %p2124 = pneg %p2123
      $region66: #{tpu_custom_call.1} parent=5 // pred_check_branch
        %2126 = sbr.rel (%p2124) target = $region68
      $region67: #{tpu_custom_call.1} parent=5 // pred_region
        %s2127 = ssub.s32 %s26, 2
        // Predicated region
        $region69: #{tpu_custom_call.1} parent=67 // pred_check
          %p2128 = pneg %p211
        $region70: #{tpu_custom_call.1} parent=67 // pred_check_branch
          %2130 = sbr.rel (%p2128) target = $region72
        $region71: #{tpu_custom_call.1} parent=67 // pred_region
          %s2131 = sand.u32 %s196, 1
          %s2132 = scalar_lea.sflag [#allocation4], %s2131
          %s2133 = sand.u32 %s196, 1
          %s2134 = smul.addr %s2133, 96
          %s2135 = scalar_lea.vmem [#allocation8], %s2134
          %2136 = dma.done %s2132, 1536
        $region72: #{tpu_custom_call.1} parent=67 // pred_fallthru
          _
        // Predicated region
        $region73: #{tpu_custom_call.1} parent=67 // pred_check
          %p2137 = pneg %p237
        $region74: #{tpu_custom_call.1} parent=67 // pred_check_branch
          %2139 = sbr.rel (%p2137) target = $region76
        $region75: #{tpu_custom_call.1} parent=67 // pred_region
          %s2140 = sand.u32 %s222, 1
          %s2141 = scalar_lea.sflag [#allocation10], %s2140
          %s2142 = sand.u32 %s222, 1
          %s2143 = smul.addr %s2142, 96
          %s2144 = scalar_lea.vmem [#allocation9], %s2143
          %2145 = dma.done %s2141, 1536
        $region76: #{tpu_custom_call.1} parent=67 // pred_fallthru
          _
      $region68: #{tpu_custom_call.1} parent=5 // pred_fallthru
        _
    $region6: #{tpu_custom_call.1} parent=1 // loop_footer
      %s30 = sadd.s32 1, %s26
    $region7: #{tpu_custom_call.1} parent=1 // loop_footer_branch
      %25 = sbr.rel target = $region3
    $region8: #{tpu_custom_call.1} parent=1 // loop_exit
      _
    %2146 = vsyncpa [#allocation3], 1
    %s2147 = scalar_lea.sflag [#allocation3], 1
    %2148 = vsyncpa %s2147, 1
    %2149 = vsyncpa [#allocation6], 1
    %s2150 = scalar_lea.sflag [#allocation6], 1
    %2151 = vsyncpa %s2150, 1
    %2152 = vsyncpa [#allocation4], 1
    %s2153 = scalar_lea.sflag [#allocation4], 1
    %2154 = vsyncpa %s2153, 1
    %2155 = vsyncpa [#allocation10], 1
    %s2156 = scalar_lea.sflag [#allocation10], 1
    %2157 = vsyncpa %s2156, 1

</llo_original>
